<compile_context>
chip_gen: v7x
topology: tpu7x:2x2x1
jax: 0.10.0
libtpu: 0.0.40
codegen_flags: <defaults>
</compile_context>

<pallas_src>
import functools

import jax
import jax.numpy as jnp
from jax.experimental import pallas as pl
from jax.experimental.pallas import tpu as pltpu  # noqa: F401


# ----------------------------- config (small) -----------------------------
HIDDEN = 64            # hidden_size
INTERMEDIATE = 128     # intermediate_size
NUM_LAYERS = 2         # num_hidden_layers
NUM_HEADS = 4          # num_attention_heads
HEAD_DIM = HIDDEN // NUM_HEADS
NUM_CHANNELS = 3
IMAGE_SIZE = 16
PATCH_SIZE = 8
LN_EPS = 1e-6
NUM_PATCHES = (IMAGE_SIZE // PATCH_SIZE) ** 2          # 4
PATCH_DIM = NUM_CHANNELS * PATCH_SIZE * PATCH_SIZE     # 192
BATCH = 2


# ----------------------------- in-kernel helpers -----------------------------
def _layernorm(x, gamma, beta, eps):
    # PyTorch nn.LayerNorm: biased variance over last dim.
    mean = jnp.mean(x, axis=-1, keepdims=True)
    var = jnp.mean((x - mean) * (x - mean), axis=-1, keepdims=True)
    return (x - mean) * jax.lax.rsqrt(var + eps) * gamma + beta


def _gelu_tanh(x):
    # torch.nn.functional.gelu(..., approximate='tanh')
    c = 0.7978845608028654  # sqrt(2/pi)
    return 0.5 * x * (1.0 + jnp.tanh(c * (x + 0.044715 * x * x * x)))


# ----------------------------- fused forward kernel -----------------------------
def fused_siglip_kernel(
    patches_ref, pw_ref, posb_ref, attn_bias_ref,
    ln1g_ref, ln1b_ref, wqkv_ref, bqkv_ref, wo_ref, bo_ref,
    ln2g_ref, ln2b_ref, w1_ref, b1_ref, w2_ref, b2_ref,
    postg_ref, postb_ref, out_ref,
    *, num_layers, num_heads, head_dim, eps):
    d = num_heads * head_dim

    # ---- patch embedding + (conv bias + position embedding) fused add ----
    x = (jnp.dot(patches_ref[...], pw_ref[...], preferred_element_type=jnp.float32)
         + posb_ref[...])                                    # [B*N, D]

    attn_bias = attn_bias_ref[...]                           # [B*N, B*N] 0 / -1e30

    for l in range(num_layers):                              # static unroll (L=2)
        # ---- LayerNorm 1 ----
        h = _layernorm(x, ln1g_ref[l], ln1b_ref[l], eps)

        # ---- fused QKV projection (scale pre-folded into Q weight/bias) ----
        qkv = (jnp.dot(h, wqkv_ref[l], preferred_element_type=jnp.float32)
               + bqkv_ref[l])                                # [BN, 3D]

        # head-batched views [H, BN, Hd] from static lane slices of qkv
        def split_heads(base):
            return jnp.stack(
                [qkv[:, base + hh * head_dim: base + (hh + 1) * head_dim]
                 for hh in range(num_heads)], axis=0)
        q = split_heads(0)
        k = split_heads(d)
        v = split_heads(2 * d)

        # ---- attention: two head-batched einsums; block-diag bias keeps images apart
        s = jnp.einsum('hqd,hkd->hqk', q, k,
                       preferred_element_type=jnp.float32)            # [H, BN, BN]
        s = s + attn_bias
        s = s - jnp.max(s, axis=-1, keepdims=True)
        p = jnp.exp(s)
        p = p * pl.reciprocal(jnp.sum(p, axis=-1, keepdims=True), approx=True)
        o = jnp.einsum('hqk,hkd->hqd', p, v,
                       preferred_element_type=jnp.float32)            # [H, BN, Hd]

        attn = jnp.concatenate([o[hh] for hh in range(num_heads)], axis=-1)  # [BN, D]
        attn = (jnp.dot(attn, wo_ref[l], preferred_element_type=jnp.float32)
                + bo_ref[l])
        x = x + attn                                          # residual 1

        # ---- LayerNorm 2 + MLP ----
        h2 = _layernorm(x, ln2g_ref[l], ln2b_ref[l], eps)
        m = jnp.dot(h2, w1_ref[l], preferred_element_type=jnp.float32) + b1_ref[l]
        m = _gelu_tanh(m)
        m = jnp.dot(m, w2_ref[l], preferred_element_type=jnp.float32) + b2_ref[l]
        x = x + m                                             # residual 2

    # ---- post layernorm ----
    out_ref[...] = _layernorm(x, postg_ref[...], postb_ref[...], eps)


# ----------------------------- wrapper -----------------------------
def extract_patches(pixel_values):
    # NCHW -> [B, N, C*P*P]; per-patch flatten order (C, P, P) matches the
    # Conv2d weight reshape used in init_params.
    B, C, H, W = pixel_values.shape
    P = PATCH_SIZE
    x = pixel_values.reshape(B, C, H // P, P, W // P, P)
    x = x.transpose(0, 2, 4, 1, 3, 5)
    return x.reshape(B, (H // P) * (W // P), C * P * P)


def siglip_vision_forward(pixel_values, params):
    B = pixel_values.shape[0]
    BN = B * NUM_PATCHES
    D, I, K, L = HIDDEN, INTERMEDIATE, PATCH_DIM, NUM_LAYERS
    patches = extract_patches(pixel_values).reshape(BN, K)

    kernel = functools.partial(
        fused_siglip_kernel, num_layers=L, num_heads=NUM_HEADS,
        head_dim=HEAD_DIM, eps=LN_EPS)

    def full(shape):
        return pl.BlockSpec(shape, lambda: (0,) * len(shape))

    out = pl.pallas_call(
        kernel,
        out_shape=jax.ShapeDtypeStruct((BN, D), jnp.float32),
        grid=(),
        in_specs=[
            full((BN, K)), full((K, D)), full((BN, D)), full((BN, BN)),
            full((L, 1, D)), full((L, 1, D)),
            full((L, D, 3 * D)), full((L, 1, 3 * D)),
            full((L, D, D)), full((L, 1, D)),
            full((L, 1, D)), full((L, 1, D)),
            full((L, D, I)), full((L, 1, I)),
            full((L, I, D)), full((L, 1, D)),
            full((1, D)), full((1, D)),
        ],
        out_specs=full((BN, D)),
    )(patches, params["patch_w"], params["pos_plus_bias"], params["attn_bias"],
      params["ln1_g"], params["ln1_b"],
      params["wqkv"], params["bqkv"], params["wo"], params["bo"],
      params["ln2_g"], params["ln2_b"],
      params["w1"], params["b1"], params["w2"], params["b2"],
      params["post_ln_g"], params["post_ln_b"])
    return out.reshape(B, NUM_PATCHES, D)


# ----------------------------- parameter construction -----------------------------
def init_params(key, batch):
    def nrm(k, shape, scale=0.02):
        return scale * jax.random.normal(k, shape, dtype=jnp.float32)

    keys = iter(jax.random.split(key, 3 + NUM_LAYERS * 12))
    params = {}

    # patch embedding conv: torch weight [D, C, P, P], bias [D]
    conv_w = nrm(next(keys), (HIDDEN, NUM_CHANNELS, PATCH_SIZE, PATCH_SIZE))
    params["patch_w"] = conv_w.reshape(HIDDEN, PATCH_DIM).T          # [C*P*P, D]
    patch_b = nrm(next(keys), (1, HIDDEN))

    # position embedding, pre-expanded ONCE to [B*N, D] and fused with the
    # conv bias at setup time (one add per element saved per forward).
    pos = nrm(next(keys), (NUM_PATCHES, HIDDEN))
    params["pos_plus_bias"] = jnp.tile(pos, (batch, 1)) + patch_b

    # block-diagonal additive attention bias: 0 within an image, -1e30 across
    bn = batch * NUM_PATCHES
    img_id = jnp.arange(bn) // NUM_PATCHES
    params["attn_bias"] = jnp.where(img_id[:, None] == img_id[None, :],
                                    0.0, -1e30).astype(jnp.float32)

    params["post_ln_g"] = jnp.ones((1, HIDDEN), jnp.float32)
    params["post_ln_b"] = jnp.zeros((1, HIDDEN), jnp.float32)

    scale = HEAD_DIM ** -0.5

    ln1_g, ln1_b, ln2_g, ln2_b = [], [], [], []
    wqkv, bqkv, wo, bo = [], [], [], []
    w1, b1, w2, b2 = [], [], [], []
    for _ in range(NUM_LAYERS):
        ln1_g.append(jnp.ones((1, HIDDEN), jnp.float32))
        ln1_b.append(jnp.zeros((1, HIDDEN), jnp.float32))
        ln2_g.append(jnp.ones((1, HIDDEN), jnp.float32))
        ln2_b.append(jnp.zeros((1, HIDDEN), jnp.float32))
        # torch nn.Linear weight is [out, in]; pre-transpose so kernel does x @ W + b.
        # Attention scale is folded into the Q slice (setup-time, exact).
        wq = nrm(next(keys), (HIDDEN, HIDDEN)).T * scale
        bq = nrm(next(keys), (1, HIDDEN)) * scale
        wk = nrm(next(keys), (HIDDEN, HIDDEN)).T
        bk = nrm(next(keys), (1, HIDDEN))
        wv = nrm(next(keys), (HIDDEN, HIDDEN)).T
        bv = nrm(next(keys), (1, HIDDEN))
        wqkv.append(jnp.concatenate([wq, wk, wv], axis=1))           # [D, 3D]
        bqkv.append(jnp.concatenate([bq, bk, bv], axis=1))           # [1, 3D]
        wo.append(nrm(next(keys), (HIDDEN, HIDDEN)).T)
        bo.append(nrm(next(keys), (1, HIDDEN)))
        w1.append(nrm(next(keys), (INTERMEDIATE, HIDDEN)).T)         # [D, I]
        b1.append(nrm(next(keys), (1, INTERMEDIATE)))
        w2.append(nrm(next(keys), (HIDDEN, INTERMEDIATE)).T)         # [I, D]
        b2.append(nrm(next(keys), (1, HIDDEN)))

    stack = lambda xs: jnp.stack(xs, axis=0)
    params.update(
        ln1_g=stack(ln1_g), ln1_b=stack(ln1_b),
        ln2_g=stack(ln2_g), ln2_b=stack(ln2_b),
        wqkv=stack(wqkv), bqkv=stack(bqkv), wo=stack(wo), bo=stack(bo),
        w1=stack(w1), b1=stack(b1), w2=stack(w2), b2=stack(b2))
    return params


# ----------------------------- main -----------------------------
if __name__ == "__main__":
    key = jax.random.PRNGKey(0)
    k_params, k_pix = jax.random.split(key)
    params = init_params(k_params, BATCH)
    pixel_values = jax.random.normal(
        k_pix, (BATCH, NUM_CHANNELS, IMAGE_SIZE, IMAGE_SIZE), dtype=jnp.float32)

    forward = jax.jit(siglip_vision_forward)
    out = forward(pixel_values, params)
    out = jax.block_until_ready(out)
    assert out.shape == (BATCH, NUM_PATCHES, HIDDEN)
    assert bool(jnp.all(jnp.isfinite(out)))
    print("KERNEL_OK")
</pallas_src>

<mosaic_0001>
module attributes {stable_mosaic.version = 11 : i64} {
  func.func @fused_siglip_kernel(%arg0: memref<8x192xf32, #tpu.memory_space<vmem>>, %arg1: memref<192x64xf32, #tpu.memory_space<vmem>>, %arg2: memref<8x64xf32, #tpu.memory_space<vmem>>, %arg3: memref<8x8xf32, #tpu.memory_space<vmem>>, %arg4: memref<2x1x64xf32, #tpu.memory_space<vmem>>, %arg5: memref<2x1x64xf32, #tpu.memory_space<vmem>>, %arg6: memref<2x64x192xf32, #tpu.memory_space<vmem>>, %arg7: memref<2x1x192xf32, #tpu.memory_space<vmem>>, %arg8: memref<2x64x64xf32, #tpu.memory_space<vmem>>, %arg9: memref<2x1x64xf32, #tpu.memory_space<vmem>>, %arg10: memref<2x1x64xf32, #tpu.memory_space<vmem>>, %arg11: memref<2x1x64xf32, #tpu.memory_space<vmem>>, %arg12: memref<2x64x128xf32, #tpu.memory_space<vmem>>, %arg13: memref<2x1x128xf32, #tpu.memory_space<vmem>>, %arg14: memref<2x128x64xf32, #tpu.memory_space<vmem>>, %arg15: memref<2x1x64xf32, #tpu.memory_space<vmem>>, %arg16: memref<1x64xf32, #tpu.memory_space<vmem>>, %arg17: memref<1x64xf32, #tpu.memory_space<vmem>>, %arg18: memref<8x64xf32, #tpu.memory_space<vmem>>) attributes {dimension_semantics = [], scalar_prefetch = 0 : i64, scratch_operands = 0 : i64, tpu.core_type = #tpu.core_type<tc>} {
    %c0 = arith.constant 0 : index
    %c0_0 = arith.constant 0 : index
    %0 = vector.load %arg0[%c0, %c0_0] : memref<8x192xf32, #tpu.memory_space<vmem>>, vector<8x192xf32>
    %c0_1 = arith.constant 0 : index
    %c0_2 = arith.constant 0 : index
    %1 = vector.load %arg1[%c0_1, %c0_2] : memref<192x64xf32, #tpu.memory_space<vmem>>, vector<192x64xf32>
    %cst = arith.constant dense<0.000000e+00> : vector<8x64xf32>
    %2 = tpu.matmul %0, %1, %cst {dimension_numbers = #tpu.dot_dimension_numbers<[1], [0], [0], [1], [0, 0, 1, 1], [], []>} : vector<8x192xf32>, vector<192x64xf32>, vector<8x64xf32> -> vector<8x64xf32>
    %c0_3 = arith.constant 0 : index
    %c0_4 = arith.constant 0 : index
    %3 = vector.load %arg2[%c0_3, %c0_4] : memref<8x64xf32, #tpu.memory_space<vmem>>, vector<8x64xf32>
    %4 = arith.addf %2, %3 : vector<8x64xf32>
    %c0_5 = arith.constant 0 : index
    %c0_6 = arith.constant 0 : index
    %5 = vector.load %arg3[%c0_5, %c0_6] : memref<8x8xf32, #tpu.memory_space<vmem>>, vector<8x8xf32>
    %c0_7 = arith.constant 0 : index
    %c0_8 = arith.constant 0 : index
    %c0_9 = arith.constant 0 : index
    %6 = vector.load %arg4[%c0_7, %c0_8, %c0_9] : memref<2x1x64xf32, #tpu.memory_space<vmem>>, vector<1x1x64xf32>
    %7 = vector.shape_cast %6 : vector<1x1x64xf32> to vector<1x64xf32>
    %c0_10 = arith.constant 0 : index
    %c0_11 = arith.constant 0 : index
    %c0_12 = arith.constant 0 : index
    %8 = vector.load %arg5[%c0_10, %c0_11, %c0_12] : memref<2x1x64xf32, #tpu.memory_space<vmem>>, vector<1x1x64xf32>
    %9 = vector.shape_cast %8 : vector<1x1x64xf32> to vector<1x64xf32>
    %cst_13 = arith.constant dense<0.000000e+00> : vector<8xf32>
    %10 = vector.multi_reduction <add>, %4, %cst_13 [1] : vector<8x64xf32> to vector<8xf32>
    %11 = vector.shape_cast %10 : vector<8xf32> to vector<8x1xf32>
    %cst_14 = arith.constant 6.400000e+01 : f32
    %12 = vector.broadcast %cst_14 : f32 to vector<8x1xf32>
    %13 = arith.divf %11, %12 : vector<8x1xf32>
    %14 = vector.broadcast %13 : vector<8x1xf32> to vector<8x64xf32>
    %15 = arith.subf %4, %14 : vector<8x64xf32>
    %16 = vector.broadcast %13 : vector<8x1xf32> to vector<8x64xf32>
    %17 = arith.subf %4, %16 : vector<8x64xf32>
    %18 = arith.mulf %15, %17 : vector<8x64xf32>
    %cst_15 = arith.constant dense<0.000000e+00> : vector<8xf32>
    %19 = vector.multi_reduction <add>, %18, %cst_15 [1] : vector<8x64xf32> to vector<8xf32>
    %20 = vector.shape_cast %19 : vector<8xf32> to vector<8x1xf32>
    %cst_16 = arith.constant 6.400000e+01 : f32
    %21 = vector.broadcast %cst_16 : f32 to vector<8x1xf32>
    %22 = arith.divf %20, %21 : vector<8x1xf32>
    %23 = vector.broadcast %13 : vector<8x1xf32> to vector<8x64xf32>
    %24 = arith.subf %4, %23 : vector<8x64xf32>
    %cst_17 = arith.constant 9.99999997E-7 : f32
    %25 = vector.broadcast %cst_17 : f32 to vector<8x1xf32>
    %26 = arith.addf %22, %25 : vector<8x1xf32>
    %27 = math.rsqrt %26 : vector<8x1xf32>
    %28 = vector.broadcast %27 : vector<8x1xf32> to vector<8x64xf32>
    %29 = arith.mulf %24, %28 : vector<8x64xf32>
    %30 = vector.broadcast %7 : vector<1x64xf32> to vector<8x64xf32>
    %31 = arith.mulf %29, %30 : vector<8x64xf32>
    %32 = vector.broadcast %9 : vector<1x64xf32> to vector<8x64xf32>
    %33 = arith.addf %31, %32 : vector<8x64xf32>
    %c0_18 = arith.constant 0 : index
    %c0_19 = arith.constant 0 : index
    %c0_20 = arith.constant 0 : index
    %34 = vector.load %arg6[%c0_18, %c0_19, %c0_20] : memref<2x64x192xf32, #tpu.memory_space<vmem>>, vector<1x64x192xf32>
    %35 = vector.shape_cast %34 : vector<1x64x192xf32> to vector<64x192xf32>
    %cst_21 = arith.constant dense<0.000000e+00> : vector<8x192xf32>
    %36 = tpu.matmul %33, %35, %cst_21 {dimension_numbers = #tpu.dot_dimension_numbers<[1], [0], [0], [1], [0, 0, 1, 1], [], []>} : vector<8x64xf32>, vector<64x192xf32>, vector<8x192xf32> -> vector<8x192xf32>
    %c0_22 = arith.constant 0 : index
    %c0_23 = arith.constant 0 : index
    %c0_24 = arith.constant 0 : index
    %37 = vector.load %arg7[%c0_22, %c0_23, %c0_24] : memref<2x1x192xf32, #tpu.memory_space<vmem>>, vector<1x1x192xf32>
    %38 = vector.shape_cast %37 : vector<1x1x192xf32> to vector<1x192xf32>
    %39 = vector.broadcast %38 : vector<1x192xf32> to vector<8x192xf32>
    %40 = arith.addf %36, %39 : vector<8x192xf32>
    %41 = vector.extract_strided_slice %40 {offsets = [0, 0], sizes = [8, 16], strides = [1, 1]} : vector<8x192xf32> to vector<8x16xf32>
    %42 = vector.extract_strided_slice %40 {offsets = [0, 16], sizes = [8, 16], strides = [1, 1]} : vector<8x192xf32> to vector<8x16xf32>
    %43 = vector.extract_strided_slice %40 {offsets = [0, 32], sizes = [8, 16], strides = [1, 1]} : vector<8x192xf32> to vector<8x16xf32>
    %44 = vector.extract_strided_slice %40 {offsets = [0, 48], sizes = [8, 16], strides = [1, 1]} : vector<8x192xf32> to vector<8x16xf32>
    %45 = vector.shape_cast %41 : vector<8x16xf32> to vector<1x8x16xf32>
    %46 = vector.shape_cast %42 : vector<8x16xf32> to vector<1x8x16xf32>
    %47 = vector.shape_cast %43 : vector<8x16xf32> to vector<1x8x16xf32>
    %48 = vector.shape_cast %44 : vector<8x16xf32> to vector<1x8x16xf32>
    %49 = tpu.concatenate %45, %46, %47, %48 in 0 : vector<1x8x16xf32>, vector<1x8x16xf32>, vector<1x8x16xf32>, vector<1x8x16xf32> -> vector<4x8x16xf32>
    %50 = vector.extract_strided_slice %40 {offsets = [0, 64], sizes = [8, 16], strides = [1, 1]} : vector<8x192xf32> to vector<8x16xf32>
    %51 = vector.extract_strided_slice %40 {offsets = [0, 80], sizes = [8, 16], strides = [1, 1]} : vector<8x192xf32> to vector<8x16xf32>
    %52 = vector.extract_strided_slice %40 {offsets = [0, 96], sizes = [8, 16], strides = [1, 1]} : vector<8x192xf32> to vector<8x16xf32>
    %53 = vector.extract_strided_slice %40 {offsets = [0, 112], sizes = [8, 16], strides = [1, 1]} : vector<8x192xf32> to vector<8x16xf32>
    %54 = vector.shape_cast %50 : vector<8x16xf32> to vector<1x8x16xf32>
    %55 = vector.shape_cast %51 : vector<8x16xf32> to vector<1x8x16xf32>
    %56 = vector.shape_cast %52 : vector<8x16xf32> to vector<1x8x16xf32>
    %57 = vector.shape_cast %53 : vector<8x16xf32> to vector<1x8x16xf32>
    %58 = tpu.concatenate %54, %55, %56, %57 in 0 : vector<1x8x16xf32>, vector<1x8x16xf32>, vector<1x8x16xf32>, vector<1x8x16xf32> -> vector<4x8x16xf32>
    %59 = vector.extract_strided_slice %40 {offsets = [0, 128], sizes = [8, 16], strides = [1, 1]} : vector<8x192xf32> to vector<8x16xf32>
    %60 = vector.extract_strided_slice %40 {offsets = [0, 144], sizes = [8, 16], strides = [1, 1]} : vector<8x192xf32> to vector<8x16xf32>
    %61 = vector.extract_strided_slice %40 {offsets = [0, 160], sizes = [8, 16], strides = [1, 1]} : vector<8x192xf32> to vector<8x16xf32>
    %62 = vector.extract_strided_slice %40 {offsets = [0, 176], sizes = [8, 16], strides = [1, 1]} : vector<8x192xf32> to vector<8x16xf32>
    %63 = vector.shape_cast %59 : vector<8x16xf32> to vector<1x8x16xf32>
    %64 = vector.shape_cast %60 : vector<8x16xf32> to vector<1x8x16xf32>
    %65 = vector.shape_cast %61 : vector<8x16xf32> to vector<1x8x16xf32>
    %66 = vector.shape_cast %62 : vector<8x16xf32> to vector<1x8x16xf32>
    %67 = tpu.concatenate %63, %64, %65, %66 in 0 : vector<1x8x16xf32>, vector<1x8x16xf32>, vector<1x8x16xf32>, vector<1x8x16xf32> -> vector<4x8x16xf32>
    "tpu.trace_start"() <{level = 10 : i32, message = "hqd,hkd->hqk"}> : () -> ()
    %cst_25 = arith.constant dense<0.000000e+00> : vector<4x8x8xf32>
    %68 = tpu.matmul %49, %58, %cst_25 {dimension_numbers = #tpu.dot_dimension_numbers<[2], [2], [1], [1], [0, 0, 0, 1, 1, 1], [0], [0]>} : vector<4x8x16xf32>, vector<4x8x16xf32>, vector<4x8x8xf32> -> vector<4x8x8xf32>
    "tpu.trace_stop"() : () -> ()
    %69 = vector.shape_cast %5 : vector<8x8xf32> to vector<1x8x8xf32>
    %70 = vector.broadcast %69 : vector<1x8x8xf32> to vector<4x8x8xf32>
    %71 = arith.addf %68, %70 : vector<4x8x8xf32>
    %cst_26 = arith.constant dense<0xFF800000> : vector<4x8xf32>
    %72 = vector.multi_reduction <maximumf>, %71, %cst_26 [2] : vector<4x8x8xf32> to vector<4x8xf32>
    %73 = vector.shape_cast %72 : vector<4x8xf32> to vector<4x8x1xf32>
    %74 = vector.broadcast %73 : vector<4x8x1xf32> to vector<4x8x8xf32>
    %75 = arith.subf %71, %74 : vector<4x8x8xf32>
    %76 = math.exp %75 : vector<4x8x8xf32>
    %cst_27 = arith.constant dense<0.000000e+00> : vector<4x8xf32>
    %77 = vector.multi_reduction <add>, %76, %cst_27 [2] : vector<4x8x8xf32> to vector<4x8xf32>
    %78 = vector.shape_cast %77 : vector<4x8xf32> to vector<4x8x1xf32>
    %79 = tpu.reciprocal %78 {approx = true} : vector<4x8x1xf32> -> vector<4x8x1xf32>
    %80 = vector.broadcast %79 : vector<4x8x1xf32> to vector<4x8x8xf32>
    %81 = arith.mulf %76, %80 : vector<4x8x8xf32>
    "tpu.trace_start"() <{level = 10 : i32, message = "hqk,hkd->hqd"}> : () -> ()
    %cst_28 = arith.constant dense<0.000000e+00> : vector<4x8x16xf32>
    %82 = tpu.matmul %81, %67, %cst_28 {dimension_numbers = #tpu.dot_dimension_numbers<[2], [1], [1], [2], [0, 0, 0, 1, 1, 2], [0], [0]>} : vector<4x8x8xf32>, vector<4x8x16xf32>, vector<4x8x16xf32> -> vector<4x8x16xf32>
    "tpu.trace_stop"() : () -> ()
    %83 = vector.extract_strided_slice %82 {offsets = [0, 0, 0], sizes = [1, 8, 16], strides = [1, 1, 1]} : vector<4x8x16xf32> to vector<1x8x16xf32>
    %84 = vector.shape_cast %83 : vector<1x8x16xf32> to vector<8x16xf32>
    %85 = vector.extract_strided_slice %82 {offsets = [1, 0, 0], sizes = [1, 8, 16], strides = [1, 1, 1]} : vector<4x8x16xf32> to vector<1x8x16xf32>
    %86 = vector.shape_cast %85 : vector<1x8x16xf32> to vector<8x16xf32>
    %87 = vector.extract_strided_slice %82 {offsets = [2, 0, 0], sizes = [1, 8, 16], strides = [1, 1, 1]} : vector<4x8x16xf32> to vector<1x8x16xf32>
    %88 = vector.shape_cast %87 : vector<1x8x16xf32> to vector<8x16xf32>
    %89 = vector.extract_strided_slice %82 {offsets = [3, 0, 0], sizes = [1, 8, 16], strides = [1, 1, 1]} : vector<4x8x16xf32> to vector<1x8x16xf32>
    %90 = vector.shape_cast %89 : vector<1x8x16xf32> to vector<8x16xf32>
    %91 = tpu.concatenate %84, %86, %88, %90 in 1 : vector<8x16xf32>, vector<8x16xf32>, vector<8x16xf32>, vector<8x16xf32> -> vector<8x64xf32>
    %c0_29 = arith.constant 0 : index
    %c0_30 = arith.constant 0 : index
    %c0_31 = arith.constant 0 : index
    %92 = vector.load %arg8[%c0_29, %c0_30, %c0_31] : memref<2x64x64xf32, #tpu.memory_space<vmem>>, vector<1x64x64xf32>
    %93 = vector.shape_cast %92 : vector<1x64x64xf32> to vector<64x64xf32>
    %cst_32 = arith.constant dense<0.000000e+00> : vector<8x64xf32>
    %94 = tpu.matmul %91, %93, %cst_32 {dimension_numbers = #tpu.dot_dimension_numbers<[1], [0], [0], [1], [0, 0, 1, 1], [], []>} : vector<8x64xf32>, vector<64x64xf32>, vector<8x64xf32> -> vector<8x64xf32>
    %c0_33 = arith.constant 0 : index
    %c0_34 = arith.constant 0 : index
    %c0_35 = arith.constant 0 : index
    %95 = vector.load %arg9[%c0_33, %c0_34, %c0_35] : memref<2x1x64xf32, #tpu.memory_space<vmem>>, vector<1x1x64xf32>
    %96 = vector.shape_cast %95 : vector<1x1x64xf32> to vector<1x64xf32>
    %97 = vector.broadcast %96 : vector<1x64xf32> to vector<8x64xf32>
    %98 = arith.addf %94, %97 : vector<8x64xf32>
    %99 = arith.addf %4, %98 : vector<8x64xf32>
    %c0_36 = arith.constant 0 : index
    %c0_37 = arith.constant 0 : index
    %c0_38 = arith.constant 0 : index
    %100 = vector.load %arg10[%c0_36, %c0_37, %c0_38] : memref<2x1x64xf32, #tpu.memory_space<vmem>>, vector<1x1x64xf32>
    %101 = vector.shape_cast %100 : vector<1x1x64xf32> to vector<1x64xf32>
    %c0_39 = arith.constant 0 : index
    %c0_40 = arith.constant 0 : index
    %c0_41 = arith.constant 0 : index
    %102 = vector.load %arg11[%c0_39, %c0_40, %c0_41] : memref<2x1x64xf32, #tpu.memory_space<vmem>>, vector<1x1x64xf32>
    %103 = vector.shape_cast %102 : vector<1x1x64xf32> to vector<1x64xf32>
    %cst_42 = arith.constant dense<0.000000e+00> : vector<8xf32>
    %104 = vector.multi_reduction <add>, %99, %cst_42 [1] : vector<8x64xf32> to vector<8xf32>
    %105 = vector.shape_cast %104 : vector<8xf32> to vector<8x1xf32>
    %cst_43 = arith.constant 6.400000e+01 : f32
    %106 = vector.broadcast %cst_43 : f32 to vector<8x1xf32>
    %107 = arith.divf %105, %106 : vector<8x1xf32>
    %108 = vector.broadcast %107 : vector<8x1xf32> to vector<8x64xf32>
    %109 = arith.subf %99, %108 : vector<8x64xf32>
    %110 = vector.broadcast %107 : vector<8x1xf32> to vector<8x64xf32>
    %111 = arith.subf %99, %110 : vector<8x64xf32>
    %112 = arith.mulf %109, %111 : vector<8x64xf32>
    %cst_44 = arith.constant dense<0.000000e+00> : vector<8xf32>
    %113 = vector.multi_reduction <add>, %112, %cst_44 [1] : vector<8x64xf32> to vector<8xf32>
    %114 = vector.shape_cast %113 : vector<8xf32> to vector<8x1xf32>
    %cst_45 = arith.constant 6.400000e+01 : f32
    %115 = vector.broadcast %cst_45 : f32 to vector<8x1xf32>
    %116 = arith.divf %114, %115 : vector<8x1xf32>
    %117 = vector.broadcast %107 : vector<8x1xf32> to vector<8x64xf32>
    %118 = arith.subf %99, %117 : vector<8x64xf32>
    %cst_46 = arith.constant 9.99999997E-7 : f32
    %119 = vector.broadcast %cst_46 : f32 to vector<8x1xf32>
    %120 = arith.addf %116, %119 : vector<8x1xf32>
    %121 = math.rsqrt %120 : vector<8x1xf32>
    %122 = vector.broadcast %121 : vector<8x1xf32> to vector<8x64xf32>
    %123 = arith.mulf %118, %122 : vector<8x64xf32>
    %124 = vector.broadcast %101 : vector<1x64xf32> to vector<8x64xf32>
    %125 = arith.mulf %123, %124 : vector<8x64xf32>
    %126 = vector.broadcast %103 : vector<1x64xf32> to vector<8x64xf32>
    %127 = arith.addf %125, %126 : vector<8x64xf32>
    %c0_47 = arith.constant 0 : index
    %c0_48 = arith.constant 0 : index
    %c0_49 = arith.constant 0 : index
    %128 = vector.load %arg12[%c0_47, %c0_48, %c0_49] : memref<2x64x128xf32, #tpu.memory_space<vmem>>, vector<1x64x128xf32>
    %129 = vector.shape_cast %128 : vector<1x64x128xf32> to vector<64x128xf32>
    %cst_50 = arith.constant dense<0.000000e+00> : vector<8x128xf32>
    %130 = tpu.matmul %127, %129, %cst_50 {dimension_numbers = #tpu.dot_dimension_numbers<[1], [0], [0], [1], [0, 0, 1, 1], [], []>} : vector<8x64xf32>, vector<64x128xf32>, vector<8x128xf32> -> vector<8x128xf32>
    %c0_51 = arith.constant 0 : index
    %c0_52 = arith.constant 0 : index
    %c0_53 = arith.constant 0 : index
    %131 = vector.load %arg13[%c0_51, %c0_52, %c0_53] : memref<2x1x128xf32, #tpu.memory_space<vmem>>, vector<1x1x128xf32>
    %132 = vector.shape_cast %131 : vector<1x1x128xf32> to vector<1x128xf32>
    %133 = vector.broadcast %132 : vector<1x128xf32> to vector<8x128xf32>
    %134 = arith.addf %130, %133 : vector<8x128xf32>
    %cst_54 = arith.constant 5.000000e-01 : f32
    %135 = vector.broadcast %cst_54 : f32 to vector<8x128xf32>
    %136 = arith.mulf %135, %134 : vector<8x128xf32>
    %cst_55 = arith.constant 4.471500e-02 : f32
    %137 = vector.broadcast %cst_55 : f32 to vector<8x128xf32>
    %138 = arith.mulf %137, %134 : vector<8x128xf32>
    %139 = arith.mulf %138, %134 : vector<8x128xf32>
    %140 = arith.mulf %139, %134 : vector<8x128xf32>
    %141 = arith.addf %134, %140 : vector<8x128xf32>
    %cst_56 = arith.constant 0.797884583 : f32
    %142 = vector.broadcast %cst_56 : f32 to vector<8x128xf32>
    %143 = arith.mulf %142, %141 : vector<8x128xf32>
    %144 = math.tanh %143 : vector<8x128xf32>
    %cst_57 = arith.constant 1.000000e+00 : f32
    %145 = vector.broadcast %cst_57 : f32 to vector<8x128xf32>
    %146 = arith.addf %145, %144 : vector<8x128xf32>
    %147 = arith.mulf %136, %146 : vector<8x128xf32>
    %c0_58 = arith.constant 0 : index
    %c0_59 = arith.constant 0 : index
    %c0_60 = arith.constant 0 : index
    %148 = vector.load %arg14[%c0_58, %c0_59, %c0_60] : memref<2x128x64xf32, #tpu.memory_space<vmem>>, vector<1x128x64xf32>
    %149 = vector.shape_cast %148 : vector<1x128x64xf32> to vector<128x64xf32>
    %cst_61 = arith.constant dense<0.000000e+00> : vector<8x64xf32>
    %150 = tpu.matmul %147, %149, %cst_61 {dimension_numbers = #tpu.dot_dimension_numbers<[1], [0], [0], [1], [0, 0, 1, 1], [], []>} : vector<8x128xf32>, vector<128x64xf32>, vector<8x64xf32> -> vector<8x64xf32>
    %c0_62 = arith.constant 0 : index
    %c0_63 = arith.constant 0 : index
    %c0_64 = arith.constant 0 : index
    %151 = vector.load %arg15[%c0_62, %c0_63, %c0_64] : memref<2x1x64xf32, #tpu.memory_space<vmem>>, vector<1x1x64xf32>
    %152 = vector.shape_cast %151 : vector<1x1x64xf32> to vector<1x64xf32>
    %153 = vector.broadcast %152 : vector<1x64xf32> to vector<8x64xf32>
    %154 = arith.addf %150, %153 : vector<8x64xf32>
    %155 = arith.addf %99, %154 : vector<8x64xf32>
    %c1 = arith.constant 1 : index
    %c0_65 = arith.constant 0 : index
    %c0_66 = arith.constant 0 : index
    %156 = vector.load %arg4[%c1, %c0_65, %c0_66] : memref<2x1x64xf32, #tpu.memory_space<vmem>>, vector<1x1x64xf32>
    %157 = vector.shape_cast %156 : vector<1x1x64xf32> to vector<1x64xf32>
    %c1_67 = arith.constant 1 : index
    %c0_68 = arith.constant 0 : index
    %c0_69 = arith.constant 0 : index
    %158 = vector.load %arg5[%c1_67, %c0_68, %c0_69] : memref<2x1x64xf32, #tpu.memory_space<vmem>>, vector<1x1x64xf32>
    %159 = vector.shape_cast %158 : vector<1x1x64xf32> to vector<1x64xf32>
    %cst_70 = arith.constant dense<0.000000e+00> : vector<8xf32>
    %160 = vector.multi_reduction <add>, %155, %cst_70 [1] : vector<8x64xf32> to vector<8xf32>
    %161 = vector.shape_cast %160 : vector<8xf32> to vector<8x1xf32>
    %cst_71 = arith.constant 6.400000e+01 : f32
    %162 = vector.broadcast %cst_71 : f32 to vector<8x1xf32>
    %163 = arith.divf %161, %162 : vector<8x1xf32>
    %164 = vector.broadcast %163 : vector<8x1xf32> to vector<8x64xf32>
    %165 = arith.subf %155, %164 : vector<8x64xf32>
    %166 = vector.broadcast %163 : vector<8x1xf32> to vector<8x64xf32>
    %167 = arith.subf %155, %166 : vector<8x64xf32>
    %168 = arith.mulf %165, %167 : vector<8x64xf32>
    %cst_72 = arith.constant dense<0.000000e+00> : vector<8xf32>
    %169 = vector.multi_reduction <add>, %168, %cst_72 [1] : vector<8x64xf32> to vector<8xf32>
    %170 = vector.shape_cast %169 : vector<8xf32> to vector<8x1xf32>
    %cst_73 = arith.constant 6.400000e+01 : f32
    %171 = vector.broadcast %cst_73 : f32 to vector<8x1xf32>
    %172 = arith.divf %170, %171 : vector<8x1xf32>
    %173 = vector.broadcast %163 : vector<8x1xf32> to vector<8x64xf32>
    %174 = arith.subf %155, %173 : vector<8x64xf32>
    %cst_74 = arith.constant 9.99999997E-7 : f32
    %175 = vector.broadcast %cst_74 : f32 to vector<8x1xf32>
    %176 = arith.addf %172, %175 : vector<8x1xf32>
    %177 = math.rsqrt %176 : vector<8x1xf32>
    %178 = vector.broadcast %177 : vector<8x1xf32> to vector<8x64xf32>
    %179 = arith.mulf %174, %178 : vector<8x64xf32>
    %180 = vector.broadcast %157 : vector<1x64xf32> to vector<8x64xf32>
    %181 = arith.mulf %179, %180 : vector<8x64xf32>
    %182 = vector.broadcast %159 : vector<1x64xf32> to vector<8x64xf32>
    %183 = arith.addf %181, %182 : vector<8x64xf32>
    %c1_75 = arith.constant 1 : index
    %c0_76 = arith.constant 0 : index
    %c0_77 = arith.constant 0 : index
    %184 = vector.load %arg6[%c1_75, %c0_76, %c0_77] : memref<2x64x192xf32, #tpu.memory_space<vmem>>, vector<1x64x192xf32>
    %185 = vector.shape_cast %184 : vector<1x64x192xf32> to vector<64x192xf32>
    %cst_78 = arith.constant dense<0.000000e+00> : vector<8x192xf32>
    %186 = tpu.matmul %183, %185, %cst_78 {dimension_numbers = #tpu.dot_dimension_numbers<[1], [0], [0], [1], [0, 0, 1, 1], [], []>} : vector<8x64xf32>, vector<64x192xf32>, vector<8x192xf32> -> vector<8x192xf32>
    %c1_79 = arith.constant 1 : index
    %c0_80 = arith.constant 0 : index
    %c0_81 = arith.constant 0 : index
    %187 = vector.load %arg7[%c1_79, %c0_80, %c0_81] : memref<2x1x192xf32, #tpu.memory_space<vmem>>, vector<1x1x192xf32>
    %188 = vector.shape_cast %187 : vector<1x1x192xf32> to vector<1x192xf32>
    %189 = vector.broadcast %188 : vector<1x192xf32> to vector<8x192xf32>
    %190 = arith.addf %186, %189 : vector<8x192xf32>
    %191 = vector.extract_strided_slice %190 {offsets = [0, 0], sizes = [8, 16], strides = [1, 1]} : vector<8x192xf32> to vector<8x16xf32>
    %192 = vector.extract_strided_slice %190 {offsets = [0, 16], sizes = [8, 16], strides = [1, 1]} : vector<8x192xf32> to vector<8x16xf32>
    %193 = vector.extract_strided_slice %190 {offsets = [0, 32], sizes = [8, 16], strides = [1, 1]} : vector<8x192xf32> to vector<8x16xf32>
    %194 = vector.extract_strided_slice %190 {offsets = [0, 48], sizes = [8, 16], strides = [1, 1]} : vector<8x192xf32> to vector<8x16xf32>
    %195 = vector.shape_cast %191 : vector<8x16xf32> to vector<1x8x16xf32>
    %196 = vector.shape_cast %192 : vector<8x16xf32> to vector<1x8x16xf32>
    %197 = vector.shape_cast %193 : vector<8x16xf32> to vector<1x8x16xf32>
    %198 = vector.shape_cast %194 : vector<8x16xf32> to vector<1x8x16xf32>
    %199 = tpu.concatenate %195, %196, %197, %198 in 0 : vector<1x8x16xf32>, vector<1x8x16xf32>, vector<1x8x16xf32>, vector<1x8x16xf32> -> vector<4x8x16xf32>
    %200 = vector.extract_strided_slice %190 {offsets = [0, 64], sizes = [8, 16], strides = [1, 1]} : vector<8x192xf32> to vector<8x16xf32>
    %201 = vector.extract_strided_slice %190 {offsets = [0, 80], sizes = [8, 16], strides = [1, 1]} : vector<8x192xf32> to vector<8x16xf32>
    %202 = vector.extract_strided_slice %190 {offsets = [0, 96], sizes = [8, 16], strides = [1, 1]} : vector<8x192xf32> to vector<8x16xf32>
    %203 = vector.extract_strided_slice %190 {offsets = [0, 112], sizes = [8, 16], strides = [1, 1]} : vector<8x192xf32> to vector<8x16xf32>
    %204 = vector.shape_cast %200 : vector<8x16xf32> to vector<1x8x16xf32>
    %205 = vector.shape_cast %201 : vector<8x16xf32> to vector<1x8x16xf32>
    %206 = vector.shape_cast %202 : vector<8x16xf32> to vector<1x8x16xf32>
    %207 = vector.shape_cast %203 : vector<8x16xf32> to vector<1x8x16xf32>
    %208 = tpu.concatenate %204, %205, %206, %207 in 0 : vector<1x8x16xf32>, vector<1x8x16xf32>, vector<1x8x16xf32>, vector<1x8x16xf32> -> vector<4x8x16xf32>
    %209 = vector.extract_strided_slice %190 {offsets = [0, 128], sizes = [8, 16], strides = [1, 1]} : vector<8x192xf32> to vector<8x16xf32>
    %210 = vector.extract_strided_slice %190 {offsets = [0, 144], sizes = [8, 16], strides = [1, 1]} : vector<8x192xf32> to vector<8x16xf32>
    %211 = vector.extract_strided_slice %190 {offsets = [0, 160], sizes = [8, 16], strides = [1, 1]} : vector<8x192xf32> to vector<8x16xf32>
    %212 = vector.extract_strided_slice %190 {offsets = [0, 176], sizes = [8, 16], strides = [1, 1]} : vector<8x192xf32> to vector<8x16xf32>
    %213 = vector.shape_cast %209 : vector<8x16xf32> to vector<1x8x16xf32>
    %214 = vector.shape_cast %210 : vector<8x16xf32> to vector<1x8x16xf32>
    %215 = vector.shape_cast %211 : vector<8x16xf32> to vector<1x8x16xf32>
    %216 = vector.shape_cast %212 : vector<8x16xf32> to vector<1x8x16xf32>
    %217 = tpu.concatenate %213, %214, %215, %216 in 0 : vector<1x8x16xf32>, vector<1x8x16xf32>, vector<1x8x16xf32>, vector<1x8x16xf32> -> vector<4x8x16xf32>
    "tpu.trace_start"() <{level = 10 : i32, message = "hqd,hkd->hqk"}> : () -> ()
    %cst_82 = arith.constant dense<0.000000e+00> : vector<4x8x8xf32>
    %218 = tpu.matmul %199, %208, %cst_82 {dimension_numbers = #tpu.dot_dimension_numbers<[2], [2], [1], [1], [0, 0, 0, 1, 1, 1], [0], [0]>} : vector<4x8x16xf32>, vector<4x8x16xf32>, vector<4x8x8xf32> -> vector<4x8x8xf32>
    "tpu.trace_stop"() : () -> ()
    %219 = vector.shape_cast %5 : vector<8x8xf32> to vector<1x8x8xf32>
    %220 = vector.broadcast %219 : vector<1x8x8xf32> to vector<4x8x8xf32>
    %221 = arith.addf %218, %220 : vector<4x8x8xf32>
    %cst_83 = arith.constant dense<0xFF800000> : vector<4x8xf32>
    %222 = vector.multi_reduction <maximumf>, %221, %cst_83 [2] : vector<4x8x8xf32> to vector<4x8xf32>
    %223 = vector.shape_cast %222 : vector<4x8xf32> to vector<4x8x1xf32>
    %224 = vector.broadcast %223 : vector<4x8x1xf32> to vector<4x8x8xf32>
    %225 = arith.subf %221, %224 : vector<4x8x8xf32>
    %226 = math.exp %225 : vector<4x8x8xf32>
    %cst_84 = arith.constant dense<0.000000e+00> : vector<4x8xf32>
    %227 = vector.multi_reduction <add>, %226, %cst_84 [2] : vector<4x8x8xf32> to vector<4x8xf32>
    %228 = vector.shape_cast %227 : vector<4x8xf32> to vector<4x8x1xf32>
    %229 = tpu.reciprocal %228 {approx = true} : vector<4x8x1xf32> -> vector<4x8x1xf32>
    %230 = vector.broadcast %229 : vector<4x8x1xf32> to vector<4x8x8xf32>
    %231 = arith.mulf %226, %230 : vector<4x8x8xf32>
    "tpu.trace_start"() <{level = 10 : i32, message = "hqk,hkd->hqd"}> : () -> ()
    %cst_85 = arith.constant dense<0.000000e+00> : vector<4x8x16xf32>
    %232 = tpu.matmul %231, %217, %cst_85 {dimension_numbers = #tpu.dot_dimension_numbers<[2], [1], [1], [2], [0, 0, 0, 1, 1, 2], [0], [0]>} : vector<4x8x8xf32>, vector<4x8x16xf32>, vector<4x8x16xf32> -> vector<4x8x16xf32>
    "tpu.trace_stop"() : () -> ()
    %233 = vector.extract_strided_slice %232 {offsets = [0, 0, 0], sizes = [1, 8, 16], strides = [1, 1, 1]} : vector<4x8x16xf32> to vector<1x8x16xf32>
    %234 = vector.shape_cast %233 : vector<1x8x16xf32> to vector<8x16xf32>
    %235 = vector.extract_strided_slice %232 {offsets = [1, 0, 0], sizes = [1, 8, 16], strides = [1, 1, 1]} : vector<4x8x16xf32> to vector<1x8x16xf32>
    %236 = vector.shape_cast %235 : vector<1x8x16xf32> to vector<8x16xf32>
    %237 = vector.extract_strided_slice %232 {offsets = [2, 0, 0], sizes = [1, 8, 16], strides = [1, 1, 1]} : vector<4x8x16xf32> to vector<1x8x16xf32>
    %238 = vector.shape_cast %237 : vector<1x8x16xf32> to vector<8x16xf32>
    %239 = vector.extract_strided_slice %232 {offsets = [3, 0, 0], sizes = [1, 8, 16], strides = [1, 1, 1]} : vector<4x8x16xf32> to vector<1x8x16xf32>
    %240 = vector.shape_cast %239 : vector<1x8x16xf32> to vector<8x16xf32>
    %241 = tpu.concatenate %234, %236, %238, %240 in 1 : vector<8x16xf32>, vector<8x16xf32>, vector<8x16xf32>, vector<8x16xf32> -> vector<8x64xf32>
    %c1_86 = arith.constant 1 : index
    %c0_87 = arith.constant 0 : index
    %c0_88 = arith.constant 0 : index
    %242 = vector.load %arg8[%c1_86, %c0_87, %c0_88] : memref<2x64x64xf32, #tpu.memory_space<vmem>>, vector<1x64x64xf32>
    %243 = vector.shape_cast %242 : vector<1x64x64xf32> to vector<64x64xf32>
    %cst_89 = arith.constant dense<0.000000e+00> : vector<8x64xf32>
    %244 = tpu.matmul %241, %243, %cst_89 {dimension_numbers = #tpu.dot_dimension_numbers<[1], [0], [0], [1], [0, 0, 1, 1], [], []>} : vector<8x64xf32>, vector<64x64xf32>, vector<8x64xf32> -> vector<8x64xf32>
    %c1_90 = arith.constant 1 : index
    %c0_91 = arith.constant 0 : index
    %c0_92 = arith.constant 0 : index
    %245 = vector.load %arg9[%c1_90, %c0_91, %c0_92] : memref<2x1x64xf32, #tpu.memory_space<vmem>>, vector<1x1x64xf32>
    %246 = vector.shape_cast %245 : vector<1x1x64xf32> to vector<1x64xf32>
    %247 = vector.broadcast %246 : vector<1x64xf32> to vector<8x64xf32>
    %248 = arith.addf %244, %247 : vector<8x64xf32>
    %249 = arith.addf %155, %248 : vector<8x64xf32>
    %c1_93 = arith.constant 1 : index
    %c0_94 = arith.constant 0 : index
    %c0_95 = arith.constant 0 : index
    %250 = vector.load %arg10[%c1_93, %c0_94, %c0_95] : memref<2x1x64xf32, #tpu.memory_space<vmem>>, vector<1x1x64xf32>
    %251 = vector.shape_cast %250 : vector<1x1x64xf32> to vector<1x64xf32>
    %c1_96 = arith.constant 1 : index
    %c0_97 = arith.constant 0 : index
    %c0_98 = arith.constant 0 : index
    %252 = vector.load %arg11[%c1_96, %c0_97, %c0_98] : memref<2x1x64xf32, #tpu.memory_space<vmem>>, vector<1x1x64xf32>
    %253 = vector.shape_cast %252 : vector<1x1x64xf32> to vector<1x64xf32>
    %cst_99 = arith.constant dense<0.000000e+00> : vector<8xf32>
    %254 = vector.multi_reduction <add>, %249, %cst_99 [1] : vector<8x64xf32> to vector<8xf32>
    %255 = vector.shape_cast %254 : vector<8xf32> to vector<8x1xf32>
    %cst_100 = arith.constant 6.400000e+01 : f32
    %256 = vector.broadcast %cst_100 : f32 to vector<8x1xf32>
    %257 = arith.divf %255, %256 : vector<8x1xf32>
    %258 = vector.broadcast %257 : vector<8x1xf32> to vector<8x64xf32>
    %259 = arith.subf %249, %258 : vector<8x64xf32>
    %260 = vector.broadcast %257 : vector<8x1xf32> to vector<8x64xf32>
    %261 = arith.subf %249, %260 : vector<8x64xf32>
    %262 = arith.mulf %259, %261 : vector<8x64xf32>
    %cst_101 = arith.constant dense<0.000000e+00> : vector<8xf32>
    %263 = vector.multi_reduction <add>, %262, %cst_101 [1] : vector<8x64xf32> to vector<8xf32>
    %264 = vector.shape_cast %263 : vector<8xf32> to vector<8x1xf32>
    %cst_102 = arith.constant 6.400000e+01 : f32
    %265 = vector.broadcast %cst_102 : f32 to vector<8x1xf32>
    %266 = arith.divf %264, %265 : vector<8x1xf32>
    %267 = vector.broadcast %257 : vector<8x1xf32> to vector<8x64xf32>
    %268 = arith.subf %249, %267 : vector<8x64xf32>
    %cst_103 = arith.constant 9.99999997E-7 : f32
    %269 = vector.broadcast %cst_103 : f32 to vector<8x1xf32>
    %270 = arith.addf %266, %269 : vector<8x1xf32>
    %271 = math.rsqrt %270 : vector<8x1xf32>
    %272 = vector.broadcast %271 : vector<8x1xf32> to vector<8x64xf32>
    %273 = arith.mulf %268, %272 : vector<8x64xf32>
    %274 = vector.broadcast %251 : vector<1x64xf32> to vector<8x64xf32>
    %275 = arith.mulf %273, %274 : vector<8x64xf32>
    %276 = vector.broadcast %253 : vector<1x64xf32> to vector<8x64xf32>
    %277 = arith.addf %275, %276 : vector<8x64xf32>
    %c1_104 = arith.constant 1 : index
    %c0_105 = arith.constant 0 : index
    %c0_106 = arith.constant 0 : index
    %278 = vector.load %arg12[%c1_104, %c0_105, %c0_106] : memref<2x64x128xf32, #tpu.memory_space<vmem>>, vector<1x64x128xf32>
    %279 = vector.shape_cast %278 : vector<1x64x128xf32> to vector<64x128xf32>
    %cst_107 = arith.constant dense<0.000000e+00> : vector<8x128xf32>
    %280 = tpu.matmul %277, %279, %cst_107 {dimension_numbers = #tpu.dot_dimension_numbers<[1], [0], [0], [1], [0, 0, 1, 1], [], []>} : vector<8x64xf32>, vector<64x128xf32>, vector<8x128xf32> -> vector<8x128xf32>
    %c1_108 = arith.constant 1 : index
    %c0_109 = arith.constant 0 : index
    %c0_110 = arith.constant 0 : index
    %281 = vector.load %arg13[%c1_108, %c0_109, %c0_110] : memref<2x1x128xf32, #tpu.memory_space<vmem>>, vector<1x1x128xf32>
    %282 = vector.shape_cast %281 : vector<1x1x128xf32> to vector<1x128xf32>
    %283 = vector.broadcast %282 : vector<1x128xf32> to vector<8x128xf32>
    %284 = arith.addf %280, %283 : vector<8x128xf32>
    %cst_111 = arith.constant 5.000000e-01 : f32
    %285 = vector.broadcast %cst_111 : f32 to vector<8x128xf32>
    %286 = arith.mulf %285, %284 : vector<8x128xf32>
    %cst_112 = arith.constant 4.471500e-02 : f32
    %287 = vector.broadcast %cst_112 : f32 to vector<8x128xf32>
    %288 = arith.mulf %287, %284 : vector<8x128xf32>
    %289 = arith.mulf %288, %284 : vector<8x128xf32>
    %290 = arith.mulf %289, %284 : vector<8x128xf32>
    %291 = arith.addf %284, %290 : vector<8x128xf32>
    %cst_113 = arith.constant 0.797884583 : f32
    %292 = vector.broadcast %cst_113 : f32 to vector<8x128xf32>
    %293 = arith.mulf %292, %291 : vector<8x128xf32>
    %294 = math.tanh %293 : vector<8x128xf32>
    %cst_114 = arith.constant 1.000000e+00 : f32
    %295 = vector.broadcast %cst_114 : f32 to vector<8x128xf32>
    %296 = arith.addf %295, %294 : vector<8x128xf32>
    %297 = arith.mulf %286, %296 : vector<8x128xf32>
    %c1_115 = arith.constant 1 : index
    %c0_116 = arith.constant 0 : index
    %c0_117 = arith.constant 0 : index
    %298 = vector.load %arg14[%c1_115, %c0_116, %c0_117] : memref<2x128x64xf32, #tpu.memory_space<vmem>>, vector<1x128x64xf32>
    %299 = vector.shape_cast %298 : vector<1x128x64xf32> to vector<128x64xf32>
    %cst_118 = arith.constant dense<0.000000e+00> : vector<8x64xf32>
    %300 = tpu.matmul %297, %299, %cst_118 {dimension_numbers = #tpu.dot_dimension_numbers<[1], [0], [0], [1], [0, 0, 1, 1], [], []>} : vector<8x128xf32>, vector<128x64xf32>, vector<8x64xf32> -> vector<8x64xf32>
    %c1_119 = arith.constant 1 : index
    %c0_120 = arith.constant 0 : index
    %c0_121 = arith.constant 0 : index
    %301 = vector.load %arg15[%c1_119, %c0_120, %c0_121] : memref<2x1x64xf32, #tpu.memory_space<vmem>>, vector<1x1x64xf32>
    %302 = vector.shape_cast %301 : vector<1x1x64xf32> to vector<1x64xf32>
    %303 = vector.broadcast %302 : vector<1x64xf32> to vector<8x64xf32>
    %304 = arith.addf %300, %303 : vector<8x64xf32>
    %305 = arith.addf %249, %304 : vector<8x64xf32>
    %c0_122 = arith.constant 0 : index
    %c0_123 = arith.constant 0 : index
    %306 = vector.load %arg16[%c0_122, %c0_123] : memref<1x64xf32, #tpu.memory_space<vmem>>, vector<1x64xf32>
    %c0_124 = arith.constant 0 : index
    %c0_125 = arith.constant 0 : index
    %307 = vector.load %arg17[%c0_124, %c0_125] : memref<1x64xf32, #tpu.memory_space<vmem>>, vector<1x64xf32>
    %cst_126 = arith.constant dense<0.000000e+00> : vector<8xf32>
    %308 = vector.multi_reduction <add>, %305, %cst_126 [1] : vector<8x64xf32> to vector<8xf32>
    %309 = vector.shape_cast %308 : vector<8xf32> to vector<8x1xf32>
    %cst_127 = arith.constant 6.400000e+01 : f32
    %310 = vector.broadcast %cst_127 : f32 to vector<8x1xf32>
    %311 = arith.divf %309, %310 : vector<8x1xf32>
    %312 = vector.broadcast %311 : vector<8x1xf32> to vector<8x64xf32>
    %313 = arith.subf %305, %312 : vector<8x64xf32>
    %314 = vector.broadcast %311 : vector<8x1xf32> to vector<8x64xf32>
    %315 = arith.subf %305, %314 : vector<8x64xf32>
    %316 = arith.mulf %313, %315 : vector<8x64xf32>
    %cst_128 = arith.constant dense<0.000000e+00> : vector<8xf32>
    %317 = vector.multi_reduction <add>, %316, %cst_128 [1] : vector<8x64xf32> to vector<8xf32>
    %318 = vector.shape_cast %317 : vector<8xf32> to vector<8x1xf32>
    %cst_129 = arith.constant 6.400000e+01 : f32
    %319 = vector.broadcast %cst_129 : f32 to vector<8x1xf32>
    %320 = arith.divf %318, %319 : vector<8x1xf32>
    %321 = vector.broadcast %311 : vector<8x1xf32> to vector<8x64xf32>
    %322 = arith.subf %305, %321 : vector<8x64xf32>
    %cst_130 = arith.constant 9.99999997E-7 : f32
    %323 = vector.broadcast %cst_130 : f32 to vector<8x1xf32>
    %324 = arith.addf %320, %323 : vector<8x1xf32>
    %325 = math.rsqrt %324 : vector<8x1xf32>
    %326 = vector.broadcast %325 : vector<8x1xf32> to vector<8x64xf32>
    %327 = arith.mulf %322, %326 : vector<8x64xf32>
    %328 = vector.broadcast %306 : vector<1x64xf32> to vector<8x64xf32>
    %329 = arith.mulf %327, %328 : vector<8x64xf32>
    %330 = vector.broadcast %307 : vector<1x64xf32> to vector<8x64xf32>
    %331 = arith.addf %329, %330 : vector<8x64xf32>
    %c0_131 = arith.constant 0 : index
    %c0_132 = arith.constant 0 : index
    %332 = vector.load %arg18[%c0_131, %c0_132] : memref<8x64xf32, #tpu.memory_space<vmem>>, vector<8x64xf32>
    tpu.vector_store %arg18[%c0_131, %c0_132], %331 {strides = array<i32>} : memref<8x64xf32, #tpu.memory_space<vmem>>, vector<8x64xf32>,
    return
  }
}

</mosaic_0001>

<llo_original>
// kernel: siglip_vision_forward.1
$region0: #{siglip_vision_forward.1}
  #allocation0 [shape = 'u32[]', space=smem, size = 0x4, offset = 0x4, fixed_abs, tag = 'smem constant byte address 0x4 - core index']
  #allocation1 [shape = 'u32[144,128]{1,0:T(1,128)}', space=vmem, size = 0x12000, scoped, tag = 'internal scratch']
  %s0 = inlined_call_operand.vmem [shape: f32[8,192], index: 0, kind: input, shape index: {}]
  %s1 = inlined_call_operand.vmem [shape: f32[192,64], index: 1, kind: input, shape index: {}]
  %s2 = inlined_call_operand.vmem [shape: f32[8,64], index: 2, kind: input, shape index: {}]
  %s3 = inlined_call_operand.vmem [shape: f32[8,8], index: 3, kind: input, shape index: {}]
  %s4 = inlined_call_operand.vmem [shape: f32[2,1,64], index: 4, kind: input, shape index: {}]
  %s5 = inlined_call_operand.vmem [shape: f32[2,1,64], index: 5, kind: input, shape index: {}]
  %s6 = inlined_call_operand.vmem [shape: f32[2,64,192], index: 6, kind: input, shape index: {}]
  %s7 = inlined_call_operand.vmem [shape: f32[2,1,192], index: 7, kind: input, shape index: {}]
  %s8 = inlined_call_operand.vmem [shape: f32[2,64,64], index: 8, kind: input, shape index: {}]
  %s9 = inlined_call_operand.vmem [shape: f32[2,1,64], index: 9, kind: input, shape index: {}]
  %s10 = inlined_call_operand.vmem [shape: f32[2,1,64], index: 10, kind: input, shape index: {}]
  %s11 = inlined_call_operand.vmem [shape: f32[2,1,64], index: 11, kind: input, shape index: {}]
  %s12 = inlined_call_operand.vmem [shape: f32[2,64,128], index: 12, kind: input, shape index: {}]
  %s13 = inlined_call_operand.vmem [shape: f32[2,1,128], index: 13, kind: input, shape index: {}]
  %s14 = inlined_call_operand.vmem [shape: f32[2,128,64], index: 14, kind: input, shape index: {}]
  %s15 = inlined_call_operand.vmem [shape: f32[2,1,64], index: 15, kind: input, shape index: {}]
  %s16 = inlined_call_operand.vmem [shape: f32[1,64], index: 16, kind: input, shape index: {}]
  %s17 = inlined_call_operand.vmem [shape: f32[1,64], index: 17, kind: input, shape index: {}]
  %s18 = inlined_call_operand.hbm [shape: f32[8,64], index: 18, kind: output, shape index: {}]
  %s19 = sld [smem:[#allocation0]]
  $region82: #{siglip_vision_forward.1} parent=0
    _
  %s21 = ssub.s32 1, %s19
  %s22 = scalar_select 0, %s21, %s19
  $region1: #{siglip_vision_forward.1} parent=0
    #allocation2 [shape = 'u8[4096]{0}', space=vmem, size = 0x1000, scoped, tag = 'output window, operand 0, single buffered']
    #allocation3 [shape = 's32[1]{0}', space=sflag, size = 0x4, scoped, tag = 'scoped memory for siglip_vision_forward.1']
    %23 = vsyncpa [#allocation3], 0
    // Predicated region
    $region2: #{siglip_vision_forward.1} parent=1 // pred_check
      _
    $region3: #{siglip_vision_forward.1} parent=1 // pred_check_branch
      %25 = sbr.rel (0) target = $region5
    $region4: #{siglip_vision_forward.1} parent=1 // pred_region
      _
    $region5: #{siglip_vision_forward.1} parent=1 // pred_fallthru
      _
    // Predicated region
    $region6: #{siglip_vision_forward.1} parent=1 // pred_check
      _
    $region7: #{siglip_vision_forward.1} parent=1 // pred_check_branch
      %27 = sbr.rel (0) target = $region9
    $region8: #{siglip_vision_forward.1} parent=1 // pred_region
      _
    $region9: #{siglip_vision_forward.1} parent=1 // pred_fallthru
      _
    // Predicated region
    $region10: #{siglip_vision_forward.1} parent=1 // pred_check
      _
    $region11: #{siglip_vision_forward.1} parent=1 // pred_check_branch
      %29 = sbr.rel (0) target = $region13
    $region12: #{siglip_vision_forward.1} parent=1 // pred_region
      _
    $region13: #{siglip_vision_forward.1} parent=1 // pred_fallthru
      _
    // Predicated region
    $region14: #{siglip_vision_forward.1} parent=1 // pred_check
      _
    $region15: #{siglip_vision_forward.1} parent=1 // pred_check_branch
      %31 = sbr.rel (0) target = $region17
    $region16: #{siglip_vision_forward.1} parent=1 // pred_region
      _
    $region17: #{siglip_vision_forward.1} parent=1 // pred_fallthru
      _
    // Predicated region
    $region18: #{siglip_vision_forward.1} parent=1 // pred_check
      _
    $region19: #{siglip_vision_forward.1} parent=1 // pred_check_branch
      %33 = sbr.rel (0) target = $region21
    $region20: #{siglip_vision_forward.1} parent=1 // pred_region
      _
    $region21: #{siglip_vision_forward.1} parent=1 // pred_fallthru
      _
    // Predicated region
    $region22: #{siglip_vision_forward.1} parent=1 // pred_check
      _
    $region23: #{siglip_vision_forward.1} parent=1 // pred_check_branch
      %35 = sbr.rel (0) target = $region25
    $region24: #{siglip_vision_forward.1} parent=1 // pred_region
      _
    $region25: #{siglip_vision_forward.1} parent=1 // pred_fallthru
      _
    // Predicated region
    $region26: #{siglip_vision_forward.1} parent=1 // pred_check
      _
    $region27: #{siglip_vision_forward.1} parent=1 // pred_check_branch
      %37 = sbr.rel (0) target = $region29
    $region28: #{siglip_vision_forward.1} parent=1 // pred_region
      _
    $region29: #{siglip_vision_forward.1} parent=1 // pred_fallthru
      _
    // Predicated region
    $region30: #{siglip_vision_forward.1} parent=1 // pred_check
      _
    $region31: #{siglip_vision_forward.1} parent=1 // pred_check_branch
      %39 = sbr.rel (0) target = $region33
    $region32: #{siglip_vision_forward.1} parent=1 // pred_region
      _
    $region33: #{siglip_vision_forward.1} parent=1 // pred_fallthru
      _
    // Predicated region
    $region34: #{siglip_vision_forward.1} parent=1 // pred_check
      _
    $region35: #{siglip_vision_forward.1} parent=1 // pred_check_branch
      %41 = sbr.rel (0) target = $region37
    $region36: #{siglip_vision_forward.1} parent=1 // pred_region
      _
    $region37: #{siglip_vision_forward.1} parent=1 // pred_fallthru
      _
    // Predicated region
    $region38: #{siglip_vision_forward.1} parent=1 // pred_check
      _
    $region39: #{siglip_vision_forward.1} parent=1 // pred_check_branch
      %43 = sbr.rel (0) target = $region41
    $region40: #{siglip_vision_forward.1} parent=1 // pred_region
      _
    $region41: #{siglip_vision_forward.1} parent=1 // pred_fallthru
      _
    // Predicated region
    $region42: #{siglip_vision_forward.1} parent=1 // pred_check
      _
    $region43: #{siglip_vision_forward.1} parent=1 // pred_check_branch
      %45 = sbr.rel (0) target = $region45
    $region44: #{siglip_vision_forward.1} parent=1 // pred_region
      _
    $region45: #{siglip_vision_forward.1} parent=1 // pred_fallthru
      _
    // Predicated region
    $region46: #{siglip_vision_forward.1} parent=1 // pred_check
      _
    $region47: #{siglip_vision_forward.1} parent=1 // pred_check_branch
      %47 = sbr.rel (0) target = $region49
    $region48: #{siglip_vision_forward.1} parent=1 // pred_region
      _
    $region49: #{siglip_vision_forward.1} parent=1 // pred_fallthru
      _
    // Predicated region
    $region50: #{siglip_vision_forward.1} parent=1 // pred_check
      _
    $region51: #{siglip_vision_forward.1} parent=1 // pred_check_branch
      %49 = sbr.rel (0) target = $region53
    $region52: #{siglip_vision_forward.1} parent=1 // pred_region
      _
    $region53: #{siglip_vision_forward.1} parent=1 // pred_fallthru
      _
    // Predicated region
    $region54: #{siglip_vision_forward.1} parent=1 // pred_check
      _
    $region55: #{siglip_vision_forward.1} parent=1 // pred_check_branch
      %51 = sbr.rel (0) target = $region57
    $region56: #{siglip_vision_forward.1} parent=1 // pred_region
      _
    $region57: #{siglip_vision_forward.1} parent=1 // pred_fallthru
      _
    // Predicated region
    $region58: #{siglip_vision_forward.1} parent=1 // pred_check
      _
    $region59: #{siglip_vision_forward.1} parent=1 // pred_check_branch
      %53 = sbr.rel (0) target = $region61
    $region60: #{siglip_vision_forward.1} parent=1 // pred_region
      _
    $region61: #{siglip_vision_forward.1} parent=1 // pred_fallthru
      _
    // Predicated region
    $region62: #{siglip_vision_forward.1} parent=1 // pred_check
      _
    $region63: #{siglip_vision_forward.1} parent=1 // pred_check_branch
      %55 = sbr.rel (0) target = $region65
    $region64: #{siglip_vision_forward.1} parent=1 // pred_region
      _
    $region65: #{siglip_vision_forward.1} parent=1 // pred_fallthru
      _
    // Predicated region
    $region66: #{siglip_vision_forward.1} parent=1 // pred_check
      _
    $region67: #{siglip_vision_forward.1} parent=1 // pred_check_branch
      %57 = sbr.rel (0) target = $region69
    $region68: #{siglip_vision_forward.1} parent=1 // pred_region
      _
    $region69: #{siglip_vision_forward.1} parent=1 // pred_fallthru
      _
    // Predicated region
    $region70: #{siglip_vision_forward.1} parent=1 // pred_check
      _
    $region71: #{siglip_vision_forward.1} parent=1 // pred_check_branch
      %59 = sbr.rel (0) target = $region73
    $region72: #{siglip_vision_forward.1} parent=1 // pred_region
      _
    $region73: #{siglip_vision_forward.1} parent=1 // pred_fallthru
      _
    %v60 = vld [vmem:[%s0] sm:$0xff]
    %v61 = vld [vmem:[%s0 + $0x8] sm:$0xff]
    %v62 = vld [vmem:[%s1] sm:$0xff]
    %v63 = vld [vmem:[%s1 + $0x8] sm:$0xff]
    %v64 = vld [vmem:[%s1 + $0x10] sm:$0xff]
    %v65 = vld [vmem:[%s1 + $0x18] sm:$0xff]
    %v66 = vld [vmem:[%s1 + $0x20] sm:$0xff]
    %v67 = vld [vmem:[%s1 + $0x28] sm:$0xff]
    %v68 = vld [vmem:[%s1 + $0x30] sm:$0xff]
    %v69 = vld [vmem:[%s1 + $0x38] sm:$0xff]
    %v70 = vld [vmem:[%s1 + $0x40] sm:$0xff]
    %v71 = vld [vmem:[%s1 + $0x48] sm:$0xff]
    %v72 = vld [vmem:[%s1 + $0x50] sm:$0xff]
    %v73 = vld [vmem:[%s1 + $0x58] sm:$0xff]
    %v74 = vld [vmem:[%s1 + $0x60] sm:$0xff]
    %v75 = vld [vmem:[%s1 + $0x68] sm:$0xff]
    %v76 = vld [vmem:[%s1 + $0x70] sm:$0xff]
    %v77 = vld [vmem:[%s1 + $0x78] sm:$0xff]
    %v78 = vld [vmem:[%s1 + $0x80] sm:$0xff]
    %v79 = vld [vmem:[%s1 + $0x88] sm:$0xff]
    %v80 = vld [vmem:[%s1 + $0x90] sm:$0xff]
    %v81 = vld [vmem:[%s1 + $0x98] sm:$0xff]
    %v82 = vld [vmem:[%s1 + $0xa0] sm:$0xff]
    %v83 = vld [vmem:[%s1 + $0xa8] sm:$0xff]
    %v84 = vld [vmem:[%s1 + $0xb0] sm:$0xff]
    %v85 = vld [vmem:[%s1 + $0xb8] sm:$0xff]
    %v86 = vld [vmem:[%s2] sm:$0xff]
    %vm87 = vcmask 523264
    %v89 = vsel %vm87, %v61, 0
    %91 = vmatprep.subr.mxu0 0.0
    %92 = vmatpush1.msra.mxu0 %v62
    %93 = vmatprep.subr.mxu0 0.0
    %94 = vmatpush1.msra.mxu0 %v63
    %95 = vmatprep.subr.mxu0 0.0
    %96 = vmatpush1.msra.mxu0 %v64
    %97 = vmatprep.subr.mxu0 0.0
    %98 = vmatpush1.msra.mxu0 %v65
    %99 = vmatprep.subr.mxu0 0.0
    %100 = vmatpush1.msra.mxu0 %v66
    %101 = vmatprep.subr.mxu0 0.0
    %102 = vmatpush1.msra.mxu0 %v67
    %103 = vmatprep.subr.mxu0 0.0
    %104 = vmatpush1.msra.mxu0 %v68
    %105 = vmatprep.subr.mxu0 0.0
    %106 = vmatpush1.msra.mxu0 %v69
    %107 = vmatprep.subr.mxu0 0.0
    %108 = vmatpush1.msra.mxu0 %v70
    %109 = vmatprep.subr.mxu0 0.0
    %110 = vmatpush1.msra.mxu0 %v71
    %111 = vmatprep.subr.mxu0 0.0
    %112 = vmatpush1.msra.mxu0 %v72
    %113 = vmatprep.subr.mxu0 0.0
    %114 = vmatpush1.msra.mxu0 %v73
    %115 = vmatprep.subr.mxu0 0.0
    %116 = vmatpush1.msra.mxu0 %v74
    %117 = vmatprep.subr.mxu0 0.0
    %118 = vmatpush1.msra.mxu0 %v75
    %119 = vmatprep.subr.mxu0 0.0
    %120 = vmatpush1.msra.mxu0 %v76
    %121 = vmatprep.subr.mxu0 0.0
    %122 = vmatpush1.msra.mxu0 %v77
    %123 = vmatprep.subr.mxu0 0.0
    %124 = vmatpush1.msra.mxu0 %v78
    %125 = vmatprep.subr.mxu0 0.0
    %126 = vmatpush1.msra.mxu0 %v79
    %127 = vmatprep.subr.mxu0 0.0
    %128 = vmatpush1.msra.mxu0 %v80
    %129 = vmatprep.subr.mxu0 0.0
    %130 = vmatpush1.msra.mxu0 %v81
    %131 = vmatprep.subr.mxu0 0.0
    %132 = vmatpush1.msra.mxu0 %v82
    %133 = vmatprep.subr.mxu0 0.0
    %134 = vmatpush1.msra.mxu0 %v83
    %135 = vmatprep.subr.mxu0 0.0
    %136 = vmatpush1.msra.mxu0 %v84
    %137 = vmatprep.subr.mxu0 0.0
    %138 = vmatpush1.msra.mxu0 %v85
    %139 = vmatprep.subr.mxu0 0.0
    %140 = vmatpush1.msra.mxu0 0.0
    %141 = vmatprep.subr.mxu0 0.0
    %142 = vmatpush1.msra.mxu0 0.0
    %143 = vmatprep.subr.mxu0 0.0
    %144 = vmatpush1.msra.mxu0 0.0
    %145 = vmatprep.subr.mxu0 0.0
    %146 = vmatpush1.msra.mxu0 0.0
    %147 = vmatprep.subr.mxu0 0.0
    %148 = vmatpush1.msra.mxu0 0.0
    %149 = vmatprep.subr.mxu0 0.0
    %150 = vmatpush1.msra.mxu0 0.0
    %151 = vmatprep.subr.mxu0 0.0
    %152 = vmatpush1.msra.mxu0 0.0
    %153 = vmatprep.subr.mxu0 0.0
    %154 = vmatpush1.msra.mxu0 0.0
    %155 = vmatprep.mubr.f32.mxu0 %v89
    %156 = vmatmul.mubr.f32.gmra.mrb[0].mxu0 %v60
    %v157 = vpop.f32.mrb[0].mxu0
    %v158 = vadd.f32 %v86, %v157
    %v159 = vpop.f32.mrb[0].mxu0
    %160 = vdwg.mxu0
    %v161 = vld [vmem:[%s3] sm:$0xff]
    %v162 = vld [vmem:[%s4] sm:$0x1]
    %v163 = vld [vmem:[%s5] sm:$0x1]
    %v164 = vsel %vm87, %v158, 0.0
    %165 = vadd.xlane.f32.xlu0 %v164
    %v166 = vpop.xlane.xlu0 %165
    %v167 = vrcp.pop 64.0
    %v168 = vmul.f32 %v166, %v167
    %v169 = vsub.f32 %v158, %v168
    %v170 = vmul.f32 %v169, %v169
    %v171 = vsel %vm87, %v170, 0.0
    %172 = vadd.xlane.f32.xlu0 %v171
    %v173 = vpop.xlane.xlu0 %172
    %v174 = vmul.f32 %v173, %v167
    %v175 = vadd.f32 %v174, 1e-06
    %v176 = vrsqrt.pop %v175
    %v177 = vmul.f32 %v169, %v176
    %v179 = vlaneseq
    %v180 = vshrl.u32 %v179, 7
    %v181 = vsub.s32 0, %v180
    %v182 = vrot.slane %v162, %v181
    %v184 = vmul.f32 %v177, %v182
    %v186 = vlaneseq
    %v187 = vshrl.u32 %v186, 7
    %v188 = vsub.s32 0, %v187
    %v189 = vrot.slane %v163, %v188
    %v191 = vadd.f32 %v184, %v189
    %v192 = vld [vmem:[%s6] sm:$0xff]
    %v193 = vld [vmem:[%s6 + $0x8] sm:$0xff]
    %v194 = vld [vmem:[%s6 + $0x10] sm:$0xff]
    %v195 = vld [vmem:[%s6 + $0x18] sm:$0xff]
    %v196 = vld [vmem:[%s6 + $0x20] sm:$0xff]
    %v197 = vld [vmem:[%s6 + $0x28] sm:$0xff]
    %v198 = vld [vmem:[%s6 + $0x30] sm:$0xff]
    %v199 = vld [vmem:[%s6 + $0x38] sm:$0xff]
    %v200 = vld [vmem:[%s6 + $0x40] sm:$0xff]
    %v201 = vld [vmem:[%s6 + $0x48] sm:$0xff]
    %v202 = vld [vmem:[%s6 + $0x50] sm:$0xff]
    %v203 = vld [vmem:[%s6 + $0x58] sm:$0xff]
    %v204 = vld [vmem:[%s6 + $0x60] sm:$0xff]
    %v205 = vld [vmem:[%s6 + $0x68] sm:$0xff]
    %v206 = vld [vmem:[%s6 + $0x70] sm:$0xff]
    %v207 = vld [vmem:[%s6 + $0x78] sm:$0xff]
    %v208 = vld [vmem:[%s7] sm:$0x3]
    %v210 = vlaneseq
    %v211 = vshrl.u32 %v210, 7
    %v212 = vsub.s32 0, %v211
    %v213 = vrot.slane %v208, %v212
    %v214 = vlaneseq
    %v215 = vshrl.u32 %v214, 7
    %v216 = vsub.s32 1, %v215
    %v217 = vrot.slane %v208, %v216
    %v221 = vsel %vm87, %v191, 0
    %223 = vmatprep.subr.mxu0 %v193
    %224 = vmatpush1.msra.mxu0 %v192
    %225 = vmatprep.subr.mxu0 %v195
    %226 = vmatpush1.msra.mxu0 %v194
    %227 = vmatprep.subr.mxu0 %v197
    %228 = vmatpush1.msra.mxu0 %v196
    %229 = vmatprep.subr.mxu0 %v199
    %230 = vmatpush1.msra.mxu0 %v198
    %231 = vmatprep.subr.mxu0 %v201
    %232 = vmatpush1.msra.mxu0 %v200
    %233 = vmatprep.subr.mxu0 %v203
    %234 = vmatpush1.msra.mxu0 %v202
    %235 = vmatprep.subr.mxu0 %v205
    %236 = vmatpush1.msra.mxu0 %v204
    %237 = vmatprep.subr.mxu0 %v207
    %238 = vmatpush1.msra.mxu0 %v206
    %239 = vmatprep.subr.mxu0 0.0
    %240 = vmatpush1.msra.mxu0 0.0
    %241 = vmatprep.subr.mxu0 0.0
    %242 = vmatpush1.msra.mxu0 0.0
    %243 = vmatprep.subr.mxu0 0.0
    %244 = vmatpush1.msra.mxu0 0.0
    %245 = vmatprep.subr.mxu0 0.0
    %246 = vmatpush1.msra.mxu0 0.0
    %247 = vmatprep.subr.mxu0 0.0
    %248 = vmatpush1.msra.mxu0 0.0
    %249 = vmatprep.subr.mxu0 0.0
    %250 = vmatpush1.msra.mxu0 0.0
    %251 = vmatprep.subr.mxu0 0.0
    %252 = vmatpush1.msra.mxu0 0.0
    %253 = vmatprep.subr.mxu0 0.0
    %254 = vmatpush1.msra.mxu0 0.0
    %255 = vmatprep.subr.mxu0 0.0
    %256 = vmatpush1.msra.mxu0 0.0
    %257 = vmatprep.subr.mxu0 0.0
    %258 = vmatpush1.msra.mxu0 0.0
    %259 = vmatprep.subr.mxu0 0.0
    %260 = vmatpush1.msra.mxu0 0.0
    %261 = vmatprep.subr.mxu0 0.0
    %262 = vmatpush1.msra.mxu0 0.0
    %263 = vmatprep.subr.mxu0 0.0
    %264 = vmatpush1.msra.mxu0 0.0
    %265 = vmatprep.subr.mxu0 0.0
    %266 = vmatpush1.msra.mxu0 0.0
    %267 = vmatprep.subr.mxu0 0.0
    %268 = vmatpush1.msra.mxu0 0.0
    %269 = vmatprep.subr.mxu0 0.0
    %270 = vmatpush1.msra.mxu0 0.0
    %271 = vmatprep.subr.mxu0 0.0
    %272 = vmatpush1.msra.mxu0 0.0
    %273 = vmatprep.subr.mxu0 0.0
    %274 = vmatpush1.msra.mxu0 0.0
    %275 = vmatprep.subr.mxu0 0.0
    %276 = vmatpush1.msra.mxu0 0.0
    %277 = vmatprep.subr.mxu0 0.0
    %278 = vmatpush1.msra.mxu0 0.0
    %279 = vmatprep.subr.mxu0 0.0
    %280 = vmatpush1.msra.mxu0 0.0
    %281 = vmatprep.subr.mxu0 0.0
    %282 = vmatpush1.msra.mxu0 0.0
    %283 = vmatprep.subr.mxu0 0.0
    %284 = vmatpush1.msra.mxu0 0.0
    %285 = vmatprep.subr.mxu0 0.0
    %286 = vmatpush1.msra.mxu0 0.0
    %287 = vmatprep.mubr.f32.mxu0 0.0
    %288 = vmatmul.mubr.f32.gmra.mrb[0].mxu0 %v221
    %v289 = vpop.f32.mrb[0].mxu0
    %v290 = vadd.f32 %v213, %v289
    %v291 = vpop.f32.mrb[0].mxu0
    %v292 = vadd.f32 %v217, %v291
    %293 = vdwg.mxu0
    %295 = vrot.lane.b32.xlu0 %v290, 112
    %v296 = vpop.permute.xlu0 %295
    %297 = vrot.lane.b32.xlu0 %v290, 96
    %v298 = vpop.permute.xlu0 %297
    %299 = vrot.lane.b32.xlu0 %v290, 80
    %v300 = vpop.permute.xlu0 %299
    %302 = vrot.lane.b32.xlu0 %v292, 112
    %v303 = vpop.permute.xlu0 %302
    %305 = vrot.lane.b32.xlu0 %v292, 96
    %v306 = vpop.permute.xlu0 %305
    %308 = vrot.lane.b32.xlu0 %v292, 80
    %v309 = vpop.permute.xlu0 %308
    %311 = vrot.lane.b32.xlu0 %v290, 64
    %v312 = vpop.permute.xlu0 %311
    %vm313 = vcmask 130048
    %v314 = vsel %vm313, %v290, 0
    %v316 = vsel %vm313, %v312, 0
    %318 = vmatprep.subr.mxu0 0.0
    %319 = vmatpush1.xpose.msra.mxu0 %v316
    %320 = vmatprep.subr.mxu0 0.0
    %321 = vmatpush1.xpose.msra.mxu0 0.0
    %322 = vmatprep.subr.mxu0 0.0
    %323 = vmatpush1.xpose.msra.mxu0 0.0
    %324 = vmatprep.subr.mxu0 0.0
    %325 = vmatpush1.xpose.msra.mxu0 0.0
    %326 = vmatprep.subr.mxu0 0.0
    %327 = vmatpush1.xpose.msra.mxu0 0.0
    %328 = vmatprep.subr.mxu0 0.0
    %329 = vmatpush1.xpose.msra.mxu0 0.0
    %330 = vmatprep.subr.mxu0 0.0
    %331 = vmatpush1.xpose.msra.mxu0 0.0
    %332 = vmatprep.subr.mxu0 0.0
    %333 = vmatpush1.xpose.msra.mxu0 0.0
    %334 = vmatprep.subr.mxu0 0.0
    %335 = vmatpush1.xpose.msra.mxu0 0.0
    %336 = vmatprep.subr.mxu0 0.0
    %337 = vmatpush1.xpose.msra.mxu0 0.0
    %338 = vmatprep.subr.mxu0 0.0
    %339 = vmatpush1.xpose.msra.mxu0 0.0
    %340 = vmatprep.subr.mxu0 0.0
    %341 = vmatpush1.xpose.msra.mxu0 0.0
    %342 = vmatprep.subr.mxu0 0.0
    %343 = vmatpush1.xpose.msra.mxu0 0.0
    %344 = vmatprep.subr.mxu0 0.0
    %345 = vmatpush1.xpose.msra.mxu0 0.0
    %346 = vmatprep.subr.mxu0 0.0
    %347 = vmatpush1.xpose.msra.mxu0 0.0
    %348 = vmatprep.subr.mxu0 0.0
    %349 = vmatpush1.xpose.msra.mxu0 0.0
    %350 = vmatprep.subr.mxu0 0.0
    %351 = vmatpush1.xpose.msra.mxu0 0.0
    %352 = vmatprep.subr.mxu0 0.0
    %353 = vmatpush1.xpose.msra.mxu0 0.0
    %354 = vmatprep.subr.mxu0 0.0
    %355 = vmatpush1.xpose.msra.mxu0 0.0
    %356 = vmatprep.subr.mxu0 0.0
    %357 = vmatpush1.xpose.msra.mxu0 0.0
    %358 = vmatprep.subr.mxu0 0.0
    %359 = vmatpush1.xpose.msra.mxu0 0.0
    %360 = vmatprep.subr.mxu0 0.0
    %361 = vmatpush1.xpose.msra.mxu0 0.0
    %362 = vmatprep.subr.mxu0 0.0
    %363 = vmatpush1.xpose.msra.mxu0 0.0
    %364 = vmatprep.subr.mxu0 0.0
    %365 = vmatpush1.xpose.msra.mxu0 0.0
    %366 = vmatprep.subr.mxu0 0.0
    %367 = vmatpush1.xpose.msra.mxu0 0.0
    %368 = vmatprep.subr.mxu0 0.0
    %369 = vmatpush1.xpose.msra.mxu0 0.0
    %370 = vmatprep.subr.mxu0 0.0
    %371 = vmatpush1.xpose.msra.mxu0 0.0
    %372 = vmatprep.subr.mxu0 0.0
    %373 = vmatpush1.xpose.msra.mxu0 0.0
    %374 = vmatprep.subr.mxu0 0.0
    %375 = vmatpush1.xpose.msra.mxu0 0.0
    %376 = vmatprep.subr.mxu0 0.0
    %377 = vmatpush1.xpose.msra.mxu0 0.0
    %378 = vmatprep.subr.mxu0 0.0
    %379 = vmatpush1.xpose.msra.mxu0 0.0
    %380 = vmatprep.subr.mxu0 0.0
    %381 = vmatpush1.xpose.msra.mxu0 0.0
    %382 = vmatprep.mubr.f32.mxu0 0.0
    %383 = vmatmul.mubr.f32.gmra.mrb[0].mxu0 %v314
    %v384 = vpop.f32.mrb[0].mxu0
    %v385 = vadd.f32 %v161, %v384
    %v386 = vpop.f32.mrb[0].mxu0
    %387 = vdwg.mxu0
    %388 = vrot.lane.b32.xlu0 %v296, 64
    %v389 = vpop.permute.xlu0 %388
    %v390 = vsel %vm313, %v296, 0
    %v392 = vsel %vm313, %v389, 0
    %394 = vmatprep.subr.mxu0 0.0
    %395 = vmatpush1.xpose.msra.mxu0 %v392
    %396 = vmatprep.subr.mxu0 0.0
    %397 = vmatpush1.xpose.msra.mxu0 0.0
    %398 = vmatprep.subr.mxu0 0.0
    %399 = vmatpush1.xpose.msra.mxu0 0.0
    %400 = vmatprep.subr.mxu0 0.0
    %401 = vmatpush1.xpose.msra.mxu0 0.0
    %402 = vmatprep.subr.mxu0 0.0
    %403 = vmatpush1.xpose.msra.mxu0 0.0
    %404 = vmatprep.subr.mxu0 0.0
    %405 = vmatpush1.xpose.msra.mxu0 0.0
    %406 = vmatprep.subr.mxu0 0.0
    %407 = vmatpush1.xpose.msra.mxu0 0.0
    %408 = vmatprep.subr.mxu0 0.0
    %409 = vmatpush1.xpose.msra.mxu0 0.0
    %410 = vmatprep.subr.mxu0 0.0
    %411 = vmatpush1.xpose.msra.mxu0 0.0
    %412 = vmatprep.subr.mxu0 0.0
    %413 = vmatpush1.xpose.msra.mxu0 0.0
    %414 = vmatprep.subr.mxu0 0.0
    %415 = vmatpush1.xpose.msra.mxu0 0.0
    %416 = vmatprep.subr.mxu0 0.0
    %417 = vmatpush1.xpose.msra.mxu0 0.0
    %418 = vmatprep.subr.mxu0 0.0
    %419 = vmatpush1.xpose.msra.mxu0 0.0
    %420 = vmatprep.subr.mxu0 0.0
    %421 = vmatpush1.xpose.msra.mxu0 0.0
    %422 = vmatprep.subr.mxu0 0.0
    %423 = vmatpush1.xpose.msra.mxu0 0.0
    %424 = vmatprep.subr.mxu0 0.0
    %425 = vmatpush1.xpose.msra.mxu0 0.0
    %426 = vmatprep.subr.mxu0 0.0
    %427 = vmatpush1.xpose.msra.mxu0 0.0
    %428 = vmatprep.subr.mxu0 0.0
    %429 = vmatpush1.xpose.msra.mxu0 0.0
    %430 = vmatprep.subr.mxu0 0.0
    %431 = vmatpush1.xpose.msra.mxu0 0.0
    %432 = vmatprep.subr.mxu0 0.0
    %433 = vmatpush1.xpose.msra.mxu0 0.0
    %434 = vmatprep.subr.mxu0 0.0
    %435 = vmatpush1.xpose.msra.mxu0 0.0
    %436 = vmatprep.subr.mxu0 0.0
    %437 = vmatpush1.xpose.msra.mxu0 0.0
    %438 = vmatprep.subr.mxu0 0.0
    %439 = vmatpush1.xpose.msra.mxu0 0.0
    %440 = vmatprep.subr.mxu0 0.0
    %441 = vmatpush1.xpose.msra.mxu0 0.0
    %442 = vmatprep.subr.mxu0 0.0
    %443 = vmatpush1.xpose.msra.mxu0 0.0
    %444 = vmatprep.subr.mxu0 0.0
    %445 = vmatpush1.xpose.msra.mxu0 0.0
    %446 = vmatprep.subr.mxu0 0.0
    %447 = vmatpush1.xpose.msra.mxu0 0.0
    %448 = vmatprep.subr.mxu0 0.0
    %449 = vmatpush1.xpose.msra.mxu0 0.0
    %450 = vmatprep.subr.mxu0 0.0
    %451 = vmatpush1.xpose.msra.mxu0 0.0
    %452 = vmatprep.subr.mxu0 0.0
    %453 = vmatpush1.xpose.msra.mxu0 0.0
    %454 = vmatprep.subr.mxu0 0.0
    %455 = vmatpush1.xpose.msra.mxu0 0.0
    %456 = vmatprep.subr.mxu0 0.0
    %457 = vmatpush1.xpose.msra.mxu0 0.0
    %458 = vmatprep.mubr.f32.mxu0 0.0
    %459 = vmatmul.mubr.f32.gmra.mrb[0].mxu0 %v390
    %v460 = vpop.f32.mrb[0].mxu0
    %v461 = vadd.f32 %v161, %v460
    %v462 = vpop.f32.mrb[0].mxu0
    %463 = vdwg.mxu0
    %464 = vrot.lane.b32.xlu0 %v298, 64
    %v465 = vpop.permute.xlu0 %464
    %v466 = vsel %vm313, %v298, 0
    %v468 = vsel %vm313, %v465, 0
    %470 = vmatprep.subr.mxu0 0.0
    %471 = vmatpush1.xpose.msra.mxu0 %v468
    %472 = vmatprep.subr.mxu0 0.0
    %473 = vmatpush1.xpose.msra.mxu0 0.0
    %474 = vmatprep.subr.mxu0 0.0
    %475 = vmatpush1.xpose.msra.mxu0 0.0
    %476 = vmatprep.subr.mxu0 0.0
    %477 = vmatpush1.xpose.msra.mxu0 0.0
    %478 = vmatprep.subr.mxu0 0.0
    %479 = vmatpush1.xpose.msra.mxu0 0.0
    %480 = vmatprep.subr.mxu0 0.0
    %481 = vmatpush1.xpose.msra.mxu0 0.0
    %482 = vmatprep.subr.mxu0 0.0
    %483 = vmatpush1.xpose.msra.mxu0 0.0
    %484 = vmatprep.subr.mxu0 0.0
    %485 = vmatpush1.xpose.msra.mxu0 0.0
    %486 = vmatprep.subr.mxu0 0.0
    %487 = vmatpush1.xpose.msra.mxu0 0.0
    %488 = vmatprep.subr.mxu0 0.0
    %489 = vmatpush1.xpose.msra.mxu0 0.0
    %490 = vmatprep.subr.mxu0 0.0
    %491 = vmatpush1.xpose.msra.mxu0 0.0
    %492 = vmatprep.subr.mxu0 0.0
    %493 = vmatpush1.xpose.msra.mxu0 0.0
    %494 = vmatprep.subr.mxu0 0.0
    %495 = vmatpush1.xpose.msra.mxu0 0.0
    %496 = vmatprep.subr.mxu0 0.0
    %497 = vmatpush1.xpose.msra.mxu0 0.0
    %498 = vmatprep.subr.mxu0 0.0
    %499 = vmatpush1.xpose.msra.mxu0 0.0
    %500 = vmatprep.subr.mxu0 0.0
    %501 = vmatpush1.xpose.msra.mxu0 0.0
    %502 = vmatprep.subr.mxu0 0.0
    %503 = vmatpush1.xpose.msra.mxu0 0.0
    %504 = vmatprep.subr.mxu0 0.0
    %505 = vmatpush1.xpose.msra.mxu0 0.0
    %506 = vmatprep.subr.mxu0 0.0
    %507 = vmatpush1.xpose.msra.mxu0 0.0
    %508 = vmatprep.subr.mxu0 0.0
    %509 = vmatpush1.xpose.msra.mxu0 0.0
    %510 = vmatprep.subr.mxu0 0.0
    %511 = vmatpush1.xpose.msra.mxu0 0.0
    %512 = vmatprep.subr.mxu0 0.0
    %513 = vmatpush1.xpose.msra.mxu0 0.0
    %514 = vmatprep.subr.mxu0 0.0
    %515 = vmatpush1.xpose.msra.mxu0 0.0
    %516 = vmatprep.subr.mxu0 0.0
    %517 = vmatpush1.xpose.msra.mxu0 0.0
    %518 = vmatprep.subr.mxu0 0.0
    %519 = vmatpush1.xpose.msra.mxu0 0.0
    %520 = vmatprep.subr.mxu0 0.0
    %521 = vmatpush1.xpose.msra.mxu0 0.0
    %522 = vmatprep.subr.mxu0 0.0
    %523 = vmatpush1.xpose.msra.mxu0 0.0
    %524 = vmatprep.subr.mxu0 0.0
    %525 = vmatpush1.xpose.msra.mxu0 0.0
    %526 = vmatprep.subr.mxu0 0.0
    %527 = vmatpush1.xpose.msra.mxu0 0.0
    %528 = vmatprep.subr.mxu0 0.0
    %529 = vmatpush1.xpose.msra.mxu0 0.0
    %530 = vmatprep.subr.mxu0 0.0
    %531 = vmatpush1.xpose.msra.mxu0 0.0
    %532 = vmatprep.subr.mxu0 0.0
    %533 = vmatpush1.xpose.msra.mxu0 0.0
    %534 = vmatprep.mubr.f32.mxu0 0.0
    %535 = vmatmul.mubr.f32.gmra.mrb[0].mxu0 %v466
    %v536 = vpop.f32.mrb[0].mxu0
    %v537 = vadd.f32 %v161, %v536
    %v538 = vpop.f32.mrb[0].mxu0
    %539 = vdwg.mxu0
    %540 = vrot.lane.b32.xlu0 %v300, 64
    %v541 = vpop.permute.xlu0 %540
    %v542 = vsel %vm313, %v300, 0
    %v544 = vsel %vm313, %v541, 0
    %546 = vmatprep.subr.mxu0 0.0
    %547 = vmatpush1.xpose.msra.mxu0 %v544
    %548 = vmatprep.subr.mxu0 0.0
    %549 = vmatpush1.xpose.msra.mxu0 0.0
    %550 = vmatprep.subr.mxu0 0.0
    %551 = vmatpush1.xpose.msra.mxu0 0.0
    %552 = vmatprep.subr.mxu0 0.0
    %553 = vmatpush1.xpose.msra.mxu0 0.0
    %554 = vmatprep.subr.mxu0 0.0
    %555 = vmatpush1.xpose.msra.mxu0 0.0
    %556 = vmatprep.subr.mxu0 0.0
    %557 = vmatpush1.xpose.msra.mxu0 0.0
    %558 = vmatprep.subr.mxu0 0.0
    %559 = vmatpush1.xpose.msra.mxu0 0.0
    %560 = vmatprep.subr.mxu0 0.0
    %561 = vmatpush1.xpose.msra.mxu0 0.0
    %562 = vmatprep.subr.mxu0 0.0
    %563 = vmatpush1.xpose.msra.mxu0 0.0
    %564 = vmatprep.subr.mxu0 0.0
    %565 = vmatpush1.xpose.msra.mxu0 0.0
    %566 = vmatprep.subr.mxu0 0.0
    %567 = vmatpush1.xpose.msra.mxu0 0.0
    %568 = vmatprep.subr.mxu0 0.0
    %569 = vmatpush1.xpose.msra.mxu0 0.0
    %570 = vmatprep.subr.mxu0 0.0
    %571 = vmatpush1.xpose.msra.mxu0 0.0
    %572 = vmatprep.subr.mxu0 0.0
    %573 = vmatpush1.xpose.msra.mxu0 0.0
    %574 = vmatprep.subr.mxu0 0.0
    %575 = vmatpush1.xpose.msra.mxu0 0.0
    %576 = vmatprep.subr.mxu0 0.0
    %577 = vmatpush1.xpose.msra.mxu0 0.0
    %578 = vmatprep.subr.mxu0 0.0
    %579 = vmatpush1.xpose.msra.mxu0 0.0
    %580 = vmatprep.subr.mxu0 0.0
    %581 = vmatpush1.xpose.msra.mxu0 0.0
    %582 = vmatprep.subr.mxu0 0.0
    %583 = vmatpush1.xpose.msra.mxu0 0.0
    %584 = vmatprep.subr.mxu0 0.0
    %585 = vmatpush1.xpose.msra.mxu0 0.0
    %586 = vmatprep.subr.mxu0 0.0
    %587 = vmatpush1.xpose.msra.mxu0 0.0
    %588 = vmatprep.subr.mxu0 0.0
    %589 = vmatpush1.xpose.msra.mxu0 0.0
    %590 = vmatprep.subr.mxu0 0.0
    %591 = vmatpush1.xpose.msra.mxu0 0.0
    %592 = vmatprep.subr.mxu0 0.0
    %593 = vmatpush1.xpose.msra.mxu0 0.0
    %594 = vmatprep.subr.mxu0 0.0
    %595 = vmatpush1.xpose.msra.mxu0 0.0
    %596 = vmatprep.subr.mxu0 0.0
    %597 = vmatpush1.xpose.msra.mxu0 0.0
    %598 = vmatprep.subr.mxu0 0.0
    %599 = vmatpush1.xpose.msra.mxu0 0.0
    %600 = vmatprep.subr.mxu0 0.0
    %601 = vmatpush1.xpose.msra.mxu0 0.0
    %602 = vmatprep.subr.mxu0 0.0
    %603 = vmatpush1.xpose.msra.mxu0 0.0
    %604 = vmatprep.subr.mxu0 0.0
    %605 = vmatpush1.xpose.msra.mxu0 0.0
    %606 = vmatprep.subr.mxu0 0.0
    %607 = vmatpush1.xpose.msra.mxu0 0.0
    %608 = vmatprep.subr.mxu0 0.0
    %609 = vmatpush1.xpose.msra.mxu0 0.0
    %610 = vmatprep.mubr.f32.mxu0 0.0
    %611 = vmatmul.mubr.f32.gmra.mrb[0].mxu0 %v542
    %v612 = vpop.f32.mrb[0].mxu0
    %v613 = vadd.f32 %v161, %v612
    %v614 = vpop.f32.mrb[0].mxu0
    %615 = vdwg.mxu0
    %vm616 = vcmask 64512
    %v617 = vsel %vm616, %v385, -inf
    %618 = vmax.xlane.f32.xlu0 %v617
    %v619 = vpop.xlane.xlu0 %618
    %v620 = vsel %vm616, %v461, -inf
    %621 = vmax.xlane.f32.xlu0 %v620
    %v622 = vpop.xlane.xlu0 %621
    %v623 = vsel %vm616, %v537, -inf
    %624 = vmax.xlane.f32.xlu0 %v623
    %v625 = vpop.xlane.xlu0 %624
    %v626 = vsel %vm616, %v613, -inf
    %627 = vmax.xlane.f32.xlu0 %v626
    %v628 = vpop.xlane.xlu0 %627
    %v629 = vsub.f32 %v385, %v619
    %v630 = vsub.f32 %v461, %v622
    %v631 = vsub.f32 %v537, %v625
    %v632 = vsub.f32 %v613, %v628
    %v633 = vmul.f32 %v629, 1.442695
    %v634 = vpow.pop %v633
    %v635 = vmul.f32 %v630, 1.442695
    %v636 = vpow.pop %v635
    %v637 = vmul.f32 %v631, 1.442695
    %v638 = vpow.pop %v637
    %v639 = vmul.f32 %v632, 1.442695
    %v640 = vpow.pop %v639
    %v641 = vsel %vm616, %v634, 0.0
    %642 = vadd.xlane.f32.xlu0 %v641
    %v643 = vpop.xlane.xlu0 %642
    %v644 = vsel %vm616, %v636, 0.0
    %645 = vadd.xlane.f32.xlu0 %v644
    %v646 = vpop.xlane.xlu0 %645
    %v647 = vsel %vm616, %v638, 0.0
    %648 = vadd.xlane.f32.xlu0 %v647
    %v649 = vpop.xlane.xlu0 %648
    %v650 = vsel %vm616, %v640, 0.0
    %651 = vadd.xlane.f32.xlu0 %v650
    %v652 = vpop.xlane.xlu0 %651
    %v653 = vrcp.pop %v643
    %v654 = vrcp.pop %v646
    %v655 = vrcp.pop %v649
    %v656 = vrcp.pop %v652
    %v657 = vmul.f32 %v634, %v653
    %v658 = vmul.f32 %v636, %v654
    %v659 = vmul.f32 %v638, %v655
    %v660 = vmul.f32 %v640, %v656
    %v662 = vsel %vm616, %v657, 0
    %664 = vmatprep.subr.mxu0 0.0
    %665 = vmatpush1.msra.mxu0 %v292
    %666 = vmatprep.subr.mxu0 0.0
    %667 = vmatpush1.msra.mxu0 0.0
    %668 = vmatprep.subr.mxu0 0.0
    %669 = vmatpush1.msra.mxu0 0.0
    %670 = vmatprep.subr.mxu0 0.0
    %671 = vmatpush1.msra.mxu0 0.0
    %672 = vmatprep.subr.mxu0 0.0
    %673 = vmatpush1.msra.mxu0 0.0
    %674 = vmatprep.subr.mxu0 0.0
    %675 = vmatpush1.msra.mxu0 0.0
    %676 = vmatprep.subr.mxu0 0.0
    %677 = vmatpush1.msra.mxu0 0.0
    %678 = vmatprep.subr.mxu0 0.0
    %679 = vmatpush1.msra.mxu0 0.0
    %680 = vmatprep.subr.mxu0 0.0
    %681 = vmatpush1.msra.mxu0 0.0
    %682 = vmatprep.subr.mxu0 0.0
    %683 = vmatpush1.msra.mxu0 0.0
    %684 = vmatprep.subr.mxu0 0.0
    %685 = vmatpush1.msra.mxu0 0.0
    %686 = vmatprep.subr.mxu0 0.0
    %687 = vmatpush1.msra.mxu0 0.0
    %688 = vmatprep.subr.mxu0 0.0
    %689 = vmatpush1.msra.mxu0 0.0
    %690 = vmatprep.subr.mxu0 0.0
    %691 = vmatpush1.msra.mxu0 0.0
    %692 = vmatprep.subr.mxu0 0.0
    %693 = vmatpush1.msra.mxu0 0.0
    %694 = vmatprep.subr.mxu0 0.0
    %695 = vmatpush1.msra.mxu0 0.0
    %696 = vmatprep.subr.mxu0 0.0
    %697 = vmatpush1.msra.mxu0 0.0
    %698 = vmatprep.subr.mxu0 0.0
    %699 = vmatpush1.msra.mxu0 0.0
    %700 = vmatprep.subr.mxu0 0.0
    %701 = vmatpush1.msra.mxu0 0.0
    %702 = vmatprep.subr.mxu0 0.0
    %703 = vmatpush1.msra.mxu0 0.0
    %704 = vmatprep.subr.mxu0 0.0
    %705 = vmatpush1.msra.mxu0 0.0
    %706 = vmatprep.subr.mxu0 0.0
    %707 = vmatpush1.msra.mxu0 0.0
    %708 = vmatprep.subr.mxu0 0.0
    %709 = vmatpush1.msra.mxu0 0.0
    %710 = vmatprep.subr.mxu0 0.0
    %711 = vmatpush1.msra.mxu0 0.0
    %712 = vmatprep.subr.mxu0 0.0
    %713 = vmatpush1.msra.mxu0 0.0
    %714 = vmatprep.subr.mxu0 0.0
    %715 = vmatpush1.msra.mxu0 0.0
    %716 = vmatprep.subr.mxu0 0.0
    %717 = vmatpush1.msra.mxu0 0.0
    %718 = vmatprep.subr.mxu0 0.0
    %719 = vmatpush1.msra.mxu0 0.0
    %720 = vmatprep.subr.mxu0 0.0
    %721 = vmatpush1.msra.mxu0 0.0
    %722 = vmatprep.subr.mxu0 0.0
    %723 = vmatpush1.msra.mxu0 0.0
    %724 = vmatprep.subr.mxu0 0.0
    %725 = vmatpush1.msra.mxu0 0.0
    %726 = vmatprep.subr.mxu0 0.0
    %727 = vmatpush1.msra.mxu0 0.0
    %728 = vmatprep.mubr.f32.mxu0 0.0
    %729 = vmatmul.mubr.f32.gmra.mrb[0].mxu0 %v662
    %v730 = vpop.f32.mrb[0].mxu0
    %v731 = vadd.f32 0.0, %v730
    %v732 = vpop.f32.mrb[0].mxu0
    %733 = vdwg.mxu0
    %v735 = vsel %vm616, %v658, 0
    %737 = vmatprep.subr.mxu0 0.0
    %738 = vmatpush1.msra.mxu0 %v303
    %739 = vmatprep.subr.mxu0 0.0
    %740 = vmatpush1.msra.mxu0 0.0
    %741 = vmatprep.subr.mxu0 0.0
    %742 = vmatpush1.msra.mxu0 0.0
    %743 = vmatprep.subr.mxu0 0.0
    %744 = vmatpush1.msra.mxu0 0.0
    %745 = vmatprep.subr.mxu0 0.0
    %746 = vmatpush1.msra.mxu0 0.0
    %747 = vmatprep.subr.mxu0 0.0
    %748 = vmatpush1.msra.mxu0 0.0
    %749 = vmatprep.subr.mxu0 0.0
    %750 = vmatpush1.msra.mxu0 0.0
    %751 = vmatprep.subr.mxu0 0.0
    %752 = vmatpush1.msra.mxu0 0.0
    %753 = vmatprep.subr.mxu0 0.0
    %754 = vmatpush1.msra.mxu0 0.0
    %755 = vmatprep.subr.mxu0 0.0
    %756 = vmatpush1.msra.mxu0 0.0
    %757 = vmatprep.subr.mxu0 0.0
    %758 = vmatpush1.msra.mxu0 0.0
    %759 = vmatprep.subr.mxu0 0.0
    %760 = vmatpush1.msra.mxu0 0.0
    %761 = vmatprep.subr.mxu0 0.0
    %762 = vmatpush1.msra.mxu0 0.0
    %763 = vmatprep.subr.mxu0 0.0
    %764 = vmatpush1.msra.mxu0 0.0
    %765 = vmatprep.subr.mxu0 0.0
    %766 = vmatpush1.msra.mxu0 0.0
    %767 = vmatprep.subr.mxu0 0.0
    %768 = vmatpush1.msra.mxu0 0.0
    %769 = vmatprep.subr.mxu0 0.0
    %770 = vmatpush1.msra.mxu0 0.0
    %771 = vmatprep.subr.mxu0 0.0
    %772 = vmatpush1.msra.mxu0 0.0
    %773 = vmatprep.subr.mxu0 0.0
    %774 = vmatpush1.msra.mxu0 0.0
    %775 = vmatprep.subr.mxu0 0.0
    %776 = vmatpush1.msra.mxu0 0.0
    %777 = vmatprep.subr.mxu0 0.0
    %778 = vmatpush1.msra.mxu0 0.0
    %779 = vmatprep.subr.mxu0 0.0
    %780 = vmatpush1.msra.mxu0 0.0
    %781 = vmatprep.subr.mxu0 0.0
    %782 = vmatpush1.msra.mxu0 0.0
    %783 = vmatprep.subr.mxu0 0.0
    %784 = vmatpush1.msra.mxu0 0.0
    %785 = vmatprep.subr.mxu0 0.0
    %786 = vmatpush1.msra.mxu0 0.0
    %787 = vmatprep.subr.mxu0 0.0
    %788 = vmatpush1.msra.mxu0 0.0
    %789 = vmatprep.subr.mxu0 0.0
    %790 = vmatpush1.msra.mxu0 0.0
    %791 = vmatprep.subr.mxu0 0.0
    %792 = vmatpush1.msra.mxu0 0.0
    %793 = vmatprep.subr.mxu0 0.0
    %794 = vmatpush1.msra.mxu0 0.0
    %795 = vmatprep.subr.mxu0 0.0
    %796 = vmatpush1.msra.mxu0 0.0
    %797 = vmatprep.subr.mxu0 0.0
    %798 = vmatpush1.msra.mxu0 0.0
    %799 = vmatprep.subr.mxu0 0.0
    %800 = vmatpush1.msra.mxu0 0.0
    %801 = vmatprep.mubr.f32.mxu0 0.0
    %802 = vmatmul.mubr.f32.gmra.mrb[0].mxu0 %v735
    %v803 = vpop.f32.mrb[0].mxu0
    %v804 = vadd.f32 0.0, %v803
    %v805 = vpop.f32.mrb[0].mxu0
    %806 = vdwg.mxu0
    %v808 = vsel %vm616, %v659, 0
    %810 = vmatprep.subr.mxu0 0.0
    %811 = vmatpush1.msra.mxu0 %v306
    %812 = vmatprep.subr.mxu0 0.0
    %813 = vmatpush1.msra.mxu0 0.0
    %814 = vmatprep.subr.mxu0 0.0
    %815 = vmatpush1.msra.mxu0 0.0
    %816 = vmatprep.subr.mxu0 0.0
    %817 = vmatpush1.msra.mxu0 0.0
    %818 = vmatprep.subr.mxu0 0.0
    %819 = vmatpush1.msra.mxu0 0.0
    %820 = vmatprep.subr.mxu0 0.0
    %821 = vmatpush1.msra.mxu0 0.0
    %822 = vmatprep.subr.mxu0 0.0
    %823 = vmatpush1.msra.mxu0 0.0
    %824 = vmatprep.subr.mxu0 0.0
    %825 = vmatpush1.msra.mxu0 0.0
    %826 = vmatprep.subr.mxu0 0.0
    %827 = vmatpush1.msra.mxu0 0.0
    %828 = vmatprep.subr.mxu0 0.0
    %829 = vmatpush1.msra.mxu0 0.0
    %830 = vmatprep.subr.mxu0 0.0
    %831 = vmatpush1.msra.mxu0 0.0
    %832 = vmatprep.subr.mxu0 0.0
    %833 = vmatpush1.msra.mxu0 0.0
    %834 = vmatprep.subr.mxu0 0.0
    %835 = vmatpush1.msra.mxu0 0.0
    %836 = vmatprep.subr.mxu0 0.0
    %837 = vmatpush1.msra.mxu0 0.0
    %838 = vmatprep.subr.mxu0 0.0
    %839 = vmatpush1.msra.mxu0 0.0
    %840 = vmatprep.subr.mxu0 0.0
    %841 = vmatpush1.msra.mxu0 0.0
    %842 = vmatprep.subr.mxu0 0.0
    %843 = vmatpush1.msra.mxu0 0.0
    %844 = vmatprep.subr.mxu0 0.0
    %845 = vmatpush1.msra.mxu0 0.0
    %846 = vmatprep.subr.mxu0 0.0
    %847 = vmatpush1.msra.mxu0 0.0
    %848 = vmatprep.subr.mxu0 0.0
    %849 = vmatpush1.msra.mxu0 0.0
    %850 = vmatprep.subr.mxu0 0.0
    %851 = vmatpush1.msra.mxu0 0.0
    %852 = vmatprep.subr.mxu0 0.0
    %853 = vmatpush1.msra.mxu0 0.0
    %854 = vmatprep.subr.mxu0 0.0
    %855 = vmatpush1.msra.mxu0 0.0
    %856 = vmatprep.subr.mxu0 0.0
    %857 = vmatpush1.msra.mxu0 0.0
    %858 = vmatprep.subr.mxu0 0.0
    %859 = vmatpush1.msra.mxu0 0.0
    %860 = vmatprep.subr.mxu0 0.0
    %861 = vmatpush1.msra.mxu0 0.0
    %862 = vmatprep.subr.mxu0 0.0
    %863 = vmatpush1.msra.mxu0 0.0
    %864 = vmatprep.subr.mxu0 0.0
    %865 = vmatpush1.msra.mxu0 0.0
    %866 = vmatprep.subr.mxu0 0.0
    %867 = vmatpush1.msra.mxu0 0.0
    %868 = vmatprep.subr.mxu0 0.0
    %869 = vmatpush1.msra.mxu0 0.0
    %870 = vmatprep.subr.mxu0 0.0
    %871 = vmatpush1.msra.mxu0 0.0
    %872 = vmatprep.subr.mxu0 0.0
    %873 = vmatpush1.msra.mxu0 0.0
    %874 = vmatprep.mubr.f32.mxu0 0.0
    %875 = vmatmul.mubr.f32.gmra.mrb[0].mxu0 %v808
    %v876 = vpop.f32.mrb[0].mxu0
    %v877 = vadd.f32 0.0, %v876
    %v878 = vpop.f32.mrb[0].mxu0
    %879 = vdwg.mxu0
    %v881 = vsel %vm616, %v660, 0
    %883 = vmatprep.subr.mxu0 0.0
    %884 = vmatpush1.msra.mxu0 %v309
    %885 = vmatprep.subr.mxu0 0.0
    %886 = vmatpush1.msra.mxu0 0.0
    %887 = vmatprep.subr.mxu0 0.0
    %888 = vmatpush1.msra.mxu0 0.0
    %889 = vmatprep.subr.mxu0 0.0
    %890 = vmatpush1.msra.mxu0 0.0
    %891 = vmatprep.subr.mxu0 0.0
    %892 = vmatpush1.msra.mxu0 0.0
    %893 = vmatprep.subr.mxu0 0.0
    %894 = vmatpush1.msra.mxu0 0.0
    %895 = vmatprep.subr.mxu0 0.0
    %896 = vmatpush1.msra.mxu0 0.0
    %897 = vmatprep.subr.mxu0 0.0
    %898 = vmatpush1.msra.mxu0 0.0
    %899 = vmatprep.subr.mxu0 0.0
    %900 = vmatpush1.msra.mxu0 0.0
    %901 = vmatprep.subr.mxu0 0.0
    %902 = vmatpush1.msra.mxu0 0.0
    %903 = vmatprep.subr.mxu0 0.0
    %904 = vmatpush1.msra.mxu0 0.0
    %905 = vmatprep.subr.mxu0 0.0
    %906 = vmatpush1.msra.mxu0 0.0
    %907 = vmatprep.subr.mxu0 0.0
    %908 = vmatpush1.msra.mxu0 0.0
    %909 = vmatprep.subr.mxu0 0.0
    %910 = vmatpush1.msra.mxu0 0.0
    %911 = vmatprep.subr.mxu0 0.0
    %912 = vmatpush1.msra.mxu0 0.0
    %913 = vmatprep.subr.mxu0 0.0
    %914 = vmatpush1.msra.mxu0 0.0
    %915 = vmatprep.subr.mxu0 0.0
    %916 = vmatpush1.msra.mxu0 0.0
    %917 = vmatprep.subr.mxu0 0.0
    %918 = vmatpush1.msra.mxu0 0.0
    %919 = vmatprep.subr.mxu0 0.0
    %920 = vmatpush1.msra.mxu0 0.0
    %921 = vmatprep.subr.mxu0 0.0
    %922 = vmatpush1.msra.mxu0 0.0
    %923 = vmatprep.subr.mxu0 0.0
    %924 = vmatpush1.msra.mxu0 0.0
    %925 = vmatprep.subr.mxu0 0.0
    %926 = vmatpush1.msra.mxu0 0.0
    %927 = vmatprep.subr.mxu0 0.0
    %928 = vmatpush1.msra.mxu0 0.0
    %929 = vmatprep.subr.mxu0 0.0
    %930 = vmatpush1.msra.mxu0 0.0
    %931 = vmatprep.subr.mxu0 0.0
    %932 = vmatpush1.msra.mxu0 0.0
    %933 = vmatprep.subr.mxu0 0.0
    %934 = vmatpush1.msra.mxu0 0.0
    %935 = vmatprep.subr.mxu0 0.0
    %936 = vmatpush1.msra.mxu0 0.0
    %937 = vmatprep.subr.mxu0 0.0
    %938 = vmatpush1.msra.mxu0 0.0
    %939 = vmatprep.subr.mxu0 0.0
    %940 = vmatpush1.msra.mxu0 0.0
    %941 = vmatprep.subr.mxu0 0.0
    %942 = vmatpush1.msra.mxu0 0.0
    %943 = vmatprep.subr.mxu0 0.0
    %944 = vmatpush1.msra.mxu0 0.0
    %945 = vmatprep.subr.mxu0 0.0
    %946 = vmatpush1.msra.mxu0 0.0
    %947 = vmatprep.mubr.f32.mxu0 0.0
    %948 = vmatmul.mubr.f32.gmra.mrb[0].mxu0 %v881
    %v949 = vpop.f32.mrb[0].mxu0
    %v950 = vadd.f32 0.0, %v949
    %v951 = vpop.f32.mrb[0].mxu0
    %952 = vdwg.mxu0
    %954 = vrot.lane.b32.xlu0 %v804, 16
    %v955 = vpop.permute.xlu0 %954
    %958 = vrot.lane.b32.xlu0 %v877, 32
    %v959 = vpop.permute.xlu0 %958
    %962 = vrot.lane.b32.xlu0 %v950, 48
    %v963 = vpop.permute.xlu0 %962
    %v965 = vsel %vm313, %v731, %v955
    %vm966 = vcmask 261120
    %v967 = vsel %vm966, %v965, %v959
    %vm968 = vcmask 392192
    %v969 = vsel %vm968, %v967, %v963
    %v970 = vld [vmem:[%s8] sm:$0xff]
    %v971 = vld [vmem:[%s8 + $0x8] sm:$0xff]
    %v972 = vld [vmem:[%s8 + $0x10] sm:$0xff]
    %v973 = vld [vmem:[%s8 + $0x18] sm:$0xff]
    %v974 = vld [vmem:[%s8 + $0x20] sm:$0xff]
    %v975 = vld [vmem:[%s8 + $0x28] sm:$0xff]
    %v976 = vld [vmem:[%s8 + $0x30] sm:$0xff]
    %v977 = vld [vmem:[%s8 + $0x38] sm:$0xff]
    %v978 = vld [vmem:[%s9] sm:$0x1]
    %v980 = vlaneseq
    %v981 = vshrl.u32 %v980, 7
    %v982 = vsub.s32 0, %v981
    %v983 = vrot.slane %v978, %v982
    %v986 = vsel %vm87, %v969, 0
    %988 = vmatprep.subr.mxu0 0.0
    %989 = vmatpush1.msra.mxu0 %v970
    %990 = vmatprep.subr.mxu0 0.0
    %991 = vmatpush1.msra.mxu0 %v971
    %992 = vmatprep.subr.mxu0 0.0
    %993 = vmatpush1.msra.mxu0 %v972
    %994 = vmatprep.subr.mxu0 0.0
    %995 = vmatpush1.msra.mxu0 %v973
    %996 = vmatprep.subr.mxu0 0.0
    %997 = vmatpush1.msra.mxu0 %v974
    %998 = vmatprep.subr.mxu0 0.0
    %999 = vmatpush1.msra.mxu0 %v975
    %1000 = vmatprep.subr.mxu0 0.0
    %1001 = vmatpush1.msra.mxu0 %v976
    %1002 = vmatprep.subr.mxu0 0.0
    %1003 = vmatpush1.msra.mxu0 %v977
    %1004 = vmatprep.subr.mxu0 0.0
    %1005 = vmatpush1.msra.mxu0 0.0
    %1006 = vmatprep.subr.mxu0 0.0
    %1007 = vmatpush1.msra.mxu0 0.0
    %1008 = vmatprep.subr.mxu0 0.0
    %1009 = vmatpush1.msra.mxu0 0.0
    %1010 = vmatprep.subr.mxu0 0.0
    %1011 = vmatpush1.msra.mxu0 0.0
    %1012 = vmatprep.subr.mxu0 0.0
    %1013 = vmatpush1.msra.mxu0 0.0
    %1014 = vmatprep.subr.mxu0 0.0
    %1015 = vmatpush1.msra.mxu0 0.0
    %1016 = vmatprep.subr.mxu0 0.0
    %1017 = vmatpush1.msra.mxu0 0.0
    %1018 = vmatprep.subr.mxu0 0.0
    %1019 = vmatpush1.msra.mxu0 0.0
    %1020 = vmatprep.subr.mxu0 0.0
    %1021 = vmatpush1.msra.mxu0 0.0
    %1022 = vmatprep.subr.mxu0 0.0
    %1023 = vmatpush1.msra.mxu0 0.0
    %1024 = vmatprep.subr.mxu0 0.0
    %1025 = vmatpush1.msra.mxu0 0.0
    %1026 = vmatprep.subr.mxu0 0.0
    %1027 = vmatpush1.msra.mxu0 0.0
    %1028 = vmatprep.subr.mxu0 0.0
    %1029 = vmatpush1.msra.mxu0 0.0
    %1030 = vmatprep.subr.mxu0 0.0
    %1031 = vmatpush1.msra.mxu0 0.0
    %1032 = vmatprep.subr.mxu0 0.0
    %1033 = vmatpush1.msra.mxu0 0.0
    %1034 = vmatprep.subr.mxu0 0.0
    %1035 = vmatpush1.msra.mxu0 0.0
    %1036 = vmatprep.subr.mxu0 0.0
    %1037 = vmatpush1.msra.mxu0 0.0
    %1038 = vmatprep.subr.mxu0 0.0
    %1039 = vmatpush1.msra.mxu0 0.0
    %1040 = vmatprep.subr.mxu0 0.0
    %1041 = vmatpush1.msra.mxu0 0.0
    %1042 = vmatprep.subr.mxu0 0.0
    %1043 = vmatpush1.msra.mxu0 0.0
    %1044 = vmatprep.subr.mxu0 0.0
    %1045 = vmatpush1.msra.mxu0 0.0
    %1046 = vmatprep.subr.mxu0 0.0
    %1047 = vmatpush1.msra.mxu0 0.0
    %1048 = vmatprep.subr.mxu0 0.0
    %1049 = vmatpush1.msra.mxu0 0.0
    %1050 = vmatprep.subr.mxu0 0.0
    %1051 = vmatpush1.msra.mxu0 0.0
    %1052 = vmatprep.mubr.f32.mxu0 0.0
    %1053 = vmatmul.mubr.f32.gmra.mrb[0].mxu0 %v986
    %v1054 = vpop.f32.mrb[0].mxu0
    %v1055 = vadd.f32 %v983, %v1054
    %v1056 = vpop.f32.mrb[0].mxu0
    %1057 = vdwg.mxu0
    %v1058 = vadd.f32 %v158, %v1055
    %v1059 = vld [vmem:[%s10] sm:$0x1]
    %v1060 = vld [vmem:[%s11] sm:$0x1]
    %v1061 = vsel %vm87, %v1058, 0.0
    %1062 = vadd.xlane.f32.xlu0 %v1061
    %v1063 = vpop.xlane.xlu0 %1062
    %v1064 = vmul.f32 %v1063, %v167
    %v1065 = vsub.f32 %v1058, %v1064
    %v1066 = vmul.f32 %v1065, %v1065
    %v1067 = vsel %vm87, %v1066, 0.0
    %1068 = vadd.xlane.f32.xlu0 %v1067
    %v1069 = vpop.xlane.xlu0 %1068
    %v1070 = vmul.f32 %v1069, %v167
    %v1071 = vadd.f32 %v1070, 1e-06
    %v1072 = vrsqrt.pop %v1071
    %v1073 = vmul.f32 %v1065, %v1072
    %v1075 = vlaneseq
    %v1076 = vshrl.u32 %v1075, 7
    %v1077 = vsub.s32 0, %v1076
    %v1078 = vrot.slane %v1059, %v1077
    %v1080 = vmul.f32 %v1073, %v1078
    %v1082 = vlaneseq
    %v1083 = vshrl.u32 %v1082, 7
    %v1084 = vsub.s32 0, %v1083
    %v1085 = vrot.slane %v1060, %v1084
    %v1087 = vadd.f32 %v1080, %v1085
    %v1088 = vld [vmem:[%s12] sm:$0xff]
    %v1089 = vld [vmem:[%s12 + $0x8] sm:$0xff]
    %v1090 = vld [vmem:[%s12 + $0x10] sm:$0xff]
    %v1091 = vld [vmem:[%s12 + $0x18] sm:$0xff]
    %v1092 = vld [vmem:[%s12 + $0x20] sm:$0xff]
    %v1093 = vld [vmem:[%s12 + $0x28] sm:$0xff]
    %v1094 = vld [vmem:[%s12 + $0x30] sm:$0xff]
    %v1095 = vld [vmem:[%s12 + $0x38] sm:$0xff]
    %v1096 = vld [vmem:[%s13] sm:$0x1]
    %v1098 = vlaneseq
    %v1099 = vshrl.u32 %v1098, 7
    %v1100 = vsub.s32 0, %v1099
    %v1101 = vrot.slane %v1096, %v1100
    %v1104 = vsel %vm87, %v1087, 0
    %1106 = vmatprep.subr.mxu0 0.0
    %1107 = vmatpush1.msra.mxu0 %v1088
    %1108 = vmatprep.subr.mxu0 0.0
    %1109 = vmatpush1.msra.mxu0 %v1089
    %1110 = vmatprep.subr.mxu0 0.0
    %1111 = vmatpush1.msra.mxu0 %v1090
    %1112 = vmatprep.subr.mxu0 0.0
    %1113 = vmatpush1.msra.mxu0 %v1091
    %1114 = vmatprep.subr.mxu0 0.0
    %1115 = vmatpush1.msra.mxu0 %v1092
    %1116 = vmatprep.subr.mxu0 0.0
    %1117 = vmatpush1.msra.mxu0 %v1093
    %1118 = vmatprep.subr.mxu0 0.0
    %1119 = vmatpush1.msra.mxu0 %v1094
    %1120 = vmatprep.subr.mxu0 0.0
    %1121 = vmatpush1.msra.mxu0 %v1095
    %1122 = vmatprep.subr.mxu0 0.0
    %1123 = vmatpush1.msra.mxu0 0.0
    %1124 = vmatprep.subr.mxu0 0.0
    %1125 = vmatpush1.msra.mxu0 0.0
    %1126 = vmatprep.subr.mxu0 0.0
    %1127 = vmatpush1.msra.mxu0 0.0
    %1128 = vmatprep.subr.mxu0 0.0
    %1129 = vmatpush1.msra.mxu0 0.0
    %1130 = vmatprep.subr.mxu0 0.0
    %1131 = vmatpush1.msra.mxu0 0.0
    %1132 = vmatprep.subr.mxu0 0.0
    %1133 = vmatpush1.msra.mxu0 0.0
    %1134 = vmatprep.subr.mxu0 0.0
    %1135 = vmatpush1.msra.mxu0 0.0
    %1136 = vmatprep.subr.mxu0 0.0
    %1137 = vmatpush1.msra.mxu0 0.0
    %1138 = vmatprep.subr.mxu0 0.0
    %1139 = vmatpush1.msra.mxu0 0.0
    %1140 = vmatprep.subr.mxu0 0.0
    %1141 = vmatpush1.msra.mxu0 0.0
    %1142 = vmatprep.subr.mxu0 0.0
    %1143 = vmatpush1.msra.mxu0 0.0
    %1144 = vmatprep.subr.mxu0 0.0
    %1145 = vmatpush1.msra.mxu0 0.0
    %1146 = vmatprep.subr.mxu0 0.0
    %1147 = vmatpush1.msra.mxu0 0.0
    %1148 = vmatprep.subr.mxu0 0.0
    %1149 = vmatpush1.msra.mxu0 0.0
    %1150 = vmatprep.subr.mxu0 0.0
    %1151 = vmatpush1.msra.mxu0 0.0
    %1152 = vmatprep.subr.mxu0 0.0
    %1153 = vmatpush1.msra.mxu0 0.0
    %1154 = vmatprep.subr.mxu0 0.0
    %1155 = vmatpush1.msra.mxu0 0.0
    %1156 = vmatprep.subr.mxu0 0.0
    %1157 = vmatpush1.msra.mxu0 0.0
    %1158 = vmatprep.subr.mxu0 0.0
    %1159 = vmatpush1.msra.mxu0 0.0
    %1160 = vmatprep.subr.mxu0 0.0
    %1161 = vmatpush1.msra.mxu0 0.0
    %1162 = vmatprep.subr.mxu0 0.0
    %1163 = vmatpush1.msra.mxu0 0.0
    %1164 = vmatprep.subr.mxu0 0.0
    %1165 = vmatpush1.msra.mxu0 0.0
    %1166 = vmatprep.subr.mxu0 0.0
    %1167 = vmatpush1.msra.mxu0 0.0
    %1168 = vmatprep.subr.mxu0 0.0
    %1169 = vmatpush1.msra.mxu0 0.0
    %1170 = vmatprep.mubr.f32.mxu0 0.0
    %1171 = vmatmul.mubr.f32.gmra.mrb[0].mxu0 %v1104
    %v1172 = vpop.f32.mrb[0].mxu0
    %v1173 = vadd.f32 %v1101, %v1172
    %v1174 = vpop.f32.mrb[0].mxu0
    %1175 = vdwg.mxu0
    %v1176 = vmul.f32 %v1173, 0.5
    %v1177 = vmul.f32 %v1173, 0.044715
    %v1178 = vmul.f32 %v1177, %v1173
    %v1179 = vmul.f32 %v1178, %v1173
    %v1180 = vadd.f32 %v1173, %v1179
    %v1181 = vmul.f32 %v1180, 0.7978846
    %v1182 = vtanh.pop %v1181
    %v1183 = vadd.f32 %v1182, 1.0
    %v1184 = vmul.f32 %v1176, %v1183
    %v1185 = vld [vmem:[%s14] sm:$0xff]
    %v1186 = vld [vmem:[%s14 + $0x8] sm:$0xff]
    %v1187 = vld [vmem:[%s14 + $0x10] sm:$0xff]
    %v1188 = vld [vmem:[%s14 + $0x18] sm:$0xff]
    %v1189 = vld [vmem:[%s14 + $0x20] sm:$0xff]
    %v1190 = vld [vmem:[%s14 + $0x28] sm:$0xff]
    %v1191 = vld [vmem:[%s14 + $0x30] sm:$0xff]
    %v1192 = vld [vmem:[%s14 + $0x38] sm:$0xff]
    %v1193 = vld [vmem:[%s14 + $0x40] sm:$0xff]
    %v1194 = vld [vmem:[%s14 + $0x48] sm:$0xff]
    %v1195 = vld [vmem:[%s14 + $0x50] sm:$0xff]
    %v1196 = vld [vmem:[%s14 + $0x58] sm:$0xff]
    %v1197 = vld [vmem:[%s14 + $0x60] sm:$0xff]
    %v1198 = vld [vmem:[%s14 + $0x68] sm:$0xff]
    %v1199 = vld [vmem:[%s14 + $0x70] sm:$0xff]
    %v1200 = vld [vmem:[%s14 + $0x78] sm:$0xff]
    %v1201 = vld [vmem:[%s15] sm:$0x1]
    %v1203 = vlaneseq
    %v1204 = vshrl.u32 %v1203, 7
    %v1205 = vsub.s32 0, %v1204
    %v1206 = vrot.slane %v1201, %v1205
    %1208 = vmatprep.subr.mxu0 0.0
    %1209 = vmatpush1.msra.mxu0 %v1185
    %1210 = vmatprep.subr.mxu0 0.0
    %1211 = vmatpush1.msra.mxu0 %v1186
    %1212 = vmatprep.subr.mxu0 0.0
    %1213 = vmatpush1.msra.mxu0 %v1187
    %1214 = vmatprep.subr.mxu0 0.0
    %1215 = vmatpush1.msra.mxu0 %v1188
    %1216 = vmatprep.subr.mxu0 0.0
    %1217 = vmatpush1.msra.mxu0 %v1189
    %1218 = vmatprep.subr.mxu0 0.0
    %1219 = vmatpush1.msra.mxu0 %v1190
    %1220 = vmatprep.subr.mxu0 0.0
    %1221 = vmatpush1.msra.mxu0 %v1191
    %1222 = vmatprep.subr.mxu0 0.0
    %1223 = vmatpush1.msra.mxu0 %v1192
    %1224 = vmatprep.subr.mxu0 0.0
    %1225 = vmatpush1.msra.mxu0 %v1193
    %1226 = vmatprep.subr.mxu0 0.0
    %1227 = vmatpush1.msra.mxu0 %v1194
    %1228 = vmatprep.subr.mxu0 0.0
    %1229 = vmatpush1.msra.mxu0 %v1195
    %1230 = vmatprep.subr.mxu0 0.0
    %1231 = vmatpush1.msra.mxu0 %v1196
    %1232 = vmatprep.subr.mxu0 0.0
    %1233 = vmatpush1.msra.mxu0 %v1197
    %1234 = vmatprep.subr.mxu0 0.0
    %1235 = vmatpush1.msra.mxu0 %v1198
    %1236 = vmatprep.subr.mxu0 0.0
    %1237 = vmatpush1.msra.mxu0 %v1199
    %1238 = vmatprep.subr.mxu0 0.0
    %1239 = vmatpush1.msra.mxu0 %v1200
    %1240 = vmatprep.subr.mxu0 0.0
    %1241 = vmatpush1.msra.mxu0 0.0
    %1242 = vmatprep.subr.mxu0 0.0
    %1243 = vmatpush1.msra.mxu0 0.0
    %1244 = vmatprep.subr.mxu0 0.0
    %1245 = vmatpush1.msra.mxu0 0.0
    %1246 = vmatprep.subr.mxu0 0.0
    %1247 = vmatpush1.msra.mxu0 0.0
    %1248 = vmatprep.subr.mxu0 0.0
    %1249 = vmatpush1.msra.mxu0 0.0
    %1250 = vmatprep.subr.mxu0 0.0
    %1251 = vmatpush1.msra.mxu0 0.0
    %1252 = vmatprep.subr.mxu0 0.0
    %1253 = vmatpush1.msra.mxu0 0.0
    %1254 = vmatprep.subr.mxu0 0.0
    %1255 = vmatpush1.msra.mxu0 0.0
    %1256 = vmatprep.subr.mxu0 0.0
    %1257 = vmatpush1.msra.mxu0 0.0
    %1258 = vmatprep.subr.mxu0 0.0
    %1259 = vmatpush1.msra.mxu0 0.0
    %1260 = vmatprep.subr.mxu0 0.0
    %1261 = vmatpush1.msra.mxu0 0.0
    %1262 = vmatprep.subr.mxu0 0.0
    %1263 = vmatpush1.msra.mxu0 0.0
    %1264 = vmatprep.subr.mxu0 0.0
    %1265 = vmatpush1.msra.mxu0 0.0
    %1266 = vmatprep.subr.mxu0 0.0
    %1267 = vmatpush1.msra.mxu0 0.0
    %1268 = vmatprep.subr.mxu0 0.0
    %1269 = vmatpush1.msra.mxu0 0.0
    %1270 = vmatprep.subr.mxu0 0.0
    %1271 = vmatpush1.msra.mxu0 0.0
    %1272 = vmatprep.mubr.f32.mxu0 0.0
    %1273 = vmatmul.mubr.f32.gmra.mrb[0].mxu0 %v1184
    %v1274 = vpop.f32.mrb[0].mxu0
    %v1275 = vadd.f32 %v1206, %v1274
    %v1276 = vpop.f32.mrb[0].mxu0
    %1277 = vdwg.mxu0
    %v1278 = vadd.f32 %v1058, %v1275
    %s1279 = scalar_lea.vmem %s4, 1
    %v1280 = vld [vmem:[%s1279] sm:$0x1]
    %s1281 = scalar_lea.vmem %s5, 1
    %v1282 = vld [vmem:[%s1281] sm:$0x1]
    %v1283 = vsel %vm87, %v1278, 0.0
    %1284 = vadd.xlane.f32.xlu0 %v1283
    %v1285 = vpop.xlane.xlu0 %1284
    %v1286 = vmul.f32 %v1285, %v167
    %v1287 = vsub.f32 %v1278, %v1286
    %v1288 = vmul.f32 %v1287, %v1287
    %v1289 = vsel %vm87, %v1288, 0.0
    %1290 = vadd.xlane.f32.xlu0 %v1289
    %v1291 = vpop.xlane.xlu0 %1290
    %v1292 = vmul.f32 %v1291, %v167
    %v1293 = vadd.f32 %v1292, 1e-06
    %v1294 = vrsqrt.pop %v1293
    %v1295 = vmul.f32 %v1287, %v1294
    %v1297 = vlaneseq
    %v1298 = vshrl.u32 %v1297, 7
    %v1299 = vsub.s32 0, %v1298
    %v1300 = vrot.slane %v1280, %v1299
    %v1302 = vmul.f32 %v1295, %v1300
    %v1304 = vlaneseq
    %v1305 = vshrl.u32 %v1304, 7
    %v1306 = vsub.s32 0, %v1305
    %v1307 = vrot.slane %v1282, %v1306
    %v1309 = vadd.f32 %v1302, %v1307
    %s1310 = scalar_lea.vmem %s6, 128
    %v1311 = vld [vmem:[%s1310] sm:$0xff]
    %v1312 = vld [vmem:[%s1310 + $0x8] sm:$0xff]
    %v1313 = vld [vmem:[%s1310 + $0x10] sm:$0xff]
    %v1314 = vld [vmem:[%s1310 + $0x18] sm:$0xff]
    %v1315 = vld [vmem:[%s1310 + $0x20] sm:$0xff]
    %v1316 = vld [vmem:[%s1310 + $0x28] sm:$0xff]
    %v1317 = vld [vmem:[%s1310 + $0x30] sm:$0xff]
    %v1318 = vld [vmem:[%s1310 + $0x38] sm:$0xff]
    %v1319 = vld [vmem:[%s1310 + $0x40] sm:$0xff]
    %v1320 = vld [vmem:[%s1310 + $0x48] sm:$0xff]
    %v1321 = vld [vmem:[%s1310 + $0x50] sm:$0xff]
    %v1322 = vld [vmem:[%s1310 + $0x58] sm:$0xff]
    %v1323 = vld [vmem:[%s1310 + $0x60] sm:$0xff]
    %v1324 = vld [vmem:[%s1310 + $0x68] sm:$0xff]
    %v1325 = vld [vmem:[%s1310 + $0x70] sm:$0xff]
    %v1326 = vld [vmem:[%s1310 + $0x78] sm:$0xff]
    %s1327 = scalar_lea.vmem %s7, 2
    %v1328 = vld [vmem:[%s1327] sm:$0x3]
    %v1330 = vlaneseq
    %v1331 = vshrl.u32 %v1330, 7
    %v1332 = vsub.s32 0, %v1331
    %v1333 = vrot.slane %v1328, %v1332
    %v1334 = vlaneseq
    %v1335 = vshrl.u32 %v1334, 7
    %v1336 = vsub.s32 1, %v1335
    %v1337 = vrot.slane %v1328, %v1336
    %v1341 = vsel %vm87, %v1309, 0
    %1343 = vmatprep.subr.mxu0 %v1312
    %1344 = vmatpush1.msra.mxu0 %v1311
    %1345 = vmatprep.subr.mxu0 %v1314
    %1346 = vmatpush1.msra.mxu0 %v1313
    %1347 = vmatprep.subr.mxu0 %v1316
    %1348 = vmatpush1.msra.mxu0 %v1315
    %1349 = vmatprep.subr.mxu0 %v1318
    %1350 = vmatpush1.msra.mxu0 %v1317
    %1351 = vmatprep.subr.mxu0 %v1320
    %1352 = vmatpush1.msra.mxu0 %v1319
    %1353 = vmatprep.subr.mxu0 %v1322
    %1354 = vmatpush1.msra.mxu0 %v1321
    %1355 = vmatprep.subr.mxu0 %v1324
    %1356 = vmatpush1.msra.mxu0 %v1323
    %1357 = vmatprep.subr.mxu0 %v1326
    %1358 = vmatpush1.msra.mxu0 %v1325
    %1359 = vmatprep.subr.mxu0 0.0
    %1360 = vmatpush1.msra.mxu0 0.0
    %1361 = vmatprep.subr.mxu0 0.0
    %1362 = vmatpush1.msra.mxu0 0.0
    %1363 = vmatprep.subr.mxu0 0.0
    %1364 = vmatpush1.msra.mxu0 0.0
    %1365 = vmatprep.subr.mxu0 0.0
    %1366 = vmatpush1.msra.mxu0 0.0
    %1367 = vmatprep.subr.mxu0 0.0
    %1368 = vmatpush1.msra.mxu0 0.0
    %1369 = vmatprep.subr.mxu0 0.0
    %1370 = vmatpush1.msra.mxu0 0.0
    %1371 = vmatprep.subr.mxu0 0.0
    %1372 = vmatpush1.msra.mxu0 0.0
    %1373 = vmatprep.subr.mxu0 0.0
    %1374 = vmatpush1.msra.mxu0 0.0
    %1375 = vmatprep.subr.mxu0 0.0
    %1376 = vmatpush1.msra.mxu0 0.0
    %1377 = vmatprep.subr.mxu0 0.0
    %1378 = vmatpush1.msra.mxu0 0.0
    %1379 = vmatprep.subr.mxu0 0.0
    %1380 = vmatpush1.msra.mxu0 0.0
    %1381 = vmatprep.subr.mxu0 0.0
    %1382 = vmatpush1.msra.mxu0 0.0
    %1383 = vmatprep.subr.mxu0 0.0
    %1384 = vmatpush1.msra.mxu0 0.0
    %1385 = vmatprep.subr.mxu0 0.0
    %1386 = vmatpush1.msra.mxu0 0.0
    %1387 = vmatprep.subr.mxu0 0.0
    %1388 = vmatpush1.msra.mxu0 0.0
    %1389 = vmatprep.subr.mxu0 0.0
    %1390 = vmatpush1.msra.mxu0 0.0
    %1391 = vmatprep.subr.mxu0 0.0
    %1392 = vmatpush1.msra.mxu0 0.0
    %1393 = vmatprep.subr.mxu0 0.0
    %1394 = vmatpush1.msra.mxu0 0.0
    %1395 = vmatprep.subr.mxu0 0.0
    %1396 = vmatpush1.msra.mxu0 0.0
    %1397 = vmatprep.subr.mxu0 0.0
    %1398 = vmatpush1.msra.mxu0 0.0
    %1399 = vmatprep.subr.mxu0 0.0
    %1400 = vmatpush1.msra.mxu0 0.0
    %1401 = vmatprep.subr.mxu0 0.0
    %1402 = vmatpush1.msra.mxu0 0.0
    %1403 = vmatprep.subr.mxu0 0.0
    %1404 = vmatpush1.msra.mxu0 0.0
    %1405 = vmatprep.subr.mxu0 0.0
    %1406 = vmatpush1.msra.mxu0 0.0
    %1407 = vmatprep.mubr.f32.mxu0 0.0
    %1408 = vmatmul.mubr.f32.gmra.mrb[0].mxu0 %v1341
    %v1409 = vpop.f32.mrb[0].mxu0
    %v1410 = vadd.f32 %v1333, %v1409
    %v1411 = vpop.f32.mrb[0].mxu0
    %v1412 = vadd.f32 %v1337, %v1411
    %1413 = vdwg.mxu0
    %1415 = vrot.lane.b32.xlu0 %v1410, 112
    %v1416 = vpop.permute.xlu0 %1415
    %1417 = vrot.lane.b32.xlu0 %v1410, 96
    %v1418 = vpop.permute.xlu0 %1417
    %1419 = vrot.lane.b32.xlu0 %v1410, 80
    %v1420 = vpop.permute.xlu0 %1419
    %1422 = vrot.lane.b32.xlu0 %v1412, 112
    %v1423 = vpop.permute.xlu0 %1422
    %1425 = vrot.lane.b32.xlu0 %v1412, 96
    %v1426 = vpop.permute.xlu0 %1425
    %1428 = vrot.lane.b32.xlu0 %v1412, 80
    %v1429 = vpop.permute.xlu0 %1428
    %1431 = vrot.lane.b32.xlu0 %v1410, 64
    %v1432 = vpop.permute.xlu0 %1431
    %v1433 = vsel %vm313, %v1410, 0
    %v1435 = vsel %vm313, %v1432, 0
    %1437 = vmatprep.subr.mxu0 0.0
    %1438 = vmatpush1.xpose.msra.mxu0 %v1435
    %1439 = vmatprep.subr.mxu0 0.0
    %1440 = vmatpush1.xpose.msra.mxu0 0.0
    %1441 = vmatprep.subr.mxu0 0.0
    %1442 = vmatpush1.xpose.msra.mxu0 0.0
    %1443 = vmatprep.subr.mxu0 0.0
    %1444 = vmatpush1.xpose.msra.mxu0 0.0
    %1445 = vmatprep.subr.mxu0 0.0
    %1446 = vmatpush1.xpose.msra.mxu0 0.0
    %1447 = vmatprep.subr.mxu0 0.0
    %1448 = vmatpush1.xpose.msra.mxu0 0.0
    %1449 = vmatprep.subr.mxu0 0.0
    %1450 = vmatpush1.xpose.msra.mxu0 0.0
    %1451 = vmatprep.subr.mxu0 0.0
    %1452 = vmatpush1.xpose.msra.mxu0 0.0
    %1453 = vmatprep.subr.mxu0 0.0
    %1454 = vmatpush1.xpose.msra.mxu0 0.0
    %1455 = vmatprep.subr.mxu0 0.0
    %1456 = vmatpush1.xpose.msra.mxu0 0.0
    %1457 = vmatprep.subr.mxu0 0.0
    %1458 = vmatpush1.xpose.msra.mxu0 0.0
    %1459 = vmatprep.subr.mxu0 0.0
    %1460 = vmatpush1.xpose.msra.mxu0 0.0
    %1461 = vmatprep.subr.mxu0 0.0
    %1462 = vmatpush1.xpose.msra.mxu0 0.0
    %1463 = vmatprep.subr.mxu0 0.0
    %1464 = vmatpush1.xpose.msra.mxu0 0.0
    %1465 = vmatprep.subr.mxu0 0.0
    %1466 = vmatpush1.xpose.msra.mxu0 0.0
    %1467 = vmatprep.subr.mxu0 0.0
    %1468 = vmatpush1.xpose.msra.mxu0 0.0
    %1469 = vmatprep.subr.mxu0 0.0
    %1470 = vmatpush1.xpose.msra.mxu0 0.0
    %1471 = vmatprep.subr.mxu0 0.0
    %1472 = vmatpush1.xpose.msra.mxu0 0.0
    %1473 = vmatprep.subr.mxu0 0.0
    %1474 = vmatpush1.xpose.msra.mxu0 0.0
    %1475 = vmatprep.subr.mxu0 0.0
    %1476 = vmatpush1.xpose.msra.mxu0 0.0
    %1477 = vmatprep.subr.mxu0 0.0
    %1478 = vmatpush1.xpose.msra.mxu0 0.0
    %1479 = vmatprep.subr.mxu0 0.0
    %1480 = vmatpush1.xpose.msra.mxu0 0.0
    %1481 = vmatprep.subr.mxu0 0.0
    %1482 = vmatpush1.xpose.msra.mxu0 0.0
    %1483 = vmatprep.subr.mxu0 0.0
    %1484 = vmatpush1.xpose.msra.mxu0 0.0
    %1485 = vmatprep.subr.mxu0 0.0
    %1486 = vmatpush1.xpose.msra.mxu0 0.0
    %1487 = vmatprep.subr.mxu0 0.0
    %1488 = vmatpush1.xpose.msra.mxu0 0.0
    %1489 = vmatprep.subr.mxu0 0.0
    %1490 = vmatpush1.xpose.msra.mxu0 0.0
    %1491 = vmatprep.subr.mxu0 0.0
    %1492 = vmatpush1.xpose.msra.mxu0 0.0
    %1493 = vmatprep.subr.mxu0 0.0
    %1494 = vmatpush1.xpose.msra.mxu0 0.0
    %1495 = vmatprep.subr.mxu0 0.0
    %1496 = vmatpush1.xpose.msra.mxu0 0.0
    %1497 = vmatprep.subr.mxu0 0.0
    %1498 = vmatpush1.xpose.msra.mxu0 0.0
    %1499 = vmatprep.subr.mxu0 0.0
    %1500 = vmatpush1.xpose.msra.mxu0 0.0
    %1501 = vmatprep.mubr.f32.mxu0 0.0
    %1502 = vmatmul.mubr.f32.gmra.mrb[0].mxu0 %v1433
    %v1503 = vpop.f32.mrb[0].mxu0
    %v1504 = vadd.f32 %v161, %v1503
    %v1505 = vpop.f32.mrb[0].mxu0
    %1506 = vdwg.mxu0
    %1507 = vrot.lane.b32.xlu0 %v1416, 64
    %v1508 = vpop.permute.xlu0 %1507
    %v1509 = vsel %vm313, %v1416, 0
    %v1511 = vsel %vm313, %v1508, 0
    %1513 = vmatprep.subr.mxu0 0.0
    %1514 = vmatpush1.xpose.msra.mxu0 %v1511
    %1515 = vmatprep.subr.mxu0 0.0
    %1516 = vmatpush1.xpose.msra.mxu0 0.0
    %1517 = vmatprep.subr.mxu0 0.0
    %1518 = vmatpush1.xpose.msra.mxu0 0.0
    %1519 = vmatprep.subr.mxu0 0.0
    %1520 = vmatpush1.xpose.msra.mxu0 0.0
    %1521 = vmatprep.subr.mxu0 0.0
    %1522 = vmatpush1.xpose.msra.mxu0 0.0
    %1523 = vmatprep.subr.mxu0 0.0
    %1524 = vmatpush1.xpose.msra.mxu0 0.0
    %1525 = vmatprep.subr.mxu0 0.0
    %1526 = vmatpush1.xpose.msra.mxu0 0.0
    %1527 = vmatprep.subr.mxu0 0.0
    %1528 = vmatpush1.xpose.msra.mxu0 0.0
    %1529 = vmatprep.subr.mxu0 0.0
    %1530 = vmatpush1.xpose.msra.mxu0 0.0
    %1531 = vmatprep.subr.mxu0 0.0
    %1532 = vmatpush1.xpose.msra.mxu0 0.0
    %1533 = vmatprep.subr.mxu0 0.0
    %1534 = vmatpush1.xpose.msra.mxu0 0.0
    %1535 = vmatprep.subr.mxu0 0.0
    %1536 = vmatpush1.xpose.msra.mxu0 0.0
    %1537 = vmatprep.subr.mxu0 0.0
    %1538 = vmatpush1.xpose.msra.mxu0 0.0
    %1539 = vmatprep.subr.mxu0 0.0
    %1540 = vmatpush1.xpose.msra.mxu0 0.0
    %1541 = vmatprep.subr.mxu0 0.0
    %1542 = vmatpush1.xpose.msra.mxu0 0.0
    %1543 = vmatprep.subr.mxu0 0.0
    %1544 = vmatpush1.xpose.msra.mxu0 0.0
    %1545 = vmatprep.subr.mxu0 0.0
    %1546 = vmatpush1.xpose.msra.mxu0 0.0
    %1547 = vmatprep.subr.mxu0 0.0
    %1548 = vmatpush1.xpose.msra.mxu0 0.0
    %1549 = vmatprep.subr.mxu0 0.0
    %1550 = vmatpush1.xpose.msra.mxu0 0.0
    %1551 = vmatprep.subr.mxu0 0.0
    %1552 = vmatpush1.xpose.msra.mxu0 0.0
    %1553 = vmatprep.subr.mxu0 0.0
    %1554 = vmatpush1.xpose.msra.mxu0 0.0
    %1555 = vmatprep.subr.mxu0 0.0
    %1556 = vmatpush1.xpose.msra.mxu0 0.0
    %1557 = vmatprep.subr.mxu0 0.0
    %1558 = vmatpush1.xpose.msra.mxu0 0.0
    %1559 = vmatprep.subr.mxu0 0.0
    %1560 = vmatpush1.xpose.msra.mxu0 0.0
    %1561 = vmatprep.subr.mxu0 0.0
    %1562 = vmatpush1.xpose.msra.mxu0 0.0
    %1563 = vmatprep.subr.mxu0 0.0
    %1564 = vmatpush1.xpose.msra.mxu0 0.0
    %1565 = vmatprep.subr.mxu0 0.0
    %1566 = vmatpush1.xpose.msra.mxu0 0.0
    %1567 = vmatprep.subr.mxu0 0.0
    %1568 = vmatpush1.xpose.msra.mxu0 0.0
    %1569 = vmatprep.subr.mxu0 0.0
    %1570 = vmatpush1.xpose.msra.mxu0 0.0
    %1571 = vmatprep.subr.mxu0 0.0
    %1572 = vmatpush1.xpose.msra.mxu0 0.0
    %1573 = vmatprep.subr.mxu0 0.0
    %1574 = vmatpush1.xpose.msra.mxu0 0.0
    %1575 = vmatprep.subr.mxu0 0.0
    %1576 = vmatpush1.xpose.msra.mxu0 0.0
    %1577 = vmatprep.mubr.f32.mxu0 0.0
    %1578 = vmatmul.mubr.f32.gmra.mrb[0].mxu0 %v1509
    %v1579 = vpop.f32.mrb[0].mxu0
    %v1580 = vadd.f32 %v161, %v1579
    %v1581 = vpop.f32.mrb[0].mxu0
    %1582 = vdwg.mxu0
    %1583 = vrot.lane.b32.xlu0 %v1418, 64
    %v1584 = vpop.permute.xlu0 %1583
    %v1585 = vsel %vm313, %v1418, 0
    %v1587 = vsel %vm313, %v1584, 0
    %1589 = vmatprep.subr.mxu0 0.0
    %1590 = vmatpush1.xpose.msra.mxu0 %v1587
    %1591 = vmatprep.subr.mxu0 0.0
    %1592 = vmatpush1.xpose.msra.mxu0 0.0
    %1593 = vmatprep.subr.mxu0 0.0
    %1594 = vmatpush1.xpose.msra.mxu0 0.0
    %1595 = vmatprep.subr.mxu0 0.0
    %1596 = vmatpush1.xpose.msra.mxu0 0.0
    %1597 = vmatprep.subr.mxu0 0.0
    %1598 = vmatpush1.xpose.msra.mxu0 0.0
    %1599 = vmatprep.subr.mxu0 0.0
    %1600 = vmatpush1.xpose.msra.mxu0 0.0
    %1601 = vmatprep.subr.mxu0 0.0
    %1602 = vmatpush1.xpose.msra.mxu0 0.0
    %1603 = vmatprep.subr.mxu0 0.0
    %1604 = vmatpush1.xpose.msra.mxu0 0.0
    %1605 = vmatprep.subr.mxu0 0.0
    %1606 = vmatpush1.xpose.msra.mxu0 0.0
    %1607 = vmatprep.subr.mxu0 0.0
    %1608 = vmatpush1.xpose.msra.mxu0 0.0
    %1609 = vmatprep.subr.mxu0 0.0
    %1610 = vmatpush1.xpose.msra.mxu0 0.0
    %1611 = vmatprep.subr.mxu0 0.0
    %1612 = vmatpush1.xpose.msra.mxu0 0.0
    %1613 = vmatprep.subr.mxu0 0.0
    %1614 = vmatpush1.xpose.msra.mxu0 0.0
    %1615 = vmatprep.subr.mxu0 0.0
    %1616 = vmatpush1.xpose.msra.mxu0 0.0
    %1617 = vmatprep.subr.mxu0 0.0
    %1618 = vmatpush1.xpose.msra.mxu0 0.0
    %1619 = vmatprep.subr.mxu0 0.0
    %1620 = vmatpush1.xpose.msra.mxu0 0.0
    %1621 = vmatprep.subr.mxu0 0.0
    %1622 = vmatpush1.xpose.msra.mxu0 0.0
    %1623 = vmatprep.subr.mxu0 0.0
    %1624 = vmatpush1.xpose.msra.mxu0 0.0
    %1625 = vmatprep.subr.mxu0 0.0
    %1626 = vmatpush1.xpose.msra.mxu0 0.0
    %1627 = vmatprep.subr.mxu0 0.0
    %1628 = vmatpush1.xpose.msra.mxu0 0.0
    %1629 = vmatprep.subr.mxu0 0.0
    %1630 = vmatpush1.xpose.msra.mxu0 0.0
    %1631 = vmatprep.subr.mxu0 0.0
    %1632 = vmatpush1.xpose.msra.mxu0 0.0
    %1633 = vmatprep.subr.mxu0 0.0
    %1634 = vmatpush1.xpose.msra.mxu0 0.0
    %1635 = vmatprep.subr.mxu0 0.0
    %1636 = vmatpush1.xpose.msra.mxu0 0.0
    %1637 = vmatprep.subr.mxu0 0.0
    %1638 = vmatpush1.xpose.msra.mxu0 0.0
    %1639 = vmatprep.subr.mxu0 0.0
    %1640 = vmatpush1.xpose.msra.mxu0 0.0
    %1641 = vmatprep.subr.mxu0 0.0
    %1642 = vmatpush1.xpose.msra.mxu0 0.0
    %1643 = vmatprep.subr.mxu0 0.0
    %1644 = vmatpush1.xpose.msra.mxu0 0.0
    %1645 = vmatprep.subr.mxu0 0.0
    %1646 = vmatpush1.xpose.msra.mxu0 0.0
    %1647 = vmatprep.subr.mxu0 0.0
    %1648 = vmatpush1.xpose.msra.mxu0 0.0
    %1649 = vmatprep.subr.mxu0 0.0
    %1650 = vmatpush1.xpose.msra.mxu0 0.0
    %1651 = vmatprep.subr.mxu0 0.0
    %1652 = vmatpush1.xpose.msra.mxu0 0.0
    %1653 = vmatprep.mubr.f32.mxu0 0.0
    %1654 = vmatmul.mubr.f32.gmra.mrb[0].mxu0 %v1585
    %v1655 = vpop.f32.mrb[0].mxu0
    %v1656 = vadd.f32 %v161, %v1655
    %v1657 = vpop.f32.mrb[0].mxu0
    %1658 = vdwg.mxu0
    %1659 = vrot.lane.b32.xlu0 %v1420, 64
    %v1660 = vpop.permute.xlu0 %1659
    %v1661 = vsel %vm313, %v1420, 0
    %v1663 = vsel %vm313, %v1660, 0
    %1665 = vmatprep.subr.mxu0 0.0
    %1666 = vmatpush1.xpose.msra.mxu0 %v1663
    %1667 = vmatprep.subr.mxu0 0.0
    %1668 = vmatpush1.xpose.msra.mxu0 0.0
    %1669 = vmatprep.subr.mxu0 0.0
    %1670 = vmatpush1.xpose.msra.mxu0 0.0
    %1671 = vmatprep.subr.mxu0 0.0
    %1672 = vmatpush1.xpose.msra.mxu0 0.0
    %1673 = vmatprep.subr.mxu0 0.0
    %1674 = vmatpush1.xpose.msra.mxu0 0.0
    %1675 = vmatprep.subr.mxu0 0.0
    %1676 = vmatpush1.xpose.msra.mxu0 0.0
    %1677 = vmatprep.subr.mxu0 0.0
    %1678 = vmatpush1.xpose.msra.mxu0 0.0
    %1679 = vmatprep.subr.mxu0 0.0
    %1680 = vmatpush1.xpose.msra.mxu0 0.0
    %1681 = vmatprep.subr.mxu0 0.0
    %1682 = vmatpush1.xpose.msra.mxu0 0.0
    %1683 = vmatprep.subr.mxu0 0.0
    %1684 = vmatpush1.xpose.msra.mxu0 0.0
    %1685 = vmatprep.subr.mxu0 0.0
    %1686 = vmatpush1.xpose.msra.mxu0 0.0
    %1687 = vmatprep.subr.mxu0 0.0
    %1688 = vmatpush1.xpose.msra.mxu0 0.0
    %1689 = vmatprep.subr.mxu0 0.0
    %1690 = vmatpush1.xpose.msra.mxu0 0.0
    %1691 = vmatprep.subr.mxu0 0.0
    %1692 = vmatpush1.xpose.msra.mxu0 0.0
    %1693 = vmatprep.subr.mxu0 0.0
    %1694 = vmatpush1.xpose.msra.mxu0 0.0
    %1695 = vmatprep.subr.mxu0 0.0
    %1696 = vmatpush1.xpose.msra.mxu0 0.0
    %1697 = vmatprep.subr.mxu0 0.0
    %1698 = vmatpush1.xpose.msra.mxu0 0.0
    %1699 = vmatprep.subr.mxu0 0.0
    %1700 = vmatpush1.xpose.msra.mxu0 0.0
    %1701 = vmatprep.subr.mxu0 0.0
    %1702 = vmatpush1.xpose.msra.mxu0 0.0
    %1703 = vmatprep.subr.mxu0 0.0
    %1704 = vmatpush1.xpose.msra.mxu0 0.0
    %1705 = vmatprep.subr.mxu0 0.0
    %1706 = vmatpush1.xpose.msra.mxu0 0.0
    %1707 = vmatprep.subr.mxu0 0.0
    %1708 = vmatpush1.xpose.msra.mxu0 0.0
    %1709 = vmatprep.subr.mxu0 0.0
    %1710 = vmatpush1.xpose.msra.mxu0 0.0
    %1711 = vmatprep.subr.mxu0 0.0
    %1712 = vmatpush1.xpose.msra.mxu0 0.0
    %1713 = vmatprep.subr.mxu0 0.0
    %1714 = vmatpush1.xpose.msra.mxu0 0.0
    %1715 = vmatprep.subr.mxu0 0.0
    %1716 = vmatpush1.xpose.msra.mxu0 0.0
    %1717 = vmatprep.subr.mxu0 0.0
    %1718 = vmatpush1.xpose.msra.mxu0 0.0
    %1719 = vmatprep.subr.mxu0 0.0
    %1720 = vmatpush1.xpose.msra.mxu0 0.0
    %1721 = vmatprep.subr.mxu0 0.0
    %1722 = vmatpush1.xpose.msra.mxu0 0.0
    %1723 = vmatprep.subr.mxu0 0.0
    %1724 = vmatpush1.xpose.msra.mxu0 0.0
    %1725 = vmatprep.subr.mxu0 0.0
    %1726 = vmatpush1.xpose.msra.mxu0 0.0
    %1727 = vmatprep.subr.mxu0 0.0
    %1728 = vmatpush1.xpose.msra.mxu0 0.0
    %1729 = vmatprep.mubr.f32.mxu0 0.0
    %1730 = vmatmul.mubr.f32.gmra.mrb[0].mxu0 %v1661
    %v1731 = vpop.f32.mrb[0].mxu0
    %v1732 = vadd.f32 %v161, %v1731
    %v1733 = vpop.f32.mrb[0].mxu0
    %1734 = vdwg.mxu0
    %v1735 = vsel %vm616, %v1504, -inf
    %1736 = vmax.xlane.f32.xlu0 %v1735
    %v1737 = vpop.xlane.xlu0 %1736
    %v1738 = vsel %vm616, %v1580, -inf
    %1739 = vmax.xlane.f32.xlu0 %v1738
    %v1740 = vpop.xlane.xlu0 %1739
    %v1741 = vsel %vm616, %v1656, -inf
    %1742 = vmax.xlane.f32.xlu0 %v1741
    %v1743 = vpop.xlane.xlu0 %1742
    %v1744 = vsel %vm616, %v1732, -inf
    %1745 = vmax.xlane.f32.xlu0 %v1744
    %v1746 = vpop.xlane.xlu0 %1745
    %v1747 = vsub.f32 %v1504, %v1737
    %v1748 = vsub.f32 %v1580, %v1740
    %v1749 = vsub.f32 %v1656, %v1743
    %v1750 = vsub.f32 %v1732, %v1746
    %v1751 = vmul.f32 %v1747, 1.442695
    %v1752 = vpow.pop %v1751
    %v1753 = vmul.f32 %v1748, 1.442695
    %v1754 = vpow.pop %v1753
    %v1755 = vmul.f32 %v1749, 1.442695
    %v1756 = vpow.pop %v1755
    %v1757 = vmul.f32 %v1750, 1.442695
    %v1758 = vpow.pop %v1757
    %v1759 = vsel %vm616, %v1752, 0.0
    %1760 = vadd.xlane.f32.xlu0 %v1759
    %v1761 = vpop.xlane.xlu0 %1760
    %v1762 = vsel %vm616, %v1754, 0.0
    %1763 = vadd.xlane.f32.xlu0 %v1762
    %v1764 = vpop.xlane.xlu0 %1763
    %v1765 = vsel %vm616, %v1756, 0.0
    %1766 = vadd.xlane.f32.xlu0 %v1765
    %v1767 = vpop.xlane.xlu0 %1766
    %v1768 = vsel %vm616, %v1758, 0.0
    %1769 = vadd.xlane.f32.xlu0 %v1768
    %v1770 = vpop.xlane.xlu0 %1769
    %v1771 = vrcp.pop %v1761
    %v1772 = vrcp.pop %v1764
    %v1773 = vrcp.pop %v1767
    %v1774 = vrcp.pop %v1770
    %v1775 = vmul.f32 %v1752, %v1771
    %v1776 = vmul.f32 %v1754, %v1772
    %v1777 = vmul.f32 %v1756, %v1773
    %v1778 = vmul.f32 %v1758, %v1774
    %v1780 = vsel %vm616, %v1775, 0
    %1782 = vmatprep.subr.mxu0 0.0
    %1783 = vmatpush1.msra.mxu0 %v1412
    %1784 = vmatprep.subr.mxu0 0.0
    %1785 = vmatpush1.msra.mxu0 0.0
    %1786 = vmatprep.subr.mxu0 0.0
    %1787 = vmatpush1.msra.mxu0 0.0
    %1788 = vmatprep.subr.mxu0 0.0
    %1789 = vmatpush1.msra.mxu0 0.0
    %1790 = vmatprep.subr.mxu0 0.0
    %1791 = vmatpush1.msra.mxu0 0.0
    %1792 = vmatprep.subr.mxu0 0.0
    %1793 = vmatpush1.msra.mxu0 0.0
    %1794 = vmatprep.subr.mxu0 0.0
    %1795 = vmatpush1.msra.mxu0 0.0
    %1796 = vmatprep.subr.mxu0 0.0
    %1797 = vmatpush1.msra.mxu0 0.0
    %1798 = vmatprep.subr.mxu0 0.0
    %1799 = vmatpush1.msra.mxu0 0.0
    %1800 = vmatprep.subr.mxu0 0.0
    %1801 = vmatpush1.msra.mxu0 0.0
    %1802 = vmatprep.subr.mxu0 0.0
    %1803 = vmatpush1.msra.mxu0 0.0
    %1804 = vmatprep.subr.mxu0 0.0
    %1805 = vmatpush1.msra.mxu0 0.0
    %1806 = vmatprep.subr.mxu0 0.0
    %1807 = vmatpush1.msra.mxu0 0.0
    %1808 = vmatprep.subr.mxu0 0.0
    %1809 = vmatpush1.msra.mxu0 0.0
    %1810 = vmatprep.subr.mxu0 0.0
    %1811 = vmatpush1.msra.mxu0 0.0
    %1812 = vmatprep.subr.mxu0 0.0
    %1813 = vmatpush1.msra.mxu0 0.0
    %1814 = vmatprep.subr.mxu0 0.0
    %1815 = vmatpush1.msra.mxu0 0.0
    %1816 = vmatprep.subr.mxu0 0.0
    %1817 = vmatpush1.msra.mxu0 0.0
    %1818 = vmatprep.subr.mxu0 0.0
    %1819 = vmatpush1.msra.mxu0 0.0
    %1820 = vmatprep.subr.mxu0 0.0
    %1821 = vmatpush1.msra.mxu0 0.0
    %1822 = vmatprep.subr.mxu0 0.0
    %1823 = vmatpush1.msra.mxu0 0.0
    %1824 = vmatprep.subr.mxu0 0.0
    %1825 = vmatpush1.msra.mxu0 0.0
    %1826 = vmatprep.subr.mxu0 0.0
    %1827 = vmatpush1.msra.mxu0 0.0
    %1828 = vmatprep.subr.mxu0 0.0
    %1829 = vmatpush1.msra.mxu0 0.0
    %1830 = vmatprep.subr.mxu0 0.0
    %1831 = vmatpush1.msra.mxu0 0.0
    %1832 = vmatprep.subr.mxu0 0.0
    %1833 = vmatpush1.msra.mxu0 0.0
    %1834 = vmatprep.subr.mxu0 0.0
    %1835 = vmatpush1.msra.mxu0 0.0
    %1836 = vmatprep.subr.mxu0 0.0
    %1837 = vmatpush1.msra.mxu0 0.0
    %1838 = vmatprep.subr.mxu0 0.0
    %1839 = vmatpush1.msra.mxu0 0.0
    %1840 = vmatprep.subr.mxu0 0.0
    %1841 = vmatpush1.msra.mxu0 0.0
    %1842 = vmatprep.subr.mxu0 0.0
    %1843 = vmatpush1.msra.mxu0 0.0
    %1844 = vmatprep.subr.mxu0 0.0
    %1845 = vmatpush1.msra.mxu0 0.0
    %1846 = vmatprep.mubr.f32.mxu0 0.0
    %1847 = vmatmul.mubr.f32.gmra.mrb[0].mxu0 %v1780
    %v1848 = vpop.f32.mrb[0].mxu0
    %v1849 = vadd.f32 0.0, %v1848
    %v1850 = vpop.f32.mrb[0].mxu0
    %1851 = vdwg.mxu0
    %v1853 = vsel %vm616, %v1776, 0
    %1855 = vmatprep.subr.mxu0 0.0
    %1856 = vmatpush1.msra.mxu0 %v1423
    %1857 = vmatprep.subr.mxu0 0.0
    %1858 = vmatpush1.msra.mxu0 0.0
    %1859 = vmatprep.subr.mxu0 0.0
    %1860 = vmatpush1.msra.mxu0 0.0
    %1861 = vmatprep.subr.mxu0 0.0
    %1862 = vmatpush1.msra.mxu0 0.0
    %1863 = vmatprep.subr.mxu0 0.0
    %1864 = vmatpush1.msra.mxu0 0.0
    %1865 = vmatprep.subr.mxu0 0.0
    %1866 = vmatpush1.msra.mxu0 0.0
    %1867 = vmatprep.subr.mxu0 0.0
    %1868 = vmatpush1.msra.mxu0 0.0
    %1869 = vmatprep.subr.mxu0 0.0
    %1870 = vmatpush1.msra.mxu0 0.0
    %1871 = vmatprep.subr.mxu0 0.0
    %1872 = vmatpush1.msra.mxu0 0.0
    %1873 = vmatprep.subr.mxu0 0.0
    %1874 = vmatpush1.msra.mxu0 0.0
    %1875 = vmatprep.subr.mxu0 0.0
    %1876 = vmatpush1.msra.mxu0 0.0
    %1877 = vmatprep.subr.mxu0 0.0
    %1878 = vmatpush1.msra.mxu0 0.0
    %1879 = vmatprep.subr.mxu0 0.0
    %1880 = vmatpush1.msra.mxu0 0.0
    %1881 = vmatprep.subr.mxu0 0.0
    %1882 = vmatpush1.msra.mxu0 0.0
    %1883 = vmatprep.subr.mxu0 0.0
    %1884 = vmatpush1.msra.mxu0 0.0
    %1885 = vmatprep.subr.mxu0 0.0
    %1886 = vmatpush1.msra.mxu0 0.0
    %1887 = vmatprep.subr.mxu0 0.0
    %1888 = vmatpush1.msra.mxu0 0.0
    %1889 = vmatprep.subr.mxu0 0.0
    %1890 = vmatpush1.msra.mxu0 0.0
    %1891 = vmatprep.subr.mxu0 0.0
    %1892 = vmatpush1.msra.mxu0 0.0
    %1893 = vmatprep.subr.mxu0 0.0
    %1894 = vmatpush1.msra.mxu0 0.0
    %1895 = vmatprep.subr.mxu0 0.0
    %1896 = vmatpush1.msra.mxu0 0.0
    %1897 = vmatprep.subr.mxu0 0.0
    %1898 = vmatpush1.msra.mxu0 0.0
    %1899 = vmatprep.subr.mxu0 0.0
    %1900 = vmatpush1.msra.mxu0 0.0
    %1901 = vmatprep.subr.mxu0 0.0
    %1902 = vmatpush1.msra.mxu0 0.0
    %1903 = vmatprep.subr.mxu0 0.0
    %1904 = vmatpush1.msra.mxu0 0.0
    %1905 = vmatprep.subr.mxu0 0.0
    %1906 = vmatpush1.msra.mxu0 0.0
    %1907 = vmatprep.subr.mxu0 0.0
    %1908 = vmatpush1.msra.mxu0 0.0
    %1909 = vmatprep.subr.mxu0 0.0
    %1910 = vmatpush1.msra.mxu0 0.0
    %1911 = vmatprep.subr.mxu0 0.0
    %1912 = vmatpush1.msra.mxu0 0.0
    %1913 = vmatprep.subr.mxu0 0.0
    %1914 = vmatpush1.msra.mxu0 0.0
    %1915 = vmatprep.subr.mxu0 0.0
    %1916 = vmatpush1.msra.mxu0 0.0
    %1917 = vmatprep.subr.mxu0 0.0
    %1918 = vmatpush1.msra.mxu0 0.0
    %1919 = vmatprep.mubr.f32.mxu0 0.0
    %1920 = vmatmul.mubr.f32.gmra.mrb[0].mxu0 %v1853
    %v1921 = vpop.f32.mrb[0].mxu0
    %v1922 = vadd.f32 0.0, %v1921
    %v1923 = vpop.f32.mrb[0].mxu0
    %1924 = vdwg.mxu0
    %v1926 = vsel %vm616, %v1777, 0
    %1928 = vmatprep.subr.mxu0 0.0
    %1929 = vmatpush1.msra.mxu0 %v1426
    %1930 = vmatprep.subr.mxu0 0.0
    %1931 = vmatpush1.msra.mxu0 0.0
    %1932 = vmatprep.subr.mxu0 0.0
    %1933 = vmatpush1.msra.mxu0 0.0
    %1934 = vmatprep.subr.mxu0 0.0
    %1935 = vmatpush1.msra.mxu0 0.0
    %1936 = vmatprep.subr.mxu0 0.0
    %1937 = vmatpush1.msra.mxu0 0.0
    %1938 = vmatprep.subr.mxu0 0.0
    %1939 = vmatpush1.msra.mxu0 0.0
    %1940 = vmatprep.subr.mxu0 0.0
    %1941 = vmatpush1.msra.mxu0 0.0
    %1942 = vmatprep.subr.mxu0 0.0
    %1943 = vmatpush1.msra.mxu0 0.0
    %1944 = vmatprep.subr.mxu0 0.0
    %1945 = vmatpush1.msra.mxu0 0.0
    %1946 = vmatprep.subr.mxu0 0.0
    %1947 = vmatpush1.msra.mxu0 0.0
    %1948 = vmatprep.subr.mxu0 0.0
    %1949 = vmatpush1.msra.mxu0 0.0
    %1950 = vmatprep.subr.mxu0 0.0
    %1951 = vmatpush1.msra.mxu0 0.0
    %1952 = vmatprep.subr.mxu0 0.0
    %1953 = vmatpush1.msra.mxu0 0.0
    %1954 = vmatprep.subr.mxu0 0.0
    %1955 = vmatpush1.msra.mxu0 0.0
    %1956 = vmatprep.subr.mxu0 0.0
    %1957 = vmatpush1.msra.mxu0 0.0
    %1958 = vmatprep.subr.mxu0 0.0
    %1959 = vmatpush1.msra.mxu0 0.0
    %1960 = vmatprep.subr.mxu0 0.0
    %1961 = vmatpush1.msra.mxu0 0.0
    %1962 = vmatprep.subr.mxu0 0.0
    %1963 = vmatpush1.msra.mxu0 0.0
    %1964 = vmatprep.subr.mxu0 0.0
    %1965 = vmatpush1.msra.mxu0 0.0
    %1966 = vmatprep.subr.mxu0 0.0
    %1967 = vmatpush1.msra.mxu0 0.0
    %1968 = vmatprep.subr.mxu0 0.0
    %1969 = vmatpush1.msra.mxu0 0.0
    %1970 = vmatprep.subr.mxu0 0.0
    %1971 = vmatpush1.msra.mxu0 0.0
    %1972 = vmatprep.subr.mxu0 0.0
    %1973 = vmatpush1.msra.mxu0 0.0
    %1974 = vmatprep.subr.mxu0 0.0
    %1975 = vmatpush1.msra.mxu0 0.0
    %1976 = vmatprep.subr.mxu0 0.0
    %1977 = vmatpush1.msra.mxu0 0.0
    %1978 = vmatprep.subr.mxu0 0.0
    %1979 = vmatpush1.msra.mxu0 0.0
    %1980 = vmatprep.subr.mxu0 0.0
    %1981 = vmatpush1.msra.mxu0 0.0
    %1982 = vmatprep.subr.mxu0 0.0
    %1983 = vmatpush1.msra.mxu0 0.0
    %1984 = vmatprep.subr.mxu0 0.0
    %1985 = vmatpush1.msra.mxu0 0.0
    %1986 = vmatprep.subr.mxu0 0.0
    %1987 = vmatpush1.msra.mxu0 0.0
    %1988 = vmatprep.subr.mxu0 0.0
    %1989 = vmatpush1.msra.mxu0 0.0
    %1990 = vmatprep.subr.mxu0 0.0
    %1991 = vmatpush1.msra.mxu0 0.0
    %1992 = vmatprep.mubr.f32.mxu0 0.0
    %1993 = vmatmul.mubr.f32.gmra.mrb[0].mxu0 %v1926
    %v1994 = vpop.f32.mrb[0].mxu0
    %v1995 = vadd.f32 0.0, %v1994
    %v1996 = vpop.f32.mrb[0].mxu0
    %1997 = vdwg.mxu0
    %v1999 = vsel %vm616, %v1778, 0
    %2001 = vmatprep.subr.mxu0 0.0
    %2002 = vmatpush1.msra.mxu0 %v1429
    %2003 = vmatprep.subr.mxu0 0.0
    %2004 = vmatpush1.msra.mxu0 0.0
    %2005 = vmatprep.subr.mxu0 0.0
    %2006 = vmatpush1.msra.mxu0 0.0
    %2007 = vmatprep.subr.mxu0 0.0
    %2008 = vmatpush1.msra.mxu0 0.0
    %2009 = vmatprep.subr.mxu0 0.0
    %2010 = vmatpush1.msra.mxu0 0.0
    %2011 = vmatprep.subr.mxu0 0.0
    %2012 = vmatpush1.msra.mxu0 0.0
    %2013 = vmatprep.subr.mxu0 0.0
    %2014 = vmatpush1.msra.mxu0 0.0
    %2015 = vmatprep.subr.mxu0 0.0
    %2016 = vmatpush1.msra.mxu0 0.0
    %2017 = vmatprep.subr.mxu0 0.0
    %2018 = vmatpush1.msra.mxu0 0.0
    %2019 = vmatprep.subr.mxu0 0.0
    %2020 = vmatpush1.msra.mxu0 0.0
    %2021 = vmatprep.subr.mxu0 0.0
    %2022 = vmatpush1.msra.mxu0 0.0
    %2023 = vmatprep.subr.mxu0 0.0
    %2024 = vmatpush1.msra.mxu0 0.0
    %2025 = vmatprep.subr.mxu0 0.0
    %2026 = vmatpush1.msra.mxu0 0.0
    %2027 = vmatprep.subr.mxu0 0.0
    %2028 = vmatpush1.msra.mxu0 0.0
    %2029 = vmatprep.subr.mxu0 0.0
    %2030 = vmatpush1.msra.mxu0 0.0
    %2031 = vmatprep.subr.mxu0 0.0
    %2032 = vmatpush1.msra.mxu0 0.0
    %2033 = vmatprep.subr.mxu0 0.0
    %2034 = vmatpush1.msra.mxu0 0.0
    %2035 = vmatprep.subr.mxu0 0.0
    %2036 = vmatpush1.msra.mxu0 0.0
    %2037 = vmatprep.subr.mxu0 0.0
    %2038 = vmatpush1.msra.mxu0 0.0
    %2039 = vmatprep.subr.mxu0 0.0
    %2040 = vmatpush1.msra.mxu0 0.0
    %2041 = vmatprep.subr.mxu0 0.0
    %2042 = vmatpush1.msra.mxu0 0.0
    %2043 = vmatprep.subr.mxu0 0.0
    %2044 = vmatpush1.msra.mxu0 0.0
    %2045 = vmatprep.subr.mxu0 0.0
    %2046 = vmatpush1.msra.mxu0 0.0
    %2047 = vmatprep.subr.mxu0 0.0
    %2048 = vmatpush1.msra.mxu0 0.0
    %2049 = vmatprep.subr.mxu0 0.0
    %2050 = vmatpush1.msra.mxu0 0.0
    %2051 = vmatprep.subr.mxu0 0.0
    %2052 = vmatpush1.msra.mxu0 0.0
    %2053 = vmatprep.subr.mxu0 0.0
    %2054 = vmatpush1.msra.mxu0 0.0
    %2055 = vmatprep.subr.mxu0 0.0
    %2056 = vmatpush1.msra.mxu0 0.0
    %2057 = vmatprep.subr.mxu0 0.0
    %2058 = vmatpush1.msra.mxu0 0.0
    %2059 = vmatprep.subr.mxu0 0.0
    %2060 = vmatpush1.msra.mxu0 0.0
    %2061 = vmatprep.subr.mxu0 0.0
    %2062 = vmatpush1.msra.mxu0 0.0
    %2063 = vmatprep.subr.mxu0 0.0
    %2064 = vmatpush1.msra.mxu0 0.0
    %2065 = vmatprep.mubr.f32.mxu0 0.0
    %2066 = vmatmul.mubr.f32.gmra.mrb[0].mxu0 %v1999
    %v2067 = vpop.f32.mrb[0].mxu0
    %v2068 = vadd.f32 0.0, %v2067
    %v2069 = vpop.f32.mrb[0].mxu0
    %2070 = vdwg.mxu0
    %2072 = vrot.lane.b32.xlu0 %v1922, 16
    %v2073 = vpop.permute.xlu0 %2072
    %2076 = vrot.lane.b32.xlu0 %v1995, 32
    %v2077 = vpop.permute.xlu0 %2076
    %2080 = vrot.lane.b32.xlu0 %v2068, 48
    %v2081 = vpop.permute.xlu0 %2080
    %v2083 = vsel %vm313, %v1849, %v2073
    %v2084 = vsel %vm966, %v2083, %v2077
    %v2085 = vsel %vm968, %v2084, %v2081
    %s2086 = scalar_lea.vmem %s8, 64
    %v2087 = vld [vmem:[%s2086] sm:$0xff]
    %v2088 = vld [vmem:[%s2086 + $0x8] sm:$0xff]
    %v2089 = vld [vmem:[%s2086 + $0x10] sm:$0xff]
    %v2090 = vld [vmem:[%s2086 + $0x18] sm:$0xff]
    %v2091 = vld [vmem:[%s2086 + $0x20] sm:$0xff]
    %v2092 = vld [vmem:[%s2086 + $0x28] sm:$0xff]
    %v2093 = vld [vmem:[%s2086 + $0x30] sm:$0xff]
    %v2094 = vld [vmem:[%s2086 + $0x38] sm:$0xff]
    %s2095 = scalar_lea.vmem %s9, 1
    %v2096 = vld [vmem:[%s2095] sm:$0x1]
    %v2098 = vlaneseq
    %v2099 = vshrl.u32 %v2098, 7
    %v2100 = vsub.s32 0, %v2099
    %v2101 = vrot.slane %v2096, %v2100
    %v2104 = vsel %vm87, %v2085, 0
    %2106 = vmatprep.subr.mxu0 0.0
    %2107 = vmatpush1.msra.mxu0 %v2087
    %2108 = vmatprep.subr.mxu0 0.0
    %2109 = vmatpush1.msra.mxu0 %v2088
    %2110 = vmatprep.subr.mxu0 0.0
    %2111 = vmatpush1.msra.mxu0 %v2089
    %2112 = vmatprep.subr.mxu0 0.0
    %2113 = vmatpush1.msra.mxu0 %v2090
    %2114 = vmatprep.subr.mxu0 0.0
    %2115 = vmatpush1.msra.mxu0 %v2091
    %2116 = vmatprep.subr.mxu0 0.0
    %2117 = vmatpush1.msra.mxu0 %v2092
    %2118 = vmatprep.subr.mxu0 0.0
    %2119 = vmatpush1.msra.mxu0 %v2093
    %2120 = vmatprep.subr.mxu0 0.0
    %2121 = vmatpush1.msra.mxu0 %v2094
    %2122 = vmatprep.subr.mxu0 0.0
    %2123 = vmatpush1.msra.mxu0 0.0
    %2124 = vmatprep.subr.mxu0 0.0
    %2125 = vmatpush1.msra.mxu0 0.0
    %2126 = vmatprep.subr.mxu0 0.0
    %2127 = vmatpush1.msra.mxu0 0.0
    %2128 = vmatprep.subr.mxu0 0.0
    %2129 = vmatpush1.msra.mxu0 0.0
    %2130 = vmatprep.subr.mxu0 0.0
    %2131 = vmatpush1.msra.mxu0 0.0
    %2132 = vmatprep.subr.mxu0 0.0
    %2133 = vmatpush1.msra.mxu0 0.0
    %2134 = vmatprep.subr.mxu0 0.0
    %2135 = vmatpush1.msra.mxu0 0.0
    %2136 = vmatprep.subr.mxu0 0.0
    %2137 = vmatpush1.msra.mxu0 0.0
    %2138 = vmatprep.subr.mxu0 0.0
    %2139 = vmatpush1.msra.mxu0 0.0
    %2140 = vmatprep.subr.mxu0 0.0
    %2141 = vmatpush1.msra.mxu0 0.0
    %2142 = vmatprep.subr.mxu0 0.0
    %2143 = vmatpush1.msra.mxu0 0.0
    %2144 = vmatprep.subr.mxu0 0.0
    %2145 = vmatpush1.msra.mxu0 0.0
    %2146 = vmatprep.subr.mxu0 0.0
    %2147 = vmatpush1.msra.mxu0 0.0
    %2148 = vmatprep.subr.mxu0 0.0
    %2149 = vmatpush1.msra.mxu0 0.0
    %2150 = vmatprep.subr.mxu0 0.0
    %2151 = vmatpush1.msra.mxu0 0.0
    %2152 = vmatprep.subr.mxu0 0.0
    %2153 = vmatpush1.msra.mxu0 0.0
    %2154 = vmatprep.subr.mxu0 0.0
    %2155 = vmatpush1.msra.mxu0 0.0
    %2156 = vmatprep.subr.mxu0 0.0
    %2157 = vmatpush1.msra.mxu0 0.0
    %2158 = vmatprep.subr.mxu0 0.0
    %2159 = vmatpush1.msra.mxu0 0.0
    %2160 = vmatprep.subr.mxu0 0.0
    %2161 = vmatpush1.msra.mxu0 0.0
    %2162 = vmatprep.subr.mxu0 0.0
    %2163 = vmatpush1.msra.mxu0 0.0
    %2164 = vmatprep.subr.mxu0 0.0
    %2165 = vmatpush1.msra.mxu0 0.0
    %2166 = vmatprep.subr.mxu0 0.0
    %2167 = vmatpush1.msra.mxu0 0.0
    %2168 = vmatprep.subr.mxu0 0.0
    %2169 = vmatpush1.msra.mxu0 0.0
    %2170 = vmatprep.mubr.f32.mxu0 0.0
    %2171 = vmatmul.mubr.f32.gmra.mrb[0].mxu0 %v2104
    %v2172 = vpop.f32.mrb[0].mxu0
    %v2173 = vadd.f32 %v2101, %v2172
    %v2174 = vpop.f32.mrb[0].mxu0
    %2175 = vdwg.mxu0
    %v2176 = vadd.f32 %v1278, %v2173
    %s2177 = scalar_lea.vmem %s10, 1
    %v2178 = vld [vmem:[%s2177] sm:$0x1]
    %s2179 = scalar_lea.vmem %s11, 1
    %v2180 = vld [vmem:[%s2179] sm:$0x1]
    %v2181 = vsel %vm87, %v2176, 0.0
    %2182 = vadd.xlane.f32.xlu0 %v2181
    %v2183 = vpop.xlane.xlu0 %2182
    %v2184 = vmul.f32 %v2183, %v167
    %v2185 = vsub.f32 %v2176, %v2184
    %v2186 = vmul.f32 %v2185, %v2185
    %v2187 = vsel %vm87, %v2186, 0.0
    %2188 = vadd.xlane.f32.xlu0 %v2187
    %v2189 = vpop.xlane.xlu0 %2188
    %v2190 = vmul.f32 %v2189, %v167
    %v2191 = vadd.f32 %v2190, 1e-06
    %v2192 = vrsqrt.pop %v2191
    %v2193 = vmul.f32 %v2185, %v2192
    %v2195 = vlaneseq
    %v2196 = vshrl.u32 %v2195, 7
    %v2197 = vsub.s32 0, %v2196
    %v2198 = vrot.slane %v2178, %v2197
    %v2200 = vmul.f32 %v2193, %v2198
    %v2202 = vlaneseq
    %v2203 = vshrl.u32 %v2202, 7
    %v2204 = vsub.s32 0, %v2203
    %v2205 = vrot.slane %v2180, %v2204
    %v2207 = vadd.f32 %v2200, %v2205
    %s2208 = scalar_lea.vmem %s12, 64
    %v2209 = vld [vmem:[%s2208] sm:$0xff]
    %v2210 = vld [vmem:[%s2208 + $0x8] sm:$0xff]
    %v2211 = vld [vmem:[%s2208 + $0x10] sm:$0xff]
    %v2212 = vld [vmem:[%s2208 + $0x18] sm:$0xff]
    %v2213 = vld [vmem:[%s2208 + $0x20] sm:$0xff]
    %v2214 = vld [vmem:[%s2208 + $0x28] sm:$0xff]
    %v2215 = vld [vmem:[%s2208 + $0x30] sm:$0xff]
    %v2216 = vld [vmem:[%s2208 + $0x38] sm:$0xff]
    %s2217 = scalar_lea.vmem %s13, 1
    %v2218 = vld [vmem:[%s2217] sm:$0x1]
    %v2220 = vlaneseq
    %v2221 = vshrl.u32 %v2220, 7
    %v2222 = vsub.s32 0, %v2221
    %v2223 = vrot.slane %v2218, %v2222
    %v2226 = vsel %vm87, %v2207, 0
    %2228 = vmatprep.subr.mxu0 0.0
    %2229 = vmatpush1.msra.mxu0 %v2209
    %2230 = vmatprep.subr.mxu0 0.0
    %2231 = vmatpush1.msra.mxu0 %v2210
    %2232 = vmatprep.subr.mxu0 0.0
    %2233 = vmatpush1.msra.mxu0 %v2211
    %2234 = vmatprep.subr.mxu0 0.0
    %2235 = vmatpush1.msra.mxu0 %v2212
    %2236 = vmatprep.subr.mxu0 0.0
    %2237 = vmatpush1.msra.mxu0 %v2213
    %2238 = vmatprep.subr.mxu0 0.0
    %2239 = vmatpush1.msra.mxu0 %v2214
    %2240 = vmatprep.subr.mxu0 0.0
    %2241 = vmatpush1.msra.mxu0 %v2215
    %2242 = vmatprep.subr.mxu0 0.0
    %2243 = vmatpush1.msra.mxu0 %v2216
    %2244 = vmatprep.subr.mxu0 0.0
    %2245 = vmatpush1.msra.mxu0 0.0
    %2246 = vmatprep.subr.mxu0 0.0
    %2247 = vmatpush1.msra.mxu0 0.0
    %2248 = vmatprep.subr.mxu0 0.0
    %2249 = vmatpush1.msra.mxu0 0.0
    %2250 = vmatprep.subr.mxu0 0.0
    %2251 = vmatpush1.msra.mxu0 0.0
    %2252 = vmatprep.subr.mxu0 0.0
    %2253 = vmatpush1.msra.mxu0 0.0
    %2254 = vmatprep.subr.mxu0 0.0
    %2255 = vmatpush1.msra.mxu0 0.0
    %2256 = vmatprep.subr.mxu0 0.0
    %2257 = vmatpush1.msra.mxu0 0.0
    %2258 = vmatprep.subr.mxu0 0.0
    %2259 = vmatpush1.msra.mxu0 0.0
    %2260 = vmatprep.subr.mxu0 0.0
    %2261 = vmatpush1.msra.mxu0 0.0
    %2262 = vmatprep.subr.mxu0 0.0
    %2263 = vmatpush1.msra.mxu0 0.0
    %2264 = vmatprep.subr.mxu0 0.0
    %2265 = vmatpush1.msra.mxu0 0.0
    %2266 = vmatprep.subr.mxu0 0.0
    %2267 = vmatpush1.msra.mxu0 0.0
    %2268 = vmatprep.subr.mxu0 0.0
    %2269 = vmatpush1.msra.mxu0 0.0
    %2270 = vmatprep.subr.mxu0 0.0
    %2271 = vmatpush1.msra.mxu0 0.0
    %2272 = vmatprep.subr.mxu0 0.0
    %2273 = vmatpush1.msra.mxu0 0.0
    %2274 = vmatprep.subr.mxu0 0.0
    %2275 = vmatpush1.msra.mxu0 0.0
    %2276 = vmatprep.subr.mxu0 0.0
    %2277 = vmatpush1.msra.mxu0 0.0
    %2278 = vmatprep.subr.mxu0 0.0
    %2279 = vmatpush1.msra.mxu0 0.0
    %2280 = vmatprep.subr.mxu0 0.0
    %2281 = vmatpush1.msra.mxu0 0.0
    %2282 = vmatprep.subr.mxu0 0.0
    %2283 = vmatpush1.msra.mxu0 0.0
    %2284 = vmatprep.subr.mxu0 0.0
    %2285 = vmatpush1.msra.mxu0 0.0
    %2286 = vmatprep.subr.mxu0 0.0
    %2287 = vmatpush1.msra.mxu0 0.0
    %2288 = vmatprep.subr.mxu0 0.0
    %2289 = vmatpush1.msra.mxu0 0.0
    %2290 = vmatprep.subr.mxu0 0.0
    %2291 = vmatpush1.msra.mxu0 0.0
    %2292 = vmatprep.mubr.f32.mxu0 0.0
    %2293 = vmatmul.mubr.f32.gmra.mrb[0].mxu0 %v2226
    %v2294 = vpop.f32.mrb[0].mxu0
    %v2295 = vadd.f32 %v2223, %v2294
    %v2296 = vpop.f32.mrb[0].mxu0
    %2297 = vdwg.mxu0
    %v2298 = vmul.f32 %v2295, 0.5
    %v2299 = vmul.f32 %v2295, 0.044715
    %v2300 = vmul.f32 %v2299, %v2295
    %v2301 = vmul.f32 %v2300, %v2295
    %v2302 = vadd.f32 %v2295, %v2301
    %v2303 = vmul.f32 %v2302, 0.7978846
    %v2304 = vtanh.pop %v2303
    %v2305 = vadd.f32 %v2304, 1.0
    %v2306 = vmul.f32 %v2298, %v2305
    %s2307 = scalar_lea.vmem %s14, 128
    %v2308 = vld [vmem:[%s2307] sm:$0xff]
    %v2309 = vld [vmem:[%s2307 + $0x8] sm:$0xff]
    %v2310 = vld [vmem:[%s2307 + $0x10] sm:$0xff]
    %v2311 = vld [vmem:[%s2307 + $0x18] sm:$0xff]
    %v2312 = vld [vmem:[%s2307 + $0x20] sm:$0xff]
    %v2313 = vld [vmem:[%s2307 + $0x28] sm:$0xff]
    %v2314 = vld [vmem:[%s2307 + $0x30] sm:$0xff]
    %v2315 = vld [vmem:[%s2307 + $0x38] sm:$0xff]
    %v2316 = vld [vmem:[%s2307 + $0x40] sm:$0xff]
    %v2317 = vld [vmem:[%s2307 + $0x48] sm:$0xff]
    %v2318 = vld [vmem:[%s2307 + $0x50] sm:$0xff]
    %v2319 = vld [vmem:[%s2307 + $0x58] sm:$0xff]
    %v2320 = vld [vmem:[%s2307 + $0x60] sm:$0xff]
    %v2321 = vld [vmem:[%s2307 + $0x68] sm:$0xff]
    %v2322 = vld [vmem:[%s2307 + $0x70] sm:$0xff]
    %v2323 = vld [vmem:[%s2307 + $0x78] sm:$0xff]
    %s2324 = scalar_lea.vmem %s15, 1
    %v2325 = vld [vmem:[%s2324] sm:$0x1]
    %v2327 = vlaneseq
    %v2328 = vshrl.u32 %v2327, 7
    %v2329 = vsub.s32 0, %v2328
    %v2330 = vrot.slane %v2325, %v2329
    %2332 = vmatprep.subr.mxu0 0.0
    %2333 = vmatpush1.msra.mxu0 %v2308
    %2334 = vmatprep.subr.mxu0 0.0
    %2335 = vmatpush1.msra.mxu0 %v2309
    %2336 = vmatprep.subr.mxu0 0.0
    %2337 = vmatpush1.msra.mxu0 %v2310
    %2338 = vmatprep.subr.mxu0 0.0
    %2339 = vmatpush1.msra.mxu0 %v2311
    %2340 = vmatprep.subr.mxu0 0.0
    %2341 = vmatpush1.msra.mxu0 %v2312
    %2342 = vmatprep.subr.mxu0 0.0
    %2343 = vmatpush1.msra.mxu0 %v2313
    %2344 = vmatprep.subr.mxu0 0.0
    %2345 = vmatpush1.msra.mxu0 %v2314
    %2346 = vmatprep.subr.mxu0 0.0
    %2347 = vmatpush1.msra.mxu0 %v2315
    %2348 = vmatprep.subr.mxu0 0.0
    %2349 = vmatpush1.msra.mxu0 %v2316
    %2350 = vmatprep.subr.mxu0 0.0
    %2351 = vmatpush1.msra.mxu0 %v2317
    %2352 = vmatprep.subr.mxu0 0.0
    %2353 = vmatpush1.msra.mxu0 %v2318
    %2354 = vmatprep.subr.mxu0 0.0
    %2355 = vmatpush1.msra.mxu0 %v2319
    %2356 = vmatprep.subr.mxu0 0.0
    %2357 = vmatpush1.msra.mxu0 %v2320
    %2358 = vmatprep.subr.mxu0 0.0
    %2359 = vmatpush1.msra.mxu0 %v2321
    %2360 = vmatprep.subr.mxu0 0.0
    %2361 = vmatpush1.msra.mxu0 %v2322
    %2362 = vmatprep.subr.mxu0 0.0
    %2363 = vmatpush1.msra.mxu0 %v2323
    %2364 = vmatprep.subr.mxu0 0.0
    %2365 = vmatpush1.msra.mxu0 0.0
    %2366 = vmatprep.subr.mxu0 0.0
    %2367 = vmatpush1.msra.mxu0 0.0
    %2368 = vmatprep.subr.mxu0 0.0
    %2369 = vmatpush1.msra.mxu0 0.0
    %2370 = vmatprep.subr.mxu0 0.0
    %2371 = vmatpush1.msra.mxu0 0.0
    %2372 = vmatprep.subr.mxu0 0.0
    %2373 = vmatpush1.msra.mxu0 0.0
    %2374 = vmatprep.subr.mxu0 0.0
    %2375 = vmatpush1.msra.mxu0 0.0
    %2376 = vmatprep.subr.mxu0 0.0
    %2377 = vmatpush1.msra.mxu0 0.0
    %2378 = vmatprep.subr.mxu0 0.0
    %2379 = vmatpush1.msra.mxu0 0.0
    %2380 = vmatprep.subr.mxu0 0.0
    %2381 = vmatpush1.msra.mxu0 0.0
    %2382 = vmatprep.subr.mxu0 0.0
    %2383 = vmatpush1.msra.mxu0 0.0
    %2384 = vmatprep.subr.mxu0 0.0
    %2385 = vmatpush1.msra.mxu0 0.0
    %2386 = vmatprep.subr.mxu0 0.0
    %2387 = vmatpush1.msra.mxu0 0.0
    %2388 = vmatprep.subr.mxu0 0.0
    %2389 = vmatpush1.msra.mxu0 0.0
    %2390 = vmatprep.subr.mxu0 0.0
    %2391 = vmatpush1.msra.mxu0 0.0
    %2392 = vmatprep.subr.mxu0 0.0
    %2393 = vmatpush1.msra.mxu0 0.0
    %2394 = vmatprep.subr.mxu0 0.0
    %2395 = vmatpush1.msra.mxu0 0.0
    %2396 = vmatprep.mubr.f32.mxu0 0.0
    %2397 = vmatmul.mubr.f32.gmra.mrb[0].mxu0 %v2306
    %v2398 = vpop.f32.mrb[0].mxu0
    %v2399 = vadd.f32 %v2330, %v2398
    %v2400 = vpop.f32.mrb[0].mxu0
    %2401 = vdwg.mxu0
    %v2402 = vadd.f32 %v2176, %v2399
    %v2403 = vld [vmem:[%s16] sm:$0x1]
    %v2404 = vld [vmem:[%s17] sm:$0x1]
    %v2405 = vsel %vm87, %v2402, 0.0
    %2406 = vadd.xlane.f32.xlu0 %v2405
    %v2407 = vpop.xlane.xlu0 %2406
    %v2408 = vmul.f32 %v2407, %v167
    %v2409 = vsub.f32 %v2402, %v2408
    %v2410 = vmul.f32 %v2409, %v2409
    %v2411 = vsel %vm87, %v2410, 0.0
    %2412 = vadd.xlane.f32.xlu0 %v2411
    %v2413 = vpop.xlane.xlu0 %2412
    %v2414 = vmul.f32 %v2413, %v167
    %v2415 = vadd.f32 %v2414, 1e-06
    %v2416 = vrsqrt.pop %v2415
    %v2417 = vmul.f32 %v2409, %v2416
    %v2419 = vlaneseq
    %v2420 = vshrl.u32 %v2419, 7
    %v2421 = vsub.s32 0, %v2420
    %v2422 = vrot.slane %v2403, %v2421
    %v2424 = vmul.f32 %v2417, %v2422
    %v2426 = vlaneseq
    %v2427 = vshrl.u32 %v2426, 7
    %v2428 = vsub.s32 0, %v2427
    %v2429 = vrot.slane %v2404, %v2428
    %v2431 = vadd.f32 %v2424, %v2429
    %2432 = vst.msk [vmem:[#allocation2] sm:$0xff] %vm87, %v2431
    // Predicated region
    $region74: #{siglip_vision_forward.1} parent=1 // pred_check
      _
    $region75: #{siglip_vision_forward.1} parent=1 // pred_check_branch
      %2434 = sbr.rel (0) target = $region77
    $region76: #{siglip_vision_forward.1} parent=1 // pred_region
      %s2436 = ssub.s32 128, 128
      %2437 = vsyncadd [#allocation3], %s2436
      %s2439 = sshll.u32 [#allocation2], 4
      %s2440 = int_to_ptr.vmem [resolvable:$true] %s2439
      %2442 = dma.vmem_to_hbm [thread:$0]  %s2440, 128, %s18, [#allocation3]
    $region77: #{siglip_vision_forward.1} parent=1 // pred_fallthru
      _
    // Predicated region
    $region78: #{siglip_vision_forward.1} parent=1 // pred_check
      _
    $region79: #{siglip_vision_forward.1} parent=1 // pred_check_branch
      %2444 = sbr.rel (0) target = $region81
    $region80: #{siglip_vision_forward.1} parent=1 // pred_region
      %2445 = dma.done [#allocation3], 128
    $region81: #{siglip_vision_forward.1} parent=1 // pred_fallthru
      _
    %2446 = vsyncpa [#allocation3], 1

</llo_original>
